<compile_context>
chip_gen: v7x
topology: tpu7x:2x2x1
jax: 0.10.0
libtpu: 0.0.40
codegen_flags: <defaults>
</compile_context>

<pallas_src>
import jax
import jax.numpy as jnp
import numpy as np
from jax.experimental import pallas as pl
from jax.experimental.pallas import tpu as pltpu


# ---------------------------------------------------------------------------
# Fused kernel: maxpool2x2 -> conv3x3+BN+ReLU -> conv3x3+BN+ReLU
# ---------------------------------------------------------------------------
def _down_fused_kernel(x_ref, w1_ref, sh1_ref, w2_ref, sh2_ref, o_ref,
                       pad1_ref, pad2_ref):
    # x_ref   : (1, H, W, Cin)        bf16
    # w1_ref  : (3, 3*Cin, Cmid)      bf16  (BN scale already folded in)
    # sh1_ref : (1, Cmid)             f32
    # w2_ref  : (3, 3*Cmid, Cout)     bf16
    # sh2_ref : (1, Cout)             f32
    # o_ref   : (1, H//2, W//2, Cout) f32
    # pad1/pad2: VMEM scratch holding the zero-padded conv inputs.
    _, H, W, Cin = x_ref.shape
    Hh, Wh = H // 2, W // 2
    Cmid = w1_ref.shape[-1]
    Cout = o_ref.shape[-1]

    # ---- MaxPool2d(kernel=2, stride=2), entirely in VMEM ----
    x = x_ref[0]                                       # (H, W, Cin) bf16
    xw = jnp.max(x.reshape(H, Wh, 2, Cin), axis=2)     # pool along W
    pooled = jnp.max(xw.reshape(Hh, 2, Wh, Cin), axis=1)  # pool along H

    # ---- conv1 (3x3, pad=1, no bias) + folded BN + ReLU ----
    # zero padding realized by a zeroed VMEM scratch (no jnp.pad / HBM round trip)
    pad1_ref[...] = jnp.zeros(pad1_ref.shape, pad1_ref.dtype)
    pad1_ref[1:Hh + 1, 1:Wh + 1, :] = pooled

    acc1 = jnp.zeros((Hh * Wh, Cmid), jnp.float32)
    for ky in range(3):
        # kx handled by concatenating the 3 shifted windows along channels -> K = 3*Cin
        patch = jnp.concatenate(
            [pad1_ref[ky:ky + Hh, kx:kx + Wh, :] for kx in range(3)], axis=-1)
        acc1 = acc1 + jnp.dot(patch.reshape(Hh * Wh, 3 * Cin), w1_ref[ky],
                              preferred_element_type=jnp.float32)
    y1 = jnp.maximum(acc1 + sh1_ref[...], 0.0)         # BN shift + ReLU (f32)

    # ---- conv2 (3x3, pad=1, no bias) + folded BN + ReLU ----
    pad2_ref[...] = jnp.zeros(pad2_ref.shape, pad2_ref.dtype)
    pad2_ref[1:Hh + 1, 1:Wh + 1, :] = (
        y1.reshape(Hh, Wh, Cmid).astype(pad2_ref.dtype))

    acc2 = jnp.zeros((Hh * Wh, Cout), jnp.float32)
    for ky in range(3):
        patch = jnp.concatenate(
            [pad2_ref[ky:ky + Hh, kx:kx + Wh, :] for kx in range(3)], axis=-1)
        acc2 = acc2 + jnp.dot(patch.reshape(Hh * Wh, 3 * Cmid), w2_ref[ky],
                              preferred_element_type=jnp.float32)
    y2 = jnp.maximum(acc2 + sh2_ref[...], 0.0)

    o_ref[0] = y2.reshape(Hh, Wh, Cout).astype(o_ref.dtype)


def fused_down(x, w1, sh1, w2, sh2):
    # x: (N, H, W, Cin) bf16; w1: (3, 3*Cin, Cmid) bf16; w2: (3, 3*Cmid, Cout) bf16
    N, H, W, Cin = x.shape
    assert H % 2 == 0 and W % 2 == 0, "MaxPool2d(2) path assumes even H, W"
    Hh, Wh = H // 2, W // 2
    Cmid = w1.shape[-1]
    Cout = w2.shape[-1]
    return pl.pallas_call(
        _down_fused_kernel,
        out_shape=jax.ShapeDtypeStruct((N, Hh, Wh, Cout), jnp.float32),
        grid=(N,),
        in_specs=[
            pl.BlockSpec((1, H, W, Cin), lambda n: (n, 0, 0, 0)),
            pl.BlockSpec((3, 3 * Cin, Cmid), lambda n: (0, 0, 0)),
            pl.BlockSpec((1, Cmid), lambda n: (0, 0)),
            pl.BlockSpec((3, 3 * Cmid, Cout), lambda n: (0, 0, 0)),
            pl.BlockSpec((1, Cout), lambda n: (0, 0)),
        ],
        out_specs=pl.BlockSpec((1, Hh, Wh, Cout), lambda n: (n, 0, 0, 0)),
        scratch_shapes=[
            pltpu.VMEM((Hh + 2, Wh + 2, Cin), jnp.bfloat16),   # padded pooled input
            pltpu.VMEM((Hh + 2, Wh + 2, Cmid), jnp.bfloat16),  # padded conv1 output
        ],
        compiler_params=pltpu.CompilerParams(
            dimension_semantics=("parallel",)),
    )(x, w1, sh1, w2, sh2)


# ---------------------------------------------------------------------------
# Parameter init (deterministic, synthetic) + Down forward
# ---------------------------------------------------------------------------
def init_down_params(key, in_channels, out_channels, mid_channels=None):
    if mid_channels is None:
        mid_channels = out_channels
    eps = 1e-5
    k1, k2 = jax.random.split(key)
    # conv weights stored as (kh, kw, Cin, Cout)
    w1 = jax.random.normal(k1, (3, 3, in_channels, mid_channels), jnp.float32)
    w1 = w1 * (2.0 / (3 * 3 * in_channels)) ** 0.5
    w2 = jax.random.normal(k2, (3, 3, mid_channels, out_channels), jnp.float32)
    w2 = w2 * (2.0 / (3 * 3 * mid_channels)) ** 0.5

    # BatchNorm (gamma=1, beta=0, running_mean=0, running_var=1) folded to affine
    def bn_fold(c):
        gamma = jnp.ones((c,), jnp.float32)
        beta = jnp.zeros((c,), jnp.float32)
        mean = jnp.zeros((c,), jnp.float32)
        var = jnp.ones((c,), jnp.float32)
        scale = gamma / jnp.sqrt(var + eps)
        shift = beta - mean * scale
        return scale, shift

    scale1, shift1 = bn_fold(mid_channels)
    scale2, shift2 = bn_fold(out_channels)
    return dict(w1=w1, scale1=scale1, shift1=shift1,
                w2=w2, scale2=scale2, shift2=shift2)


def _fold_weight(w, scale):
    # Fold BN scale into conv weight and reshape (3,3,Cin,Cout) -> (3, 3*Cin, Cout),
    # matching the kernel's kx-concatenated K layout (k = kx*Cin + cin). Cast to bf16.
    kh, kw, cin, cout = w.shape
    wf = (w * scale[None, None, None, :]).reshape(kh, kw * cin, cout)
    return wf.astype(jnp.bfloat16)


@jax.jit
def down_forward(params, x_nchw):
    # NCHW -> NHWC, bf16 MXU operands
    x = jnp.transpose(x_nchw, (0, 2, 3, 1)).astype(jnp.bfloat16)
    w1 = _fold_weight(params["w1"], params["scale1"])
    w2 = _fold_weight(params["w2"], params["scale2"])
    sh1 = params["shift1"].reshape(1, -1).astype(jnp.float32)
    sh2 = params["shift2"].reshape(1, -1).astype(jnp.float32)
    y = fused_down(x, w1, sh1, w2, sh2)
    # back to NCHW to match PyTorch output convention
    return jnp.transpose(y, (0, 3, 1, 2))


# Pure-JAX reference (f32) for a loose sanity check of the fused kernel.
@jax.jit
def _reference_down(params, x_nchw):
    x = jnp.transpose(x_nchw, (0, 2, 3, 1))
    x = jax.lax.reduce_window(x, -jnp.inf, jax.lax.max,
                              (1, 2, 2, 1), (1, 2, 2, 1), "VALID")

    def conv_bn_relu(h, w, scale, shift):
        y = jax.lax.conv_general_dilated(
            h, w, window_strides=(1, 1), padding="SAME",
            dimension_numbers=("NHWC", "HWIO", "NHWC"))
        return jnp.maximum(y * scale + shift, 0.0)

    x = conv_bn_relu(x, params["w1"], params["scale1"], params["shift1"])
    x = conv_bn_relu(x, params["w2"], params["scale2"], params["shift2"])
    return jnp.transpose(x, (0, 3, 1, 2))


if __name__ == "__main__":
    key = jax.random.PRNGKey(0)
    k_x, k_p = jax.random.split(key)

    N, Cin, H, W = 2, 4, 16, 16
    Cout = 8

    x = jax.random.normal(k_x, (N, Cin, H, W), jnp.float32)
    params = init_down_params(k_p, Cin, Cout)

    out = jax.block_until_ready(down_forward(params, x))
    assert out.shape == (N, Cout, H // 2, W // 2), out.shape

    # Loose tolerance: kernel feeds bf16 operands to the MXU (f32 accumulate).
    ref = jax.block_until_ready(_reference_down(params, x))
    np.testing.assert_allclose(np.asarray(out), np.asarray(ref),
                               atol=0.3, rtol=0.1)

    print("KERNEL_OK")
</pallas_src>

<mosaic_0001>
module attributes {stable_mosaic.version = 11 : i64} {
  func.func @_down_fused_kernel(%arg0: i32, %arg1: memref<1x16x16x4xbf16, #tpu.memory_space<vmem>>, %arg2: memref<3x12x8xbf16, #tpu.memory_space<vmem>>, %arg3: memref<1x8xf32, #tpu.memory_space<vmem>>, %arg4: memref<3x24x8xbf16, #tpu.memory_space<vmem>>, %arg5: memref<1x8xf32, #tpu.memory_space<vmem>>, %arg6: memref<1x8x8x8xf32, #tpu.memory_space<vmem>>, %arg7: memref<10x10x4xbf16, #tpu.memory_space<vmem>>, %arg8: memref<10x10x8xbf16, #tpu.memory_space<vmem>>) attributes {dimension_semantics = [#tpu.dimension_semantics<parallel>], iteration_bounds = array<i64: 2>, scalar_prefetch = 0 : i64, scratch_operands = 2 : i64, tpu.core_type = #tpu.core_type<tc>, window_params = [{transform_indices = @transform_0, window_bounds = array<i64: 1, 16, 16, 4>}, {pipeline_mode = #tpu.pipeline_mode<synchronous>, transform_indices = @transform_1, window_bounds = array<i64: 3, 12, 8>}, {pipeline_mode = #tpu.pipeline_mode<synchronous>, transform_indices = @transform_2, window_bounds = array<i64: 1, 8>}, {pipeline_mode = #tpu.pipeline_mode<synchronous>, transform_indices = @transform_3, window_bounds = array<i64: 3, 24, 8>}, {pipeline_mode = #tpu.pipeline_mode<synchronous>, transform_indices = @transform_4, window_bounds = array<i64: 1, 8>}, {transform_indices = @transform_5, window_bounds = array<i64: 1, 8, 8, 8>}]} {
    %c0 = arith.constant 0 : index
    %c0_0 = arith.constant 0 : index
    %c0_1 = arith.constant 0 : index
    %c0_2 = arith.constant 0 : index
    %0 = vector.load %arg1[%c0, %c0_0, %c0_1, %c0_2] : memref<1x16x16x4xbf16, #tpu.memory_space<vmem>>, vector<1x16x16x4xbf16>
    %1 = vector.shape_cast %0 : vector<1x16x16x4xbf16> to vector<16x16x4xbf16>
    %2 = vector.shape_cast %1 : vector<16x16x4xbf16> to vector<16x8x2x4xbf16>
    %cst = arith.constant dense<0xFF80> : vector<16x8x4xbf16>
    %3 = vector.multi_reduction <maximumf>, %2, %cst [2] : vector<16x8x2x4xbf16> to vector<16x8x4xbf16>
    %4 = vector.shape_cast %3 : vector<16x8x4xbf16> to vector<8x2x8x4xbf16>
    %cst_3 = arith.constant dense<0xFF80> : vector<8x8x4xbf16>
    %5 = vector.multi_reduction <maximumf>, %4, %cst_3 [1] : vector<8x2x8x4xbf16> to vector<8x8x4xbf16>
    %cst_4 = arith.constant 0.000000e+00 : bf16
    %6 = vector.broadcast %cst_4 : bf16 to vector<10x10x4xbf16>
    %c0_5 = arith.constant 0 : index
    %c0_6 = arith.constant 0 : index
    %c0_7 = arith.constant 0 : index
    %7 = vector.load %arg7[%c0_5, %c0_6, %c0_7] : memref<10x10x4xbf16, #tpu.memory_space<vmem>>, vector<10x10x4xbf16>
    tpu.vector_store %arg7[%c0_5, %c0_6, %c0_7], %6 {strides = array<i32>} : memref<10x10x4xbf16, #tpu.memory_space<vmem>>, vector<10x10x4xbf16>,
    %c1 = arith.constant 1 : index
    %c1_8 = arith.constant 1 : index
    %c0_9 = arith.constant 0 : index
    %8 = vector.load %arg7[%c1, %c1_8, %c0_9] : memref<10x10x4xbf16, #tpu.memory_space<vmem>>, vector<8x8x4xbf16>
    tpu.vector_store %arg7[%c1, %c1_8, %c0_9], %5 {strides = array<i32>} : memref<10x10x4xbf16, #tpu.memory_space<vmem>>, vector<8x8x4xbf16>,
    %cst_10 = arith.constant 0.000000e+00 : f32
    %9 = vector.broadcast %cst_10 : f32 to vector<64x8xf32>
    %c0_11 = arith.constant 0 : index
    %c0_12 = arith.constant 0 : index
    %c0_13 = arith.constant 0 : index
    %10 = vector.load %arg7[%c0_11, %c0_12, %c0_13] : memref<10x10x4xbf16, #tpu.memory_space<vmem>>, vector<8x8x4xbf16>
    %c0_14 = arith.constant 0 : index
    %c1_15 = arith.constant 1 : index
    %c0_16 = arith.constant 0 : index
    %11 = vector.load %arg7[%c0_14, %c1_15, %c0_16] : memref<10x10x4xbf16, #tpu.memory_space<vmem>>, vector<8x8x4xbf16>
    %c0_17 = arith.constant 0 : index
    %c2 = arith.constant 2 : index
    %c0_18 = arith.constant 0 : index
    %12 = vector.load %arg7[%c0_17, %c2, %c0_18] : memref<10x10x4xbf16, #tpu.memory_space<vmem>>, vector<8x8x4xbf16>
    %13 = tpu.concatenate %10, %11, %12 in 2 : vector<8x8x4xbf16>, vector<8x8x4xbf16>, vector<8x8x4xbf16> -> vector<8x8x12xbf16>
    %14 = vector.shape_cast %13 : vector<8x8x12xbf16> to vector<64x12xbf16>
    %c0_19 = arith.constant 0 : index
    %c0_20 = arith.constant 0 : index
    %c0_21 = arith.constant 0 : index
    %15 = vector.load %arg2[%c0_19, %c0_20, %c0_21] : memref<3x12x8xbf16, #tpu.memory_space<vmem>>, vector<1x12x8xbf16>
    %16 = vector.shape_cast %15 : vector<1x12x8xbf16> to vector<12x8xbf16>
    %cst_22 = arith.constant dense<0.000000e+00> : vector<64x8xf32>
    %17 = tpu.matmul %14, %16, %cst_22 {dimension_numbers = #tpu.dot_dimension_numbers<[1], [0], [0], [1], [0, 0, 1, 1], [], []>} : vector<64x12xbf16>, vector<12x8xbf16>, vector<64x8xf32> -> vector<64x8xf32>
    %18 = arith.addf %9, %17 : vector<64x8xf32>
    %c1_23 = arith.constant 1 : index
    %c0_24 = arith.constant 0 : index
    %c0_25 = arith.constant 0 : index
    %19 = vector.load %arg7[%c1_23, %c0_24, %c0_25] : memref<10x10x4xbf16, #tpu.memory_space<vmem>>, vector<8x8x4xbf16>
    %c1_26 = arith.constant 1 : index
    %c1_27 = arith.constant 1 : index
    %c0_28 = arith.constant 0 : index
    %20 = vector.load %arg7[%c1_26, %c1_27, %c0_28] : memref<10x10x4xbf16, #tpu.memory_space<vmem>>, vector<8x8x4xbf16>
    %c1_29 = arith.constant 1 : index
    %c2_30 = arith.constant 2 : index
    %c0_31 = arith.constant 0 : index
    %21 = vector.load %arg7[%c1_29, %c2_30, %c0_31] : memref<10x10x4xbf16, #tpu.memory_space<vmem>>, vector<8x8x4xbf16>
    %22 = tpu.concatenate %19, %20, %21 in 2 : vector<8x8x4xbf16>, vector<8x8x4xbf16>, vector<8x8x4xbf16> -> vector<8x8x12xbf16>
    %23 = vector.shape_cast %22 : vector<8x8x12xbf16> to vector<64x12xbf16>
    %c1_32 = arith.constant 1 : index
    %c0_33 = arith.constant 0 : index
    %c0_34 = arith.constant 0 : index
    %24 = vector.load %arg2[%c1_32, %c0_33, %c0_34] : memref<3x12x8xbf16, #tpu.memory_space<vmem>>, vector<1x12x8xbf16>
    %25 = vector.shape_cast %24 : vector<1x12x8xbf16> to vector<12x8xbf16>
    %cst_35 = arith.constant dense<0.000000e+00> : vector<64x8xf32>
    %26 = tpu.matmul %23, %25, %cst_35 {dimension_numbers = #tpu.dot_dimension_numbers<[1], [0], [0], [1], [0, 0, 1, 1], [], []>} : vector<64x12xbf16>, vector<12x8xbf16>, vector<64x8xf32> -> vector<64x8xf32>
    %27 = arith.addf %18, %26 : vector<64x8xf32>
    %c2_36 = arith.constant 2 : index
    %c0_37 = arith.constant 0 : index
    %c0_38 = arith.constant 0 : index
    %28 = vector.load %arg7[%c2_36, %c0_37, %c0_38] : memref<10x10x4xbf16, #tpu.memory_space<vmem>>, vector<8x8x4xbf16>
    %c2_39 = arith.constant 2 : index
    %c1_40 = arith.constant 1 : index
    %c0_41 = arith.constant 0 : index
    %29 = vector.load %arg7[%c2_39, %c1_40, %c0_41] : memref<10x10x4xbf16, #tpu.memory_space<vmem>>, vector<8x8x4xbf16>
    %c2_42 = arith.constant 2 : index
    %c2_43 = arith.constant 2 : index
    %c0_44 = arith.constant 0 : index
    %30 = vector.load %arg7[%c2_42, %c2_43, %c0_44] : memref<10x10x4xbf16, #tpu.memory_space<vmem>>, vector<8x8x4xbf16>
    %31 = tpu.concatenate %28, %29, %30 in 2 : vector<8x8x4xbf16>, vector<8x8x4xbf16>, vector<8x8x4xbf16> -> vector<8x8x12xbf16>
    %32 = vector.shape_cast %31 : vector<8x8x12xbf16> to vector<64x12xbf16>
    %c2_45 = arith.constant 2 : index
    %c0_46 = arith.constant 0 : index
    %c0_47 = arith.constant 0 : index
    %33 = vector.load %arg2[%c2_45, %c0_46, %c0_47] : memref<3x12x8xbf16, #tpu.memory_space<vmem>>, vector<1x12x8xbf16>
    %34 = vector.shape_cast %33 : vector<1x12x8xbf16> to vector<12x8xbf16>
    %cst_48 = arith.constant dense<0.000000e+00> : vector<64x8xf32>
    %35 = tpu.matmul %32, %34, %cst_48 {dimension_numbers = #tpu.dot_dimension_numbers<[1], [0], [0], [1], [0, 0, 1, 1], [], []>} : vector<64x12xbf16>, vector<12x8xbf16>, vector<64x8xf32> -> vector<64x8xf32>
    %36 = arith.addf %27, %35 : vector<64x8xf32>
    %c0_49 = arith.constant 0 : index
    %c0_50 = arith.constant 0 : index
    %37 = vector.load %arg3[%c0_49, %c0_50] : memref<1x8xf32, #tpu.memory_space<vmem>>, vector<1x8xf32>
    %38 = vector.broadcast %37 : vector<1x8xf32> to vector<64x8xf32>
    %39 = arith.addf %36, %38 : vector<64x8xf32>
    %cst_51 = arith.constant 0.000000e+00 : f32
    %40 = vector.broadcast %cst_51 : f32 to vector<64x8xf32>
    %41 = arith.maximumf %39, %40 : vector<64x8xf32>
    %cst_52 = arith.constant 0.000000e+00 : bf16
    %42 = vector.broadcast %cst_52 : bf16 to vector<10x10x8xbf16>
    %c0_53 = arith.constant 0 : index
    %c0_54 = arith.constant 0 : index
    %c0_55 = arith.constant 0 : index
    %43 = vector.load %arg8[%c0_53, %c0_54, %c0_55] : memref<10x10x8xbf16, #tpu.memory_space<vmem>>, vector<10x10x8xbf16>
    tpu.vector_store %arg8[%c0_53, %c0_54, %c0_55], %42 {strides = array<i32>} : memref<10x10x8xbf16, #tpu.memory_space<vmem>>, vector<10x10x8xbf16>,
    %44 = vector.shape_cast %41 : vector<64x8xf32> to vector<8x8x8xf32>
    %45 = arith.truncf %44 : vector<8x8x8xf32> to vector<8x8x8xbf16>
    %c1_56 = arith.constant 1 : index
    %c1_57 = arith.constant 1 : index
    %c0_58 = arith.constant 0 : index
    %46 = vector.load %arg8[%c1_56, %c1_57, %c0_58] : memref<10x10x8xbf16, #tpu.memory_space<vmem>>, vector<8x8x8xbf16>
    tpu.vector_store %arg8[%c1_56, %c1_57, %c0_58], %45 {strides = array<i32>} : memref<10x10x8xbf16, #tpu.memory_space<vmem>>, vector<8x8x8xbf16>,
    %cst_59 = arith.constant 0.000000e+00 : f32
    %47 = vector.broadcast %cst_59 : f32 to vector<64x8xf32>
    %c0_60 = arith.constant 0 : index
    %c0_61 = arith.constant 0 : index
    %c0_62 = arith.constant 0 : index
    %48 = vector.load %arg8[%c0_60, %c0_61, %c0_62] : memref<10x10x8xbf16, #tpu.memory_space<vmem>>, vector<8x8x8xbf16>
    %c0_63 = arith.constant 0 : index
    %c1_64 = arith.constant 1 : index
    %c0_65 = arith.constant 0 : index
    %49 = vector.load %arg8[%c0_63, %c1_64, %c0_65] : memref<10x10x8xbf16, #tpu.memory_space<vmem>>, vector<8x8x8xbf16>
    %c0_66 = arith.constant 0 : index
    %c2_67 = arith.constant 2 : index
    %c0_68 = arith.constant 0 : index
    %50 = vector.load %arg8[%c0_66, %c2_67, %c0_68] : memref<10x10x8xbf16, #tpu.memory_space<vmem>>, vector<8x8x8xbf16>
    %51 = tpu.concatenate %48, %49, %50 in 2 : vector<8x8x8xbf16>, vector<8x8x8xbf16>, vector<8x8x8xbf16> -> vector<8x8x24xbf16>
    %52 = vector.shape_cast %51 : vector<8x8x24xbf16> to vector<64x24xbf16>
    %c0_69 = arith.constant 0 : index
    %c0_70 = arith.constant 0 : index
    %c0_71 = arith.constant 0 : index
    %53 = vector.load %arg4[%c0_69, %c0_70, %c0_71] : memref<3x24x8xbf16, #tpu.memory_space<vmem>>, vector<1x24x8xbf16>
    %54 = vector.shape_cast %53 : vector<1x24x8xbf16> to vector<24x8xbf16>
    %cst_72 = arith.constant dense<0.000000e+00> : vector<64x8xf32>
    %55 = tpu.matmul %52, %54, %cst_72 {dimension_numbers = #tpu.dot_dimension_numbers<[1], [0], [0], [1], [0, 0, 1, 1], [], []>} : vector<64x24xbf16>, vector<24x8xbf16>, vector<64x8xf32> -> vector<64x8xf32>
    %56 = arith.addf %47, %55 : vector<64x8xf32>
    %c1_73 = arith.constant 1 : index
    %c0_74 = arith.constant 0 : index
    %c0_75 = arith.constant 0 : index
    %57 = vector.load %arg8[%c1_73, %c0_74, %c0_75] : memref<10x10x8xbf16, #tpu.memory_space<vmem>>, vector<8x8x8xbf16>
    %c1_76 = arith.constant 1 : index
    %c1_77 = arith.constant 1 : index
    %c0_78 = arith.constant 0 : index
    %58 = vector.load %arg8[%c1_76, %c1_77, %c0_78] : memref<10x10x8xbf16, #tpu.memory_space<vmem>>, vector<8x8x8xbf16>
    %c1_79 = arith.constant 1 : index
    %c2_80 = arith.constant 2 : index
    %c0_81 = arith.constant 0 : index
    %59 = vector.load %arg8[%c1_79, %c2_80, %c0_81] : memref<10x10x8xbf16, #tpu.memory_space<vmem>>, vector<8x8x8xbf16>
    %60 = tpu.concatenate %57, %58, %59 in 2 : vector<8x8x8xbf16>, vector<8x8x8xbf16>, vector<8x8x8xbf16> -> vector<8x8x24xbf16>
    %61 = vector.shape_cast %60 : vector<8x8x24xbf16> to vector<64x24xbf16>
    %c1_82 = arith.constant 1 : index
    %c0_83 = arith.constant 0 : index
    %c0_84 = arith.constant 0 : index
    %62 = vector.load %arg4[%c1_82, %c0_83, %c0_84] : memref<3x24x8xbf16, #tpu.memory_space<vmem>>, vector<1x24x8xbf16>
    %63 = vector.shape_cast %62 : vector<1x24x8xbf16> to vector<24x8xbf16>
    %cst_85 = arith.constant dense<0.000000e+00> : vector<64x8xf32>
    %64 = tpu.matmul %61, %63, %cst_85 {dimension_numbers = #tpu.dot_dimension_numbers<[1], [0], [0], [1], [0, 0, 1, 1], [], []>} : vector<64x24xbf16>, vector<24x8xbf16>, vector<64x8xf32> -> vector<64x8xf32>
    %65 = arith.addf %56, %64 : vector<64x8xf32>
    %c2_86 = arith.constant 2 : index
    %c0_87 = arith.constant 0 : index
    %c0_88 = arith.constant 0 : index
    %66 = vector.load %arg8[%c2_86, %c0_87, %c0_88] : memref<10x10x8xbf16, #tpu.memory_space<vmem>>, vector<8x8x8xbf16>
    %c2_89 = arith.constant 2 : index
    %c1_90 = arith.constant 1 : index
    %c0_91 = arith.constant 0 : index
    %67 = vector.load %arg8[%c2_89, %c1_90, %c0_91] : memref<10x10x8xbf16, #tpu.memory_space<vmem>>, vector<8x8x8xbf16>
    %c2_92 = arith.constant 2 : index
    %c2_93 = arith.constant 2 : index
    %c0_94 = arith.constant 0 : index
    %68 = vector.load %arg8[%c2_92, %c2_93, %c0_94] : memref<10x10x8xbf16, #tpu.memory_space<vmem>>, vector<8x8x8xbf16>
    %69 = tpu.concatenate %66, %67, %68 in 2 : vector<8x8x8xbf16>, vector<8x8x8xbf16>, vector<8x8x8xbf16> -> vector<8x8x24xbf16>
    %70 = vector.shape_cast %69 : vector<8x8x24xbf16> to vector<64x24xbf16>
    %c2_95 = arith.constant 2 : index
    %c0_96 = arith.constant 0 : index
    %c0_97 = arith.constant 0 : index
    %71 = vector.load %arg4[%c2_95, %c0_96, %c0_97] : memref<3x24x8xbf16, #tpu.memory_space<vmem>>, vector<1x24x8xbf16>
    %72 = vector.shape_cast %71 : vector<1x24x8xbf16> to vector<24x8xbf16>
    %cst_98 = arith.constant dense<0.000000e+00> : vector<64x8xf32>
    %73 = tpu.matmul %70, %72, %cst_98 {dimension_numbers = #tpu.dot_dimension_numbers<[1], [0], [0], [1], [0, 0, 1, 1], [], []>} : vector<64x24xbf16>, vector<24x8xbf16>, vector<64x8xf32> -> vector<64x8xf32>
    %74 = arith.addf %65, %73 : vector<64x8xf32>
    %c0_99 = arith.constant 0 : index
    %c0_100 = arith.constant 0 : index
    %75 = vector.load %arg5[%c0_99, %c0_100] : memref<1x8xf32, #tpu.memory_space<vmem>>, vector<1x8xf32>
    %76 = vector.broadcast %75 : vector<1x8xf32> to vector<64x8xf32>
    %77 = arith.addf %74, %76 : vector<64x8xf32>
    %cst_101 = arith.constant 0.000000e+00 : f32
    %78 = vector.broadcast %cst_101 : f32 to vector<64x8xf32>
    %79 = arith.maximumf %77, %78 : vector<64x8xf32>
    %80 = vector.shape_cast %79 : vector<64x8xf32> to vector<8x8x8xf32>
    %c0_102 = arith.constant 0 : index
    %c0_103 = arith.constant 0 : index
    %c0_104 = arith.constant 0 : index
    %c0_105 = arith.constant 0 : index
    %81 = vector.load %arg6[%c0_102, %c0_103, %c0_104, %c0_105] : memref<1x8x8x8xf32, #tpu.memory_space<vmem>>, vector<1x8x8x8xf32>
    %82 = vector.shape_cast %81 : vector<1x8x8x8xf32> to vector<8x8x8xf32>
    %83 = vector.shape_cast %80 : vector<8x8x8xf32> to vector<1x8x8x8xf32>
    tpu.vector_store %arg6[%c0_102, %c0_103, %c0_104, %c0_105], %83 {strides = array<i32>} : memref<1x8x8x8xf32, #tpu.memory_space<vmem>>, vector<1x8x8x8xf32>,
    return
  }
  func.func @transform_0(%arg0: i32) -> (i32, i32, i32, i32) {
    %c0_i32 = arith.constant 0 : i32
    %c0_i32_0 = arith.constant 0 : i32
    %c0_i32_1 = arith.constant 0 : i32
    %c0_i32_2 = arith.constant 0 : i32
    return %arg0, %c0_i32, %c0_i32_0, %c0_i32_1 : i32, i32, i32, i32
  }
  func.func @transform_1(%arg0: i32) -> (i32, i32, i32) {
    %c0_i32 = arith.constant 0 : i32
    %c0_i32_0 = arith.constant 0 : i32
    %c0_i32_1 = arith.constant 0 : i32
    %c0_i32_2 = arith.constant 0 : i32
    return %c0_i32, %c0_i32_0, %c0_i32_1 : i32, i32, i32
  }
  func.func @transform_2(%arg0: i32) -> (i32, i32) {
    %c0_i32 = arith.constant 0 : i32
    %c0_i32_0 = arith.constant 0 : i32
    %c0_i32_1 = arith.constant 0 : i32
    return %c0_i32, %c0_i32_0 : i32, i32
  }
  func.func @transform_3(%arg0: i32) -> (i32, i32, i32) {
    %c0_i32 = arith.constant 0 : i32
    %c0_i32_0 = arith.constant 0 : i32
    %c0_i32_1 = arith.constant 0 : i32
    %c0_i32_2 = arith.constant 0 : i32
    return %c0_i32, %c0_i32_0, %c0_i32_1 : i32, i32, i32
  }
  func.func @transform_4(%arg0: i32) -> (i32, i32) {
    %c0_i32 = arith.constant 0 : i32
    %c0_i32_0 = arith.constant 0 : i32
    %c0_i32_1 = arith.constant 0 : i32
    return %c0_i32, %c0_i32_0 : i32, i32
  }
  func.func @transform_5(%arg0: i32) -> (i32, i32, i32, i32) {
    %c0_i32 = arith.constant 0 : i32
    %c0_i32_0 = arith.constant 0 : i32
    %c0_i32_1 = arith.constant 0 : i32
    %c0_i32_2 = arith.constant 0 : i32
    return %arg0, %c0_i32, %c0_i32_0, %c0_i32_1 : i32, i32, i32, i32
  }
}

</mosaic_0001>

<llo_original>
// kernel: down_forward.1
$region0: #{down_forward.1}
  #allocation0 [shape = 'u32[]', space=smem, size = 0x4, offset = 0x4, fixed_abs, tag = 'smem constant byte address 0x4 - core index']
  #allocation1 [shape = 'u32[144,128]{1,0:T(1,128)}', space=vmem, size = 0x12000, scoped, tag = 'internal scratch']
  #allocation2 [shape = 'bf16[10,10,4]{2,1,0:T(8,128)(2,1)}', space=vmem, size = 0xa000, scoped, tag = 'scratch operand']
  #allocation3 [shape = 'bf16[10,10,8]{2,1,0:T(8,128)(2,1)}', space=vmem, size = 0xa000, scoped, tag = 'scratch operand']
  %s0 = inlined_call_operand.vmem [shape: bf16[2,16,16,4], index: 0, kind: input, shape index: {}]
  %s1 = inlined_call_operand.vmem [shape: bf16[3,12,8], index: 1, kind: input, shape index: {}]
  %s2 = inlined_call_operand.vmem [shape: f32[1,8], index: 2, kind: input, shape index: {}]
  %s3 = inlined_call_operand.vmem [shape: bf16[3,24,8], index: 3, kind: input, shape index: {}]
  %s4 = inlined_call_operand.vmem [shape: f32[1,8], index: 4, kind: input, shape index: {}]
  %s5 = inlined_call_operand.vmem [shape: f32[2,8,8,8], index: 5, kind: output, shape index: {}]
  %s6 = sld [smem:[#allocation0]]
  $region53: #{down_forward.1} parent=0
    _
  %s8 = ssub.s32 1, %s6
  %s9 = scalar_select 0, %s8, %s6
  loop: start=0, step=1, limit=4
  $region2: #{down_forward.1} parent=0 // loop_pre_header
    _
  $region3: #{down_forward.1} parent=0 // loop_header
    %s11 = sphi 0, %s15
    %p12 = scmp.ge.s32.totalorder %s11, 4
    %s21 = sphi 0, %s23
    %s24 = sphi 0, %s21
    %s25 = sphi 0, %s24
    %s41 = sphi 0, %s25
    %s45 = sphi 0, %s45
    %s47 = sphi 0, %s45
    %s48 = sphi 0, %s47
    %s62 = sphi 0, %s48
    %s66 = sphi 0, %s66
    %s68 = sphi 0, %s66
    %s69 = sphi 0, %s68
    %s83 = sphi 0, %s69
    %s87 = sphi 0, %s87
    %s89 = sphi 0, %s87
    %s90 = sphi 0, %s89
    %s104 = sphi 0, %s90
    %s108 = sphi 0, %s108
    %s110 = sphi 0, %s108
    %s111 = sphi 0, %s110
    %s125 = sphi 0, %s111
    %s131 = sphi 0, %s133
    %s134 = sphi 0, %s131
    %s135 = sphi 0, %s134
    %s151 = sphi 0, %s135
  $region4: #{down_forward.1} parent=0 // loop_header_branch
    %14 = sbr.rel (%p12) target = $region8
  $region5: #{down_forward.1} parent=0 // loop_body
    %s16 = ssub.s32 %s11, 1
    %s17 = ssub.s32 %s11, 2
    %s18 = sadd.s32 %s11, 1
    %s19 = ssub.s32 %s11, %s18
    %p20 = scmp.eq.s32.totalorder %s19, 0
    %s22 = sadd.s32 %s21, 1
    %s23 = scalar_select %p20, %s21, %s22
    %p26 = pneg %p20
    %p27 = scmp.eq.s32.totalorder %s11, 1
    %p28 = por %p26, %p27
    %p29 = scmp.ne.s32.totalorder %s21, %s24
    %p30 = scmp.eq.s32.totalorder %s11, 0
    %p31 = por %p29, %p30
    %p32 = scmp.ne.s32.totalorder %s21, %s24
    %p33 = scmp.eq.s32.totalorder %s16, 1
    %p34 = por %p32, %p33
    %p35 = scmp.ne.s32.totalorder %s24, %s25
    %p36 = scmp.eq.s32.totalorder %s16, 0
    %p37 = por %p35, %p36
    %p38 = scmp.ne.s32.totalorder %s24, %s25
    %p39 = scmp.eq.s32.totalorder %s17, 1
    %p40 = por %p38, %p39
    %p42 = scmp.ne.s32.totalorder %s25, %s41
    %p43 = scmp.eq.s32.totalorder %s17, 0
    %p44 = por %p42, %p43
    %s46 = sadd.s32 %s45, 1
    %p49 = scmp.eq.s32.totalorder %s11, 1
    %p50 = scmp.ne.s32.totalorder %s45, %s47
    %p51 = scmp.eq.s32.totalorder %s11, 0
    %p52 = por %p50, %p51
    %p53 = scmp.ne.s32.totalorder %s45, %s47
    %p54 = scmp.eq.s32.totalorder %s16, 1
    %p55 = por %p53, %p54
    %p56 = scmp.ne.s32.totalorder %s47, %s48
    %p57 = scmp.eq.s32.totalorder %s16, 0
    %p58 = por %p56, %p57
    %p59 = scmp.ne.s32.totalorder %s47, %s48
    %p60 = scmp.eq.s32.totalorder %s17, 1
    %p61 = por %p59, %p60
    %p63 = scmp.ne.s32.totalorder %s48, %s62
    %p64 = scmp.eq.s32.totalorder %s17, 0
    %p65 = por %p63, %p64
    %s67 = sadd.s32 %s66, 1
    %p70 = scmp.eq.s32.totalorder %s11, 1
    %p71 = scmp.ne.s32.totalorder %s66, %s68
    %p72 = scmp.eq.s32.totalorder %s11, 0
    %p73 = por %p71, %p72
    %p74 = scmp.ne.s32.totalorder %s66, %s68
    %p75 = scmp.eq.s32.totalorder %s16, 1
    %p76 = por %p74, %p75
    %p77 = scmp.ne.s32.totalorder %s68, %s69
    %p78 = scmp.eq.s32.totalorder %s16, 0
    %p79 = por %p77, %p78
    %p80 = scmp.ne.s32.totalorder %s68, %s69
    %p81 = scmp.eq.s32.totalorder %s17, 1
    %p82 = por %p80, %p81
    %p84 = scmp.ne.s32.totalorder %s69, %s83
    %p85 = scmp.eq.s32.totalorder %s17, 0
    %p86 = por %p84, %p85
    %s88 = sadd.s32 %s87, 1
    %p91 = scmp.eq.s32.totalorder %s11, 1
    %p92 = scmp.ne.s32.totalorder %s87, %s89
    %p93 = scmp.eq.s32.totalorder %s11, 0
    %p94 = por %p92, %p93
    %p95 = scmp.ne.s32.totalorder %s87, %s89
    %p96 = scmp.eq.s32.totalorder %s16, 1
    %p97 = por %p95, %p96
    %p98 = scmp.ne.s32.totalorder %s89, %s90
    %p99 = scmp.eq.s32.totalorder %s16, 0
    %p100 = por %p98, %p99
    %p101 = scmp.ne.s32.totalorder %s89, %s90
    %p102 = scmp.eq.s32.totalorder %s17, 1
    %p103 = por %p101, %p102
    %p105 = scmp.ne.s32.totalorder %s90, %s104
    %p106 = scmp.eq.s32.totalorder %s17, 0
    %p107 = por %p105, %p106
    %s109 = sadd.s32 %s108, 1
    %p112 = scmp.eq.s32.totalorder %s11, 1
    %p113 = scmp.ne.s32.totalorder %s108, %s110
    %p114 = scmp.eq.s32.totalorder %s11, 0
    %p115 = por %p113, %p114
    %p116 = scmp.ne.s32.totalorder %s108, %s110
    %p117 = scmp.eq.s32.totalorder %s16, 1
    %p118 = por %p116, %p117
    %p119 = scmp.ne.s32.totalorder %s110, %s111
    %p120 = scmp.eq.s32.totalorder %s16, 0
    %p121 = por %p119, %p120
    %p122 = scmp.ne.s32.totalorder %s110, %s111
    %p123 = scmp.eq.s32.totalorder %s17, 1
    %p124 = por %p122, %p123
    %p126 = scmp.ne.s32.totalorder %s111, %s125
    %p127 = scmp.eq.s32.totalorder %s17, 0
    %p128 = por %p126, %p127
    %s129 = ssub.s32 %s11, %s18
    %p130 = scmp.eq.s32.totalorder %s129, 0
    %s132 = sadd.s32 %s131, 1
    %s133 = scalar_select %p130, %s131, %s132
    %p136 = pneg %p130
    %p137 = scmp.eq.s32.totalorder %s11, 1
    %p138 = por %p136, %p137
    %p139 = scmp.ne.s32.totalorder %s131, %s134
    %p140 = scmp.eq.s32.totalorder %s11, 0
    %p141 = por %p139, %p140
    %p142 = scmp.ne.s32.totalorder %s131, %s134
    %p143 = scmp.eq.s32.totalorder %s16, 1
    %p144 = por %p142, %p143
    %p145 = scmp.ne.s32.totalorder %s134, %s135
    %p146 = scmp.eq.s32.totalorder %s16, 0
    %p147 = por %p145, %p146
    %p148 = scmp.ne.s32.totalorder %s134, %s135
    %p149 = scmp.eq.s32.totalorder %s17, 1
    %p150 = por %p148, %p149
    %p152 = scmp.ne.s32.totalorder %s135, %s151
    %p153 = scmp.eq.s32.totalorder %s17, 0
    %p154 = por %p152, %p153
    %p155 = scmp.le.s32.totalorder 1, %s11
    %p156 = scmp.lt.s32.totalorder %s11, 3
    %p157 = pnand %p155, %p156
    %p158 = pneg %p157
    // Predicated region
    $region9: #{down_forward.1} parent=5 // pred_check
      _
    $region10: #{down_forward.1} parent=5 // pred_check_branch
      %160 = sbr.rel (%p157) target = $region12
    $region11: #{down_forward.1} parent=5 // pred_region
      %s161 = ssub.s32 %s11, 1
      // Predicated region
      $region13: #{down_forward.1} parent=11 // pred_check
        %p162 = pneg %p58
      $region14: #{down_forward.1} parent=11 // pred_check_branch
        %164 = sbr.rel (%p162) target = $region16
      $region15: #{down_forward.1} parent=11 // pred_region
        _
      $region16: #{down_forward.1} parent=11 // pred_fallthru
        _
      // Predicated region
      $region17: #{down_forward.1} parent=11 // pred_check
        %p165 = pneg %p79
      $region18: #{down_forward.1} parent=11 // pred_check_branch
        %167 = sbr.rel (%p165) target = $region20
      $region19: #{down_forward.1} parent=11 // pred_region
        _
      $region20: #{down_forward.1} parent=11 // pred_fallthru
        _
      // Predicated region
      $region21: #{down_forward.1} parent=11 // pred_check
        %p168 = pneg %p100
      $region22: #{down_forward.1} parent=11 // pred_check_branch
        %170 = sbr.rel (%p168) target = $region24
      $region23: #{down_forward.1} parent=11 // pred_region
        _
      $region24: #{down_forward.1} parent=11 // pred_fallthru
        _
      // Predicated region
      $region25: #{down_forward.1} parent=11 // pred_check
        %p171 = pneg %p121
      $region26: #{down_forward.1} parent=11 // pred_check_branch
        %173 = sbr.rel (%p171) target = $region28
      $region27: #{down_forward.1} parent=11 // pred_region
        _
      $region28: #{down_forward.1} parent=11 // pred_fallthru
        _
    $region12: #{down_forward.1} parent=5 // pred_fallthru
      _
    %p174 = scmp.lt.s32.totalorder %s11, 2
    // Predicated region
    $region29: #{down_forward.1} parent=5 // pred_check
      %p175 = pneg %p174
    $region30: #{down_forward.1} parent=5 // pred_check_branch
      %177 = sbr.rel (%p175) target = $region32
    $region31: #{down_forward.1} parent=5 // pred_region
      // Predicated region
      $region33: #{down_forward.1} parent=31 // pred_check
        %p178 = pneg %p31
      $region34: #{down_forward.1} parent=31 // pred_check_branch
        %180 = sbr.rel (%p178) target = $region36
      $region35: #{down_forward.1} parent=31 // pred_region
        %p181 = scmp.lt.s32.totalorder %s11, 1
        %s182 = scalar_select %p181, %s11, 1
        %s183 = smul.addr %s182, 32
        %s184 = smul.addr %s183, 4
        %s185 = scalar_lea.vmem %s0, %s184
      $region36: #{down_forward.1} parent=31 // pred_fallthru
        _
    $region32: #{down_forward.1} parent=5 // pred_fallthru
      _
    %p186 = scmp.le.s32.totalorder 1, %s11
    %p187 = scmp.lt.s32.totalorder %s11, 3
    %p188 = pnand %p186, %p187
    %p189 = pneg %p188
    // Predicated region
    $region37: #{down_forward.1} parent=5 // pred_check
      _
    $region38: #{down_forward.1} parent=5 // pred_check_branch
      %191 = sbr.rel (%p188) target = $region40
    $region39: #{down_forward.1} parent=5 // pred_region
      %s192 = ssub.s32 %s11, 1
      %p193 = scmp.lt.s32.totalorder %s16, 1
      %s194 = scalar_select %p193, %s16, 1
      %s195 = smul.addr %s194, 32
      %s196 = smul.addr %s195, 4
      %s197 = scalar_lea.vmem %s0, %s196
      %p198 = pneg %p37
      %p199 = pneg %p34
      %p200 = pneg %p58
      %p201 = pneg %p55
      %p202 = pneg %p79
      %p203 = pneg %p76
      %p204 = pneg %p100
      %p205 = pneg %p97
      %p206 = pneg %p121
      %p207 = pneg %p118
      %p208 = pneg %p147
      %p209 = pneg %p144
      %p210 = scmp.lt.s32.totalorder %s16, 1
      %s211 = scalar_select %p210, %s16, 1
      %s212 = smul.addr %s211, 8
      %s213 = smul.addr %s212, 8
      %s214 = scalar_lea.vmem %s5, %s213
      %p215 = scmp.lt.s32.totalorder %s16, 1
      %s216 = scalar_select %p215, %s16, 1
      %s217 = smul.addr %s216, 32
      %s218 = smul.addr %s217, 4
      %s219 = scalar_lea.vmem %s0, %s218
      %p220 = scmp.lt.s32.totalorder %s16, 1
      %s221 = scalar_select %p220, %s16, 1
      %s222 = smul.addr %s221, 8
      %s223 = smul.addr %s222, 8
      %s224 = scalar_lea.vmem %s5, %s223
      %v227 = vld [vmem:[%s219] sm:$0xf]
      %v228 = vld [vmem:[%s219 + $0x4] sm:$0xf]
      %v229 = vld [vmem:[%s219 + $0x8] sm:$0xf]
      %v230 = vld [vmem:[%s219 + $0xc] sm:$0xf]
      %v231 = vld [vmem:[%s219 + $0x10] sm:$0xf]
      %v232 = vld [vmem:[%s219 + $0x14] sm:$0xf]
      %v233 = vld [vmem:[%s219 + $0x18] sm:$0xf]
      %v234 = vld [vmem:[%s219 + $0x1c] sm:$0xf]
      %v235 = vld [vmem:[%s219 + $0x20] sm:$0xf]
      %v236 = vld [vmem:[%s219 + $0x24] sm:$0xf]
      %v237 = vld [vmem:[%s219 + $0x28] sm:$0xf]
      %v238 = vld [vmem:[%s219 + $0x2c] sm:$0xf]
      %v239 = vld [vmem:[%s219 + $0x30] sm:$0xf]
      %v240 = vld [vmem:[%s219 + $0x34] sm:$0xf]
      %v241 = vld [vmem:[%s219 + $0x38] sm:$0xf]
      %v242 = vld [vmem:[%s219 + $0x3c] sm:$0xf]
      %v243 = vld [vmem:[%s219 + $0x40] sm:$0xf]
      %v244 = vld [vmem:[%s219 + $0x44] sm:$0xf]
      %v245 = vld [vmem:[%s219 + $0x48] sm:$0xf]
      %v246 = vld [vmem:[%s219 + $0x4c] sm:$0xf]
      %v247 = vld [vmem:[%s219 + $0x50] sm:$0xf]
      %v248 = vld [vmem:[%s219 + $0x54] sm:$0xf]
      %v249 = vld [vmem:[%s219 + $0x58] sm:$0xf]
      %v250 = vld [vmem:[%s219 + $0x5c] sm:$0xf]
      %v251 = vld [vmem:[%s219 + $0x60] sm:$0xf]
      %v252 = vld [vmem:[%s219 + $0x64] sm:$0xf]
      %v253 = vld [vmem:[%s219 + $0x68] sm:$0xf]
      %v254 = vld [vmem:[%s219 + $0x6c] sm:$0xf]
      %v255 = vld [vmem:[%s219 + $0x70] sm:$0xf]
      %v256 = vld [vmem:[%s219 + $0x74] sm:$0xf]
      %v257 = vld [vmem:[%s219 + $0x78] sm:$0xf]
      %v258 = vld [vmem:[%s219 + $0x7c] sm:$0xf]
      %v292 = vunpack.c.l.s4 1966171168
      %v293 = vunpack.c.0.s8 %v292
      %v294 = vlaneseq
      %v295 = vshrl.u32 %v294, 7
      %v296 = vsub.s32 %v293, %v295
      %v297 = vrot.slane %v227, %v296
      %v298 = vcombine.high %v297, %v297
      %v300 = vunpack.c.l.s4 1966171168
      %v301 = vunpack.c.0.s8 %v300
      %v302 = vlaneseq
      %v303 = vshrl.u32 %v302, 7
      %v304 = vsub.s32 %v301, %v303
      %v305 = vrot.slane %v297, %v304
      %v307 = vunpack.c.l.s4 1966171168
      %v308 = vunpack.c.0.s8 %v307
      %v309 = vlaneseq
      %v310 = vshrl.u32 %v309, 7
      %v311 = vsub.s32 %v308, %v310
      %v312 = vrot.slane %v298, %v311
      %v313 = vcombine.high %v305, %v305
      %v314 = vcombine.high %v312, %v312
      %v316 = vunpack.c.l.s4 1966171168
      %v317 = vunpack.c.0.s8 %v316
      %v318 = vlaneseq
      %v319 = vshrl.u32 %v318, 7
      %v320 = vsub.s32 %v317, %v319
      %v321 = vrot.slane %v228, %v320
      %v322 = vcombine.high %v321, %v321
      %v324 = vunpack.c.l.s4 1966171168
      %v325 = vunpack.c.0.s8 %v324
      %v326 = vlaneseq
      %v327 = vshrl.u32 %v326, 7
      %v328 = vsub.s32 %v325, %v327
      %v329 = vrot.slane %v321, %v328
      %v331 = vunpack.c.l.s4 1966171168
      %v332 = vunpack.c.0.s8 %v331
      %v333 = vlaneseq
      %v334 = vshrl.u32 %v333, 7
      %v335 = vsub.s32 %v332, %v334
      %v336 = vrot.slane %v322, %v335
      %v337 = vcombine.high %v329, %v329
      %v338 = vcombine.high %v336, %v336
      %v340 = vunpack.c.l.s4 1966171168
      %v341 = vunpack.c.0.s8 %v340
      %v342 = vlaneseq
      %v343 = vshrl.u32 %v342, 7
      %v344 = vsub.s32 %v341, %v343
      %v345 = vrot.slane %v229, %v344
      %v346 = vcombine.high %v345, %v345
      %v348 = vunpack.c.l.s4 1966171168
      %v349 = vunpack.c.0.s8 %v348
      %v350 = vlaneseq
      %v351 = vshrl.u32 %v350, 7
      %v352 = vsub.s32 %v349, %v351
      %v353 = vrot.slane %v345, %v352
      %v355 = vunpack.c.l.s4 1966171168
      %v356 = vunpack.c.0.s8 %v355
      %v357 = vlaneseq
      %v358 = vshrl.u32 %v357, 7
      %v359 = vsub.s32 %v356, %v358
      %v360 = vrot.slane %v346, %v359
      %v361 = vcombine.high %v353, %v353
      %v362 = vcombine.high %v360, %v360
      %v364 = vunpack.c.l.s4 1966171168
      %v365 = vunpack.c.0.s8 %v364
      %v366 = vlaneseq
      %v367 = vshrl.u32 %v366, 7
      %v368 = vsub.s32 %v365, %v367
      %v369 = vrot.slane %v230, %v368
      %v370 = vcombine.high %v369, %v369
      %v372 = vunpack.c.l.s4 1966171168
      %v373 = vunpack.c.0.s8 %v372
      %v374 = vlaneseq
      %v375 = vshrl.u32 %v374, 7
      %v376 = vsub.s32 %v373, %v375
      %v377 = vrot.slane %v369, %v376
      %v379 = vunpack.c.l.s4 1966171168
      %v380 = vunpack.c.0.s8 %v379
      %v381 = vlaneseq
      %v382 = vshrl.u32 %v381, 7
      %v383 = vsub.s32 %v380, %v382
      %v384 = vrot.slane %v370, %v383
      %v385 = vcombine.high %v377, %v377
      %v386 = vcombine.high %v384, %v384
      %v388 = vunpack.c.l.s4 1966171168
      %v389 = vunpack.c.0.s8 %v388
      %v390 = vlaneseq
      %v391 = vshrl.u32 %v390, 7
      %v392 = vsub.s32 %v389, %v391
      %v393 = vrot.slane %v231, %v392
      %v394 = vcombine.high %v393, %v393
      %v396 = vunpack.c.l.s4 1966171168
      %v397 = vunpack.c.0.s8 %v396
      %v398 = vlaneseq
      %v399 = vshrl.u32 %v398, 7
      %v400 = vsub.s32 %v397, %v399
      %v401 = vrot.slane %v393, %v400
      %v403 = vunpack.c.l.s4 1966171168
      %v404 = vunpack.c.0.s8 %v403
      %v405 = vlaneseq
      %v406 = vshrl.u32 %v405, 7
      %v407 = vsub.s32 %v404, %v406
      %v408 = vrot.slane %v394, %v407
      %v409 = vcombine.high %v401, %v401
      %v410 = vcombine.high %v408, %v408
      %v412 = vunpack.c.l.s4 1966171168
      %v413 = vunpack.c.0.s8 %v412
      %v414 = vlaneseq
      %v415 = vshrl.u32 %v414, 7
      %v416 = vsub.s32 %v413, %v415
      %v417 = vrot.slane %v232, %v416
      %v418 = vcombine.high %v417, %v417
      %v420 = vunpack.c.l.s4 1966171168
      %v421 = vunpack.c.0.s8 %v420
      %v422 = vlaneseq
      %v423 = vshrl.u32 %v422, 7
      %v424 = vsub.s32 %v421, %v423
      %v425 = vrot.slane %v417, %v424
      %v427 = vunpack.c.l.s4 1966171168
      %v428 = vunpack.c.0.s8 %v427
      %v429 = vlaneseq
      %v430 = vshrl.u32 %v429, 7
      %v431 = vsub.s32 %v428, %v430
      %v432 = vrot.slane %v418, %v431
      %v433 = vcombine.high %v425, %v425
      %v434 = vcombine.high %v432, %v432
      %v436 = vunpack.c.l.s4 1966171168
      %v437 = vunpack.c.0.s8 %v436
      %v438 = vlaneseq
      %v439 = vshrl.u32 %v438, 7
      %v440 = vsub.s32 %v437, %v439
      %v441 = vrot.slane %v233, %v440
      %v442 = vcombine.high %v441, %v441
      %v444 = vunpack.c.l.s4 1966171168
      %v445 = vunpack.c.0.s8 %v444
      %v446 = vlaneseq
      %v447 = vshrl.u32 %v446, 7
      %v448 = vsub.s32 %v445, %v447
      %v449 = vrot.slane %v441, %v448
      %v451 = vunpack.c.l.s4 1966171168
      %v452 = vunpack.c.0.s8 %v451
      %v453 = vlaneseq
      %v454 = vshrl.u32 %v453, 7
      %v455 = vsub.s32 %v452, %v454
      %v456 = vrot.slane %v442, %v455
      %v457 = vcombine.high %v449, %v449
      %v458 = vcombine.high %v456, %v456
      %v460 = vunpack.c.l.s4 1966171168
      %v461 = vunpack.c.0.s8 %v460
      %v462 = vlaneseq
      %v463 = vshrl.u32 %v462, 7
      %v464 = vsub.s32 %v461, %v463
      %v465 = vrot.slane %v234, %v464
      %v466 = vcombine.high %v465, %v465
      %v468 = vunpack.c.l.s4 1966171168
      %v469 = vunpack.c.0.s8 %v468
      %v470 = vlaneseq
      %v471 = vshrl.u32 %v470, 7
      %v472 = vsub.s32 %v469, %v471
      %v473 = vrot.slane %v465, %v472
      %v475 = vunpack.c.l.s4 1966171168
      %v476 = vunpack.c.0.s8 %v475
      %v477 = vlaneseq
      %v478 = vshrl.u32 %v477, 7
      %v479 = vsub.s32 %v476, %v478
      %v480 = vrot.slane %v466, %v479
      %v481 = vcombine.high %v473, %v473
      %v482 = vcombine.high %v480, %v480
      %v484 = vunpack.c.l.s4 1966171168
      %v485 = vunpack.c.0.s8 %v484
      %v486 = vlaneseq
      %v487 = vshrl.u32 %v486, 7
      %v488 = vsub.s32 %v485, %v487
      %v489 = vrot.slane %v235, %v488
      %v490 = vcombine.high %v489, %v489
      %v492 = vunpack.c.l.s4 1966171168
      %v493 = vunpack.c.0.s8 %v492
      %v494 = vlaneseq
      %v495 = vshrl.u32 %v494, 7
      %v496 = vsub.s32 %v493, %v495
      %v497 = vrot.slane %v489, %v496
      %v499 = vunpack.c.l.s4 1966171168
      %v500 = vunpack.c.0.s8 %v499
      %v501 = vlaneseq
      %v502 = vshrl.u32 %v501, 7
      %v503 = vsub.s32 %v500, %v502
      %v504 = vrot.slane %v490, %v503
      %v505 = vcombine.high %v497, %v497
      %v506 = vcombine.high %v504, %v504
      %v508 = vunpack.c.l.s4 1966171168
      %v509 = vunpack.c.0.s8 %v508
      %v510 = vlaneseq
      %v511 = vshrl.u32 %v510, 7
      %v512 = vsub.s32 %v509, %v511
      %v513 = vrot.slane %v236, %v512
      %v514 = vcombine.high %v513, %v513
      %v516 = vunpack.c.l.s4 1966171168
      %v517 = vunpack.c.0.s8 %v516
      %v518 = vlaneseq
      %v519 = vshrl.u32 %v518, 7
      %v520 = vsub.s32 %v517, %v519
      %v521 = vrot.slane %v513, %v520
      %v523 = vunpack.c.l.s4 1966171168
      %v524 = vunpack.c.0.s8 %v523
      %v525 = vlaneseq
      %v526 = vshrl.u32 %v525, 7
      %v527 = vsub.s32 %v524, %v526
      %v528 = vrot.slane %v514, %v527
      %v529 = vcombine.high %v521, %v521
      %v530 = vcombine.high %v528, %v528
      %v532 = vunpack.c.l.s4 1966171168
      %v533 = vunpack.c.0.s8 %v532
      %v534 = vlaneseq
      %v535 = vshrl.u32 %v534, 7
      %v536 = vsub.s32 %v533, %v535
      %v537 = vrot.slane %v237, %v536
      %v538 = vcombine.high %v537, %v537
      %v540 = vunpack.c.l.s4 1966171168
      %v541 = vunpack.c.0.s8 %v540
      %v542 = vlaneseq
      %v543 = vshrl.u32 %v542, 7
      %v544 = vsub.s32 %v541, %v543
      %v545 = vrot.slane %v537, %v544
      %v547 = vunpack.c.l.s4 1966171168
      %v548 = vunpack.c.0.s8 %v547
      %v549 = vlaneseq
      %v550 = vshrl.u32 %v549, 7
      %v551 = vsub.s32 %v548, %v550
      %v552 = vrot.slane %v538, %v551
      %v553 = vcombine.high %v545, %v545
      %v554 = vcombine.high %v552, %v552
      %v556 = vunpack.c.l.s4 1966171168
      %v557 = vunpack.c.0.s8 %v556
      %v558 = vlaneseq
      %v559 = vshrl.u32 %v558, 7
      %v560 = vsub.s32 %v557, %v559
      %v561 = vrot.slane %v238, %v560
      %v562 = vcombine.high %v561, %v561
      %v564 = vunpack.c.l.s4 1966171168
      %v565 = vunpack.c.0.s8 %v564
      %v566 = vlaneseq
      %v567 = vshrl.u32 %v566, 7
      %v568 = vsub.s32 %v565, %v567
      %v569 = vrot.slane %v561, %v568
      %v571 = vunpack.c.l.s4 1966171168
      %v572 = vunpack.c.0.s8 %v571
      %v573 = vlaneseq
      %v574 = vshrl.u32 %v573, 7
      %v575 = vsub.s32 %v572, %v574
      %v576 = vrot.slane %v562, %v575
      %v577 = vcombine.high %v569, %v569
      %v578 = vcombine.high %v576, %v576
      %v580 = vunpack.c.l.s4 1966171168
      %v581 = vunpack.c.0.s8 %v580
      %v582 = vlaneseq
      %v583 = vshrl.u32 %v582, 7
      %v584 = vsub.s32 %v581, %v583
      %v585 = vrot.slane %v239, %v584
      %v586 = vcombine.high %v585, %v585
      %v588 = vunpack.c.l.s4 1966171168
      %v589 = vunpack.c.0.s8 %v588
      %v590 = vlaneseq
      %v591 = vshrl.u32 %v590, 7
      %v592 = vsub.s32 %v589, %v591
      %v593 = vrot.slane %v585, %v592
      %v595 = vunpack.c.l.s4 1966171168
      %v596 = vunpack.c.0.s8 %v595
      %v597 = vlaneseq
      %v598 = vshrl.u32 %v597, 7
      %v599 = vsub.s32 %v596, %v598
      %v600 = vrot.slane %v586, %v599
      %v601 = vcombine.high %v593, %v593
      %v602 = vcombine.high %v600, %v600
      %v604 = vunpack.c.l.s4 1966171168
      %v605 = vunpack.c.0.s8 %v604
      %v606 = vlaneseq
      %v607 = vshrl.u32 %v606, 7
      %v608 = vsub.s32 %v605, %v607
      %v609 = vrot.slane %v240, %v608
      %v610 = vcombine.high %v609, %v609
      %v612 = vunpack.c.l.s4 1966171168
      %v613 = vunpack.c.0.s8 %v612
      %v614 = vlaneseq
      %v615 = vshrl.u32 %v614, 7
      %v616 = vsub.s32 %v613, %v615
      %v617 = vrot.slane %v609, %v616
      %v619 = vunpack.c.l.s4 1966171168
      %v620 = vunpack.c.0.s8 %v619
      %v621 = vlaneseq
      %v622 = vshrl.u32 %v621, 7
      %v623 = vsub.s32 %v620, %v622
      %v624 = vrot.slane %v610, %v623
      %v625 = vcombine.high %v617, %v617
      %v626 = vcombine.high %v624, %v624
      %v628 = vunpack.c.l.s4 1966171168
      %v629 = vunpack.c.0.s8 %v628
      %v630 = vlaneseq
      %v631 = vshrl.u32 %v630, 7
      %v632 = vsub.s32 %v629, %v631
      %v633 = vrot.slane %v241, %v632
      %v634 = vcombine.high %v633, %v633
      %v636 = vunpack.c.l.s4 1966171168
      %v637 = vunpack.c.0.s8 %v636
      %v638 = vlaneseq
      %v639 = vshrl.u32 %v638, 7
      %v640 = vsub.s32 %v637, %v639
      %v641 = vrot.slane %v633, %v640
      %v643 = vunpack.c.l.s4 1966171168
      %v644 = vunpack.c.0.s8 %v643
      %v645 = vlaneseq
      %v646 = vshrl.u32 %v645, 7
      %v647 = vsub.s32 %v644, %v646
      %v648 = vrot.slane %v634, %v647
      %v649 = vcombine.high %v641, %v641
      %v650 = vcombine.high %v648, %v648
      %v652 = vunpack.c.l.s4 1966171168
      %v653 = vunpack.c.0.s8 %v652
      %v654 = vlaneseq
      %v655 = vshrl.u32 %v654, 7
      %v656 = vsub.s32 %v653, %v655
      %v657 = vrot.slane %v242, %v656
      %v658 = vcombine.high %v657, %v657
      %v660 = vunpack.c.l.s4 1966171168
      %v661 = vunpack.c.0.s8 %v660
      %v662 = vlaneseq
      %v663 = vshrl.u32 %v662, 7
      %v664 = vsub.s32 %v661, %v663
      %v665 = vrot.slane %v657, %v664
      %v667 = vunpack.c.l.s4 1966171168
      %v668 = vunpack.c.0.s8 %v667
      %v669 = vlaneseq
      %v670 = vshrl.u32 %v669, 7
      %v671 = vsub.s32 %v668, %v670
      %v672 = vrot.slane %v658, %v671
      %v673 = vcombine.high %v665, %v665
      %v674 = vcombine.high %v672, %v672
      %v676 = vunpack.c.l.s4 1966171168
      %v677 = vunpack.c.0.s8 %v676
      %v678 = vlaneseq
      %v679 = vshrl.u32 %v678, 7
      %v680 = vsub.s32 %v677, %v679
      %v681 = vrot.slane %v243, %v680
      %v682 = vcombine.high %v681, %v681
      %v684 = vunpack.c.l.s4 1966171168
      %v685 = vunpack.c.0.s8 %v684
      %v686 = vlaneseq
      %v687 = vshrl.u32 %v686, 7
      %v688 = vsub.s32 %v685, %v687
      %v689 = vrot.slane %v681, %v688
      %v691 = vunpack.c.l.s4 1966171168
      %v692 = vunpack.c.0.s8 %v691
      %v693 = vlaneseq
      %v694 = vshrl.u32 %v693, 7
      %v695 = vsub.s32 %v692, %v694
      %v696 = vrot.slane %v682, %v695
      %v697 = vcombine.high %v689, %v689
      %v698 = vcombine.high %v696, %v696
      %v700 = vunpack.c.l.s4 1966171168
      %v701 = vunpack.c.0.s8 %v700
      %v702 = vlaneseq
      %v703 = vshrl.u32 %v702, 7
      %v704 = vsub.s32 %v701, %v703
      %v705 = vrot.slane %v244, %v704
      %v706 = vcombine.high %v705, %v705
      %v708 = vunpack.c.l.s4 1966171168
      %v709 = vunpack.c.0.s8 %v708
      %v710 = vlaneseq
      %v711 = vshrl.u32 %v710, 7
      %v712 = vsub.s32 %v709, %v711
      %v713 = vrot.slane %v705, %v712
      %v715 = vunpack.c.l.s4 1966171168
      %v716 = vunpack.c.0.s8 %v715
      %v717 = vlaneseq
      %v718 = vshrl.u32 %v717, 7
      %v719 = vsub.s32 %v716, %v718
      %v720 = vrot.slane %v706, %v719
      %v721 = vcombine.high %v713, %v713
      %v722 = vcombine.high %v720, %v720
      %v724 = vunpack.c.l.s4 1966171168
      %v725 = vunpack.c.0.s8 %v724
      %v726 = vlaneseq
      %v727 = vshrl.u32 %v726, 7
      %v728 = vsub.s32 %v725, %v727
      %v729 = vrot.slane %v245, %v728
      %v730 = vcombine.high %v729, %v729
      %v732 = vunpack.c.l.s4 1966171168
      %v733 = vunpack.c.0.s8 %v732
      %v734 = vlaneseq
      %v735 = vshrl.u32 %v734, 7
      %v736 = vsub.s32 %v733, %v735
      %v737 = vrot.slane %v729, %v736
      %v739 = vunpack.c.l.s4 1966171168
      %v740 = vunpack.c.0.s8 %v739
      %v741 = vlaneseq
      %v742 = vshrl.u32 %v741, 7
      %v743 = vsub.s32 %v740, %v742
      %v744 = vrot.slane %v730, %v743
      %v745 = vcombine.high %v737, %v737
      %v746 = vcombine.high %v744, %v744
      %v748 = vunpack.c.l.s4 1966171168
      %v749 = vunpack.c.0.s8 %v748
      %v750 = vlaneseq
      %v751 = vshrl.u32 %v750, 7
      %v752 = vsub.s32 %v749, %v751
      %v753 = vrot.slane %v246, %v752
      %v754 = vcombine.high %v753, %v753
      %v756 = vunpack.c.l.s4 1966171168
      %v757 = vunpack.c.0.s8 %v756
      %v758 = vlaneseq
      %v759 = vshrl.u32 %v758, 7
      %v760 = vsub.s32 %v757, %v759
      %v761 = vrot.slane %v753, %v760
      %v763 = vunpack.c.l.s4 1966171168
      %v764 = vunpack.c.0.s8 %v763
      %v765 = vlaneseq
      %v766 = vshrl.u32 %v765, 7
      %v767 = vsub.s32 %v764, %v766
      %v768 = vrot.slane %v754, %v767
      %v769 = vcombine.high %v761, %v761
      %v770 = vcombine.high %v768, %v768
      %v772 = vunpack.c.l.s4 1966171168
      %v773 = vunpack.c.0.s8 %v772
      %v774 = vlaneseq
      %v775 = vshrl.u32 %v774, 7
      %v776 = vsub.s32 %v773, %v775
      %v777 = vrot.slane %v247, %v776
      %v778 = vcombine.high %v777, %v777
      %v780 = vunpack.c.l.s4 1966171168
      %v781 = vunpack.c.0.s8 %v780
      %v782 = vlaneseq
      %v783 = vshrl.u32 %v782, 7
      %v784 = vsub.s32 %v781, %v783
      %v785 = vrot.slane %v777, %v784
      %v787 = vunpack.c.l.s4 1966171168
      %v788 = vunpack.c.0.s8 %v787
      %v789 = vlaneseq
      %v790 = vshrl.u32 %v789, 7
      %v791 = vsub.s32 %v788, %v790
      %v792 = vrot.slane %v778, %v791
      %v793 = vcombine.high %v785, %v785
      %v794 = vcombine.high %v792, %v792
      %v796 = vunpack.c.l.s4 1966171168
      %v797 = vunpack.c.0.s8 %v796
      %v798 = vlaneseq
      %v799 = vshrl.u32 %v798, 7
      %v800 = vsub.s32 %v797, %v799
      %v801 = vrot.slane %v248, %v800
      %v802 = vcombine.high %v801, %v801
      %v804 = vunpack.c.l.s4 1966171168
      %v805 = vunpack.c.0.s8 %v804
      %v806 = vlaneseq
      %v807 = vshrl.u32 %v806, 7
      %v808 = vsub.s32 %v805, %v807
      %v809 = vrot.slane %v801, %v808
      %v811 = vunpack.c.l.s4 1966171168
      %v812 = vunpack.c.0.s8 %v811
      %v813 = vlaneseq
      %v814 = vshrl.u32 %v813, 7
      %v815 = vsub.s32 %v812, %v814
      %v816 = vrot.slane %v802, %v815
      %v817 = vcombine.high %v809, %v809
      %v818 = vcombine.high %v816, %v816
      %v820 = vunpack.c.l.s4 1966171168
      %v821 = vunpack.c.0.s8 %v820
      %v822 = vlaneseq
      %v823 = vshrl.u32 %v822, 7
      %v824 = vsub.s32 %v821, %v823
      %v825 = vrot.slane %v249, %v824
      %v826 = vcombine.high %v825, %v825
      %v828 = vunpack.c.l.s4 1966171168
      %v829 = vunpack.c.0.s8 %v828
      %v830 = vlaneseq
      %v831 = vshrl.u32 %v830, 7
      %v832 = vsub.s32 %v829, %v831
      %v833 = vrot.slane %v825, %v832
      %v835 = vunpack.c.l.s4 1966171168
      %v836 = vunpack.c.0.s8 %v835
      %v837 = vlaneseq
      %v838 = vshrl.u32 %v837, 7
      %v839 = vsub.s32 %v836, %v838
      %v840 = vrot.slane %v826, %v839
      %v841 = vcombine.high %v833, %v833
      %v842 = vcombine.high %v840, %v840
      %v844 = vunpack.c.l.s4 1966171168
      %v845 = vunpack.c.0.s8 %v844
      %v846 = vlaneseq
      %v847 = vshrl.u32 %v846, 7
      %v848 = vsub.s32 %v845, %v847
      %v849 = vrot.slane %v250, %v848
      %v850 = vcombine.high %v849, %v849
      %v852 = vunpack.c.l.s4 1966171168
      %v853 = vunpack.c.0.s8 %v852
      %v854 = vlaneseq
      %v855 = vshrl.u32 %v854, 7
      %v856 = vsub.s32 %v853, %v855
      %v857 = vrot.slane %v849, %v856
      %v859 = vunpack.c.l.s4 1966171168
      %v860 = vunpack.c.0.s8 %v859
      %v861 = vlaneseq
      %v862 = vshrl.u32 %v861, 7
      %v863 = vsub.s32 %v860, %v862
      %v864 = vrot.slane %v850, %v863
      %v865 = vcombine.high %v857, %v857
      %v866 = vcombine.high %v864, %v864
      %v868 = vunpack.c.l.s4 1966171168
      %v869 = vunpack.c.0.s8 %v868
      %v870 = vlaneseq
      %v871 = vshrl.u32 %v870, 7
      %v872 = vsub.s32 %v869, %v871
      %v873 = vrot.slane %v251, %v872
      %v874 = vcombine.high %v873, %v873
      %v876 = vunpack.c.l.s4 1966171168
      %v877 = vunpack.c.0.s8 %v876
      %v878 = vlaneseq
      %v879 = vshrl.u32 %v878, 7
      %v880 = vsub.s32 %v877, %v879
      %v881 = vrot.slane %v873, %v880
      %v883 = vunpack.c.l.s4 1966171168
      %v884 = vunpack.c.0.s8 %v883
      %v885 = vlaneseq
      %v886 = vshrl.u32 %v885, 7
      %v887 = vsub.s32 %v884, %v886
      %v888 = vrot.slane %v874, %v887
      %v889 = vcombine.high %v881, %v881
      %v890 = vcombine.high %v888, %v888
      %v892 = vunpack.c.l.s4 1966171168
      %v893 = vunpack.c.0.s8 %v892
      %v894 = vlaneseq
      %v895 = vshrl.u32 %v894, 7
      %v896 = vsub.s32 %v893, %v895
      %v897 = vrot.slane %v252, %v896
      %v898 = vcombine.high %v897, %v897
      %v900 = vunpack.c.l.s4 1966171168
      %v901 = vunpack.c.0.s8 %v900
      %v902 = vlaneseq
      %v903 = vshrl.u32 %v902, 7
      %v904 = vsub.s32 %v901, %v903
      %v905 = vrot.slane %v897, %v904
      %v907 = vunpack.c.l.s4 1966171168
      %v908 = vunpack.c.0.s8 %v907
      %v909 = vlaneseq
      %v910 = vshrl.u32 %v909, 7
      %v911 = vsub.s32 %v908, %v910
      %v912 = vrot.slane %v898, %v911
      %v913 = vcombine.high %v905, %v905
      %v914 = vcombine.high %v912, %v912
      %v916 = vunpack.c.l.s4 1966171168
      %v917 = vunpack.c.0.s8 %v916
      %v918 = vlaneseq
      %v919 = vshrl.u32 %v918, 7
      %v920 = vsub.s32 %v917, %v919
      %v921 = vrot.slane %v253, %v920
      %v922 = vcombine.high %v921, %v921
      %v924 = vunpack.c.l.s4 1966171168
      %v925 = vunpack.c.0.s8 %v924
      %v926 = vlaneseq
      %v927 = vshrl.u32 %v926, 7
      %v928 = vsub.s32 %v925, %v927
      %v929 = vrot.slane %v921, %v928
      %v931 = vunpack.c.l.s4 1966171168
      %v932 = vunpack.c.0.s8 %v931
      %v933 = vlaneseq
      %v934 = vshrl.u32 %v933, 7
      %v935 = vsub.s32 %v932, %v934
      %v936 = vrot.slane %v922, %v935
      %v937 = vcombine.high %v929, %v929
      %v938 = vcombine.high %v936, %v936
      %v940 = vunpack.c.l.s4 1966171168
      %v941 = vunpack.c.0.s8 %v940
      %v942 = vlaneseq
      %v943 = vshrl.u32 %v942, 7
      %v944 = vsub.s32 %v941, %v943
      %v945 = vrot.slane %v254, %v944
      %v946 = vcombine.high %v945, %v945
      %v948 = vunpack.c.l.s4 1966171168
      %v949 = vunpack.c.0.s8 %v948
      %v950 = vlaneseq
      %v951 = vshrl.u32 %v950, 7
      %v952 = vsub.s32 %v949, %v951
      %v953 = vrot.slane %v945, %v952
      %v955 = vunpack.c.l.s4 1966171168
      %v956 = vunpack.c.0.s8 %v955
      %v957 = vlaneseq
      %v958 = vshrl.u32 %v957, 7
      %v959 = vsub.s32 %v956, %v958
      %v960 = vrot.slane %v946, %v959
      %v961 = vcombine.high %v953, %v953
      %v962 = vcombine.high %v960, %v960
      %v964 = vunpack.c.l.s4 1966171168
      %v965 = vunpack.c.0.s8 %v964
      %v966 = vlaneseq
      %v967 = vshrl.u32 %v966, 7
      %v968 = vsub.s32 %v965, %v967
      %v969 = vrot.slane %v255, %v968
      %v970 = vcombine.high %v969, %v969
      %v972 = vunpack.c.l.s4 1966171168
      %v973 = vunpack.c.0.s8 %v972
      %v974 = vlaneseq
      %v975 = vshrl.u32 %v974, 7
      %v976 = vsub.s32 %v973, %v975
      %v977 = vrot.slane %v969, %v976
      %v979 = vunpack.c.l.s4 1966171168
      %v980 = vunpack.c.0.s8 %v979
      %v981 = vlaneseq
      %v982 = vshrl.u32 %v981, 7
      %v983 = vsub.s32 %v980, %v982
      %v984 = vrot.slane %v970, %v983
      %v985 = vcombine.high %v977, %v977
      %v986 = vcombine.high %v984, %v984
      %v988 = vunpack.c.l.s4 1966171168
      %v989 = vunpack.c.0.s8 %v988
      %v990 = vlaneseq
      %v991 = vshrl.u32 %v990, 7
      %v992 = vsub.s32 %v989, %v991
      %v993 = vrot.slane %v256, %v992
      %v994 = vcombine.high %v993, %v993
      %v996 = vunpack.c.l.s4 1966171168
      %v997 = vunpack.c.0.s8 %v996
      %v998 = vlaneseq
      %v999 = vshrl.u32 %v998, 7
      %v1000 = vsub.s32 %v997, %v999
      %v1001 = vrot.slane %v993, %v1000
      %v1003 = vunpack.c.l.s4 1966171168
      %v1004 = vunpack.c.0.s8 %v1003
      %v1005 = vlaneseq
      %v1006 = vshrl.u32 %v1005, 7
      %v1007 = vsub.s32 %v1004, %v1006
      %v1008 = vrot.slane %v994, %v1007
      %v1009 = vcombine.high %v1001, %v1001
      %v1010 = vcombine.high %v1008, %v1008
      %v1012 = vunpack.c.l.s4 1966171168
      %v1013 = vunpack.c.0.s8 %v1012
      %v1014 = vlaneseq
      %v1015 = vshrl.u32 %v1014, 7
      %v1016 = vsub.s32 %v1013, %v1015
      %v1017 = vrot.slane %v257, %v1016
      %v1018 = vcombine.high %v1017, %v1017
      %v1020 = vunpack.c.l.s4 1966171168
      %v1021 = vunpack.c.0.s8 %v1020
      %v1022 = vlaneseq
      %v1023 = vshrl.u32 %v1022, 7
      %v1024 = vsub.s32 %v1021, %v1023
      %v1025 = vrot.slane %v1017, %v1024
      %v1027 = vunpack.c.l.s4 1966171168
      %v1028 = vunpack.c.0.s8 %v1027
      %v1029 = vlaneseq
      %v1030 = vshrl.u32 %v1029, 7
      %v1031 = vsub.s32 %v1028, %v1030
      %v1032 = vrot.slane %v1018, %v1031
      %v1033 = vcombine.high %v1025, %v1025
      %v1034 = vcombine.high %v1032, %v1032
      %v1036 = vunpack.c.l.s4 1966171168
      %v1037 = vunpack.c.0.s8 %v1036
      %v1038 = vlaneseq
      %v1039 = vshrl.u32 %v1038, 7
      %v1040 = vsub.s32 %v1037, %v1039
      %v1041 = vrot.slane %v258, %v1040
      %v1042 = vcombine.high %v1041, %v1041
      %v1044 = vunpack.c.l.s4 1966171168
      %v1045 = vunpack.c.0.s8 %v1044
      %v1046 = vlaneseq
      %v1047 = vshrl.u32 %v1046, 7
      %v1048 = vsub.s32 %v1045, %v1047
      %v1049 = vrot.slane %v1041, %v1048
      %v1051 = vunpack.c.l.s4 1966171168
      %v1052 = vunpack.c.0.s8 %v1051
      %v1053 = vlaneseq
      %v1054 = vshrl.u32 %v1053, 7
      %v1055 = vsub.s32 %v1052, %v1054
      %v1056 = vrot.slane %v1042, %v1055
      %v1057 = vcombine.high %v1049, %v1049
      %v1058 = vcombine.high %v1056, %v1056
      %vm1059 = vcmask 24576
      %v1062 = vsel %vm1059, %v305, 4286644096
      %v1064 = vunpack.i.l.bf16 %v1062
      %v1065 = vunpack.i.h.bf16 %v1062
      %v1066 = vmax.f32 %v1064, %v1065
      %v1067 = vrot.slane %v1066, 4
      %v1068 = vmax.f32 %v1066, %v1067
      %v1069 = vrot.slane %v1068, 2
      %v1070 = vmax.f32 %v1068, %v1069
      %v1071 = vrot.slane %v1070, 1
      %v1072 = vmax.f32 %v1070, %v1071
      %v1073 = vpack.i.bf16 %v1072, %v1072
      %v1075 = vsel %vm1059, %v312, 4286644096
      %v1077 = vunpack.i.l.bf16 %v1075
      %v1078 = vunpack.i.h.bf16 %v1075
      %v1079 = vmax.f32 %v1077, %v1078
      %v1080 = vrot.slane %v1079, 4
      %v1081 = vmax.f32 %v1079, %v1080
      %v1082 = vrot.slane %v1081, 2
      %v1083 = vmax.f32 %v1081, %v1082
      %v1084 = vrot.slane %v1083, 1
      %v1085 = vmax.f32 %v1083, %v1084
      %v1086 = vpack.i.bf16 %v1085, %v1085
      %v1088 = vsel %vm1059, %v313, 4286644096
      %v1090 = vunpack.i.l.bf16 %v1088
      %v1091 = vunpack.i.h.bf16 %v1088
      %v1092 = vmax.f32 %v1090, %v1091
      %v1093 = vrot.slane %v1092, 4
      %v1094 = vmax.f32 %v1092, %v1093
      %v1095 = vrot.slane %v1094, 2
      %v1096 = vmax.f32 %v1094, %v1095
      %v1097 = vrot.slane %v1096, 1
      %v1098 = vmax.f32 %v1096, %v1097
      %v1099 = vpack.i.bf16 %v1098, %v1098
      %v1101 = vsel %vm1059, %v314, 4286644096
      %v1103 = vunpack.i.l.bf16 %v1101
      %v1104 = vunpack.i.h.bf16 %v1101
      %v1105 = vmax.f32 %v1103, %v1104
      %v1106 = vrot.slane %v1105, 4
      %v1107 = vmax.f32 %v1105, %v1106
      %v1108 = vrot.slane %v1107, 2
      %v1109 = vmax.f32 %v1107, %v1108
      %v1110 = vrot.slane %v1109, 1
      %v1111 = vmax.f32 %v1109, %v1110
      %v1112 = vpack.i.bf16 %v1111, %v1111
      %v1114 = vsel %vm1059, %v329, 4286644096
      %v1116 = vunpack.i.l.bf16 %v1114
      %v1117 = vunpack.i.h.bf16 %v1114
      %v1118 = vmax.f32 %v1116, %v1117
      %v1119 = vrot.slane %v1118, 4
      %v1120 = vmax.f32 %v1118, %v1119
      %v1121 = vrot.slane %v1120, 2
      %v1122 = vmax.f32 %v1120, %v1121
      %v1123 = vrot.slane %v1122, 1
      %v1124 = vmax.f32 %v1122, %v1123
      %v1125 = vpack.i.bf16 %v1124, %v1124
      %v1127 = vsel %vm1059, %v336, 4286644096
      %v1129 = vunpack.i.l.bf16 %v1127
      %v1130 = vunpack.i.h.bf16 %v1127
      %v1131 = vmax.f32 %v1129, %v1130
      %v1132 = vrot.slane %v1131, 4
      %v1133 = vmax.f32 %v1131, %v1132
      %v1134 = vrot.slane %v1133, 2
      %v1135 = vmax.f32 %v1133, %v1134
      %v1136 = vrot.slane %v1135, 1
      %v1137 = vmax.f32 %v1135, %v1136
      %v1138 = vpack.i.bf16 %v1137, %v1137
      %v1140 = vsel %vm1059, %v337, 4286644096
      %v1142 = vunpack.i.l.bf16 %v1140
      %v1143 = vunpack.i.h.bf16 %v1140
      %v1144 = vmax.f32 %v1142, %v1143
      %v1145 = vrot.slane %v1144, 4
      %v1146 = vmax.f32 %v1144, %v1145
      %v1147 = vrot.slane %v1146, 2
      %v1148 = vmax.f32 %v1146, %v1147
      %v1149 = vrot.slane %v1148, 1
      %v1150 = vmax.f32 %v1148, %v1149
      %v1151 = vpack.i.bf16 %v1150, %v1150
      %v1153 = vsel %vm1059, %v338, 4286644096
      %v1155 = vunpack.i.l.bf16 %v1153
      %v1156 = vunpack.i.h.bf16 %v1153
      %v1157 = vmax.f32 %v1155, %v1156
      %v1158 = vrot.slane %v1157, 4
      %v1159 = vmax.f32 %v1157, %v1158
      %v1160 = vrot.slane %v1159, 2
      %v1161 = vmax.f32 %v1159, %v1160
      %v1162 = vrot.slane %v1161, 1
      %v1163 = vmax.f32 %v1161, %v1162
      %v1164 = vpack.i.bf16 %v1163, %v1163
      %v1166 = vsel %vm1059, %v353, 4286644096
      %v1168 = vunpack.i.l.bf16 %v1166
      %v1169 = vunpack.i.h.bf16 %v1166
      %v1170 = vmax.f32 %v1168, %v1169
      %v1171 = vrot.slane %v1170, 4
      %v1172 = vmax.f32 %v1170, %v1171
      %v1173 = vrot.slane %v1172, 2
      %v1174 = vmax.f32 %v1172, %v1173
      %v1175 = vrot.slane %v1174, 1
      %v1176 = vmax.f32 %v1174, %v1175
      %v1177 = vpack.i.bf16 %v1176, %v1176
      %v1179 = vsel %vm1059, %v360, 4286644096
      %v1181 = vunpack.i.l.bf16 %v1179
      %v1182 = vunpack.i.h.bf16 %v1179
      %v1183 = vmax.f32 %v1181, %v1182
      %v1184 = vrot.slane %v1183, 4
      %v1185 = vmax.f32 %v1183, %v1184
      %v1186 = vrot.slane %v1185, 2
      %v1187 = vmax.f32 %v1185, %v1186
      %v1188 = vrot.slane %v1187, 1
      %v1189 = vmax.f32 %v1187, %v1188
      %v1190 = vpack.i.bf16 %v1189, %v1189
      %v1192 = vsel %vm1059, %v361, 4286644096
      %v1194 = vunpack.i.l.bf16 %v1192
      %v1195 = vunpack.i.h.bf16 %v1192
      %v1196 = vmax.f32 %v1194, %v1195
      %v1197 = vrot.slane %v1196, 4
      %v1198 = vmax.f32 %v1196, %v1197
      %v1199 = vrot.slane %v1198, 2
      %v1200 = vmax.f32 %v1198, %v1199
      %v1201 = vrot.slane %v1200, 1
      %v1202 = vmax.f32 %v1200, %v1201
      %v1203 = vpack.i.bf16 %v1202, %v1202
      %v1205 = vsel %vm1059, %v362, 4286644096
      %v1207 = vunpack.i.l.bf16 %v1205
      %v1208 = vunpack.i.h.bf16 %v1205
      %v1209 = vmax.f32 %v1207, %v1208
      %v1210 = vrot.slane %v1209, 4
      %v1211 = vmax.f32 %v1209, %v1210
      %v1212 = vrot.slane %v1211, 2
      %v1213 = vmax.f32 %v1211, %v1212
      %v1214 = vrot.slane %v1213, 1
      %v1215 = vmax.f32 %v1213, %v1214
      %v1216 = vpack.i.bf16 %v1215, %v1215
      %v1218 = vsel %vm1059, %v377, 4286644096
      %v1220 = vunpack.i.l.bf16 %v1218
      %v1221 = vunpack.i.h.bf16 %v1218
      %v1222 = vmax.f32 %v1220, %v1221
      %v1223 = vrot.slane %v1222, 4
      %v1224 = vmax.f32 %v1222, %v1223
      %v1225 = vrot.slane %v1224, 2
      %v1226 = vmax.f32 %v1224, %v1225
      %v1227 = vrot.slane %v1226, 1
      %v1228 = vmax.f32 %v1226, %v1227
      %v1229 = vpack.i.bf16 %v1228, %v1228
      %v1231 = vsel %vm1059, %v384, 4286644096
      %v1233 = vunpack.i.l.bf16 %v1231
      %v1234 = vunpack.i.h.bf16 %v1231
      %v1235 = vmax.f32 %v1233, %v1234
      %v1236 = vrot.slane %v1235, 4
      %v1237 = vmax.f32 %v1235, %v1236
      %v1238 = vrot.slane %v1237, 2
      %v1239 = vmax.f32 %v1237, %v1238
      %v1240 = vrot.slane %v1239, 1
      %v1241 = vmax.f32 %v1239, %v1240
      %v1242 = vpack.i.bf16 %v1241, %v1241
      %v1244 = vsel %vm1059, %v385, 4286644096
      %v1246 = vunpack.i.l.bf16 %v1244
      %v1247 = vunpack.i.h.bf16 %v1244
      %v1248 = vmax.f32 %v1246, %v1247
      %v1249 = vrot.slane %v1248, 4
      %v1250 = vmax.f32 %v1248, %v1249
      %v1251 = vrot.slane %v1250, 2
      %v1252 = vmax.f32 %v1250, %v1251
      %v1253 = vrot.slane %v1252, 1
      %v1254 = vmax.f32 %v1252, %v1253
      %v1255 = vpack.i.bf16 %v1254, %v1254
      %v1257 = vsel %vm1059, %v386, 4286644096
      %v1259 = vunpack.i.l.bf16 %v1257
      %v1260 = vunpack.i.h.bf16 %v1257
      %v1261 = vmax.f32 %v1259, %v1260
      %v1262 = vrot.slane %v1261, 4
      %v1263 = vmax.f32 %v1261, %v1262
      %v1264 = vrot.slane %v1263, 2
      %v1265 = vmax.f32 %v1263, %v1264
      %v1266 = vrot.slane %v1265, 1
      %v1267 = vmax.f32 %v1265, %v1266
      %v1268 = vpack.i.bf16 %v1267, %v1267
      %v1270 = vsel %vm1059, %v401, 4286644096
      %v1272 = vunpack.i.l.bf16 %v1270
      %v1273 = vunpack.i.h.bf16 %v1270
      %v1274 = vmax.f32 %v1272, %v1273
      %v1275 = vrot.slane %v1274, 4
      %v1276 = vmax.f32 %v1274, %v1275
      %v1277 = vrot.slane %v1276, 2
      %v1278 = vmax.f32 %v1276, %v1277
      %v1279 = vrot.slane %v1278, 1
      %v1280 = vmax.f32 %v1278, %v1279
      %v1281 = vpack.i.bf16 %v1280, %v1280
      %v1283 = vsel %vm1059, %v408, 4286644096
      %v1285 = vunpack.i.l.bf16 %v1283
      %v1286 = vunpack.i.h.bf16 %v1283
      %v1287 = vmax.f32 %v1285, %v1286
      %v1288 = vrot.slane %v1287, 4
      %v1289 = vmax.f32 %v1287, %v1288
      %v1290 = vrot.slane %v1289, 2
      %v1291 = vmax.f32 %v1289, %v1290
      %v1292 = vrot.slane %v1291, 1
      %v1293 = vmax.f32 %v1291, %v1292
      %v1294 = vpack.i.bf16 %v1293, %v1293
      %v1296 = vsel %vm1059, %v409, 4286644096
      %v1298 = vunpack.i.l.bf16 %v1296
      %v1299 = vunpack.i.h.bf16 %v1296
      %v1300 = vmax.f32 %v1298, %v1299
      %v1301 = vrot.slane %v1300, 4
      %v1302 = vmax.f32 %v1300, %v1301
      %v1303 = vrot.slane %v1302, 2
      %v1304 = vmax.f32 %v1302, %v1303
      %v1305 = vrot.slane %v1304, 1
      %v1306 = vmax.f32 %v1304, %v1305
      %v1307 = vpack.i.bf16 %v1306, %v1306
      %v1309 = vsel %vm1059, %v410, 4286644096
      %v1311 = vunpack.i.l.bf16 %v1309
      %v1312 = vunpack.i.h.bf16 %v1309
      %v1313 = vmax.f32 %v1311, %v1312
      %v1314 = vrot.slane %v1313, 4
      %v1315 = vmax.f32 %v1313, %v1314
      %v1316 = vrot.slane %v1315, 2
      %v1317 = vmax.f32 %v1315, %v1316
      %v1318 = vrot.slane %v1317, 1
      %v1319 = vmax.f32 %v1317, %v1318
      %v1320 = vpack.i.bf16 %v1319, %v1319
      %v1322 = vsel %vm1059, %v425, 4286644096
      %v1324 = vunpack.i.l.bf16 %v1322
      %v1325 = vunpack.i.h.bf16 %v1322
      %v1326 = vmax.f32 %v1324, %v1325
      %v1327 = vrot.slane %v1326, 4
      %v1328 = vmax.f32 %v1326, %v1327
      %v1329 = vrot.slane %v1328, 2
      %v1330 = vmax.f32 %v1328, %v1329
      %v1331 = vrot.slane %v1330, 1
      %v1332 = vmax.f32 %v1330, %v1331
      %v1333 = vpack.i.bf16 %v1332, %v1332
      %v1335 = vsel %vm1059, %v432, 4286644096
      %v1337 = vunpack.i.l.bf16 %v1335
      %v1338 = vunpack.i.h.bf16 %v1335
      %v1339 = vmax.f32 %v1337, %v1338
      %v1340 = vrot.slane %v1339, 4
      %v1341 = vmax.f32 %v1339, %v1340
      %v1342 = vrot.slane %v1341, 2
      %v1343 = vmax.f32 %v1341, %v1342
      %v1344 = vrot.slane %v1343, 1
      %v1345 = vmax.f32 %v1343, %v1344
      %v1346 = vpack.i.bf16 %v1345, %v1345
      %v1348 = vsel %vm1059, %v433, 4286644096
      %v1350 = vunpack.i.l.bf16 %v1348
      %v1351 = vunpack.i.h.bf16 %v1348
      %v1352 = vmax.f32 %v1350, %v1351
      %v1353 = vrot.slane %v1352, 4
      %v1354 = vmax.f32 %v1352, %v1353
      %v1355 = vrot.slane %v1354, 2
      %v1356 = vmax.f32 %v1354, %v1355
      %v1357 = vrot.slane %v1356, 1
      %v1358 = vmax.f32 %v1356, %v1357
      %v1359 = vpack.i.bf16 %v1358, %v1358
      %v1361 = vsel %vm1059, %v434, 4286644096
      %v1363 = vunpack.i.l.bf16 %v1361
      %v1364 = vunpack.i.h.bf16 %v1361
      %v1365 = vmax.f32 %v1363, %v1364
      %v1366 = vrot.slane %v1365, 4
      %v1367 = vmax.f32 %v1365, %v1366
      %v1368 = vrot.slane %v1367, 2
      %v1369 = vmax.f32 %v1367, %v1368
      %v1370 = vrot.slane %v1369, 1
      %v1371 = vmax.f32 %v1369, %v1370
      %v1372 = vpack.i.bf16 %v1371, %v1371
      %v1374 = vsel %vm1059, %v449, 4286644096
      %v1376 = vunpack.i.l.bf16 %v1374
      %v1377 = vunpack.i.h.bf16 %v1374
      %v1378 = vmax.f32 %v1376, %v1377
      %v1379 = vrot.slane %v1378, 4
      %v1380 = vmax.f32 %v1378, %v1379
      %v1381 = vrot.slane %v1380, 2
      %v1382 = vmax.f32 %v1380, %v1381
      %v1383 = vrot.slane %v1382, 1
      %v1384 = vmax.f32 %v1382, %v1383
      %v1385 = vpack.i.bf16 %v1384, %v1384
      %v1387 = vsel %vm1059, %v456, 4286644096
      %v1389 = vunpack.i.l.bf16 %v1387
      %v1390 = vunpack.i.h.bf16 %v1387
      %v1391 = vmax.f32 %v1389, %v1390
      %v1392 = vrot.slane %v1391, 4
      %v1393 = vmax.f32 %v1391, %v1392
      %v1394 = vrot.slane %v1393, 2
      %v1395 = vmax.f32 %v1393, %v1394
      %v1396 = vrot.slane %v1395, 1
      %v1397 = vmax.f32 %v1395, %v1396
      %v1398 = vpack.i.bf16 %v1397, %v1397
      %v1400 = vsel %vm1059, %v457, 4286644096
      %v1402 = vunpack.i.l.bf16 %v1400
      %v1403 = vunpack.i.h.bf16 %v1400
      %v1404 = vmax.f32 %v1402, %v1403
      %v1405 = vrot.slane %v1404, 4
      %v1406 = vmax.f32 %v1404, %v1405
      %v1407 = vrot.slane %v1406, 2
      %v1408 = vmax.f32 %v1406, %v1407
      %v1409 = vrot.slane %v1408, 1
      %v1410 = vmax.f32 %v1408, %v1409
      %v1411 = vpack.i.bf16 %v1410, %v1410
      %v1413 = vsel %vm1059, %v458, 4286644096
      %v1415 = vunpack.i.l.bf16 %v1413
      %v1416 = vunpack.i.h.bf16 %v1413
      %v1417 = vmax.f32 %v1415, %v1416
      %v1418 = vrot.slane %v1417, 4
      %v1419 = vmax.f32 %v1417, %v1418
      %v1420 = vrot.slane %v1419, 2
      %v1421 = vmax.f32 %v1419, %v1420
      %v1422 = vrot.slane %v1421, 1
      %v1423 = vmax.f32 %v1421, %v1422
      %v1424 = vpack.i.bf16 %v1423, %v1423
      %v1426 = vsel %vm1059, %v473, 4286644096
      %v1428 = vunpack.i.l.bf16 %v1426
      %v1429 = vunpack.i.h.bf16 %v1426
      %v1430 = vmax.f32 %v1428, %v1429
      %v1431 = vrot.slane %v1430, 4
      %v1432 = vmax.f32 %v1430, %v1431
      %v1433 = vrot.slane %v1432, 2
      %v1434 = vmax.f32 %v1432, %v1433
      %v1435 = vrot.slane %v1434, 1
      %v1436 = vmax.f32 %v1434, %v1435
      %v1437 = vpack.i.bf16 %v1436, %v1436
      %v1439 = vsel %vm1059, %v480, 4286644096
      %v1441 = vunpack.i.l.bf16 %v1439
      %v1442 = vunpack.i.h.bf16 %v1439
      %v1443 = vmax.f32 %v1441, %v1442
      %v1444 = vrot.slane %v1443, 4
      %v1445 = vmax.f32 %v1443, %v1444
      %v1446 = vrot.slane %v1445, 2
      %v1447 = vmax.f32 %v1445, %v1446
      %v1448 = vrot.slane %v1447, 1
      %v1449 = vmax.f32 %v1447, %v1448
      %v1450 = vpack.i.bf16 %v1449, %v1449
      %v1452 = vsel %vm1059, %v481, 4286644096
      %v1454 = vunpack.i.l.bf16 %v1452
      %v1455 = vunpack.i.h.bf16 %v1452
      %v1456 = vmax.f32 %v1454, %v1455
      %v1457 = vrot.slane %v1456, 4
      %v1458 = vmax.f32 %v1456, %v1457
      %v1459 = vrot.slane %v1458, 2
      %v1460 = vmax.f32 %v1458, %v1459
      %v1461 = vrot.slane %v1460, 1
      %v1462 = vmax.f32 %v1460, %v1461
      %v1463 = vpack.i.bf16 %v1462, %v1462
      %v1465 = vsel %vm1059, %v482, 4286644096
      %v1467 = vunpack.i.l.bf16 %v1465
      %v1468 = vunpack.i.h.bf16 %v1465
      %v1469 = vmax.f32 %v1467, %v1468
      %v1470 = vrot.slane %v1469, 4
      %v1471 = vmax.f32 %v1469, %v1470
      %v1472 = vrot.slane %v1471, 2
      %v1473 = vmax.f32 %v1471, %v1472
      %v1474 = vrot.slane %v1473, 1
      %v1475 = vmax.f32 %v1473, %v1474
      %v1476 = vpack.i.bf16 %v1475, %v1475
      %v1478 = vsel %vm1059, %v497, 4286644096
      %v1480 = vunpack.i.l.bf16 %v1478
      %v1481 = vunpack.i.h.bf16 %v1478
      %v1482 = vmax.f32 %v1480, %v1481
      %v1483 = vrot.slane %v1482, 4
      %v1484 = vmax.f32 %v1482, %v1483
      %v1485 = vrot.slane %v1484, 2
      %v1486 = vmax.f32 %v1484, %v1485
      %v1487 = vrot.slane %v1486, 1
      %v1488 = vmax.f32 %v1486, %v1487
      %v1489 = vpack.i.bf16 %v1488, %v1488
      %v1491 = vsel %vm1059, %v504, 4286644096
      %v1493 = vunpack.i.l.bf16 %v1491
      %v1494 = vunpack.i.h.bf16 %v1491
      %v1495 = vmax.f32 %v1493, %v1494
      %v1496 = vrot.slane %v1495, 4
      %v1497 = vmax.f32 %v1495, %v1496
      %v1498 = vrot.slane %v1497, 2
      %v1499 = vmax.f32 %v1497, %v1498
      %v1500 = vrot.slane %v1499, 1
      %v1501 = vmax.f32 %v1499, %v1500
      %v1502 = vpack.i.bf16 %v1501, %v1501
      %v1504 = vsel %vm1059, %v505, 4286644096
      %v1506 = vunpack.i.l.bf16 %v1504
      %v1507 = vunpack.i.h.bf16 %v1504
      %v1508 = vmax.f32 %v1506, %v1507
      %v1509 = vrot.slane %v1508, 4
      %v1510 = vmax.f32 %v1508, %v1509
      %v1511 = vrot.slane %v1510, 2
      %v1512 = vmax.f32 %v1510, %v1511
      %v1513 = vrot.slane %v1512, 1
      %v1514 = vmax.f32 %v1512, %v1513
      %v1515 = vpack.i.bf16 %v1514, %v1514
      %v1517 = vsel %vm1059, %v506, 4286644096
      %v1519 = vunpack.i.l.bf16 %v1517
      %v1520 = vunpack.i.h.bf16 %v1517
      %v1521 = vmax.f32 %v1519, %v1520
      %v1522 = vrot.slane %v1521, 4
      %v1523 = vmax.f32 %v1521, %v1522
      %v1524 = vrot.slane %v1523, 2
      %v1525 = vmax.f32 %v1523, %v1524
      %v1526 = vrot.slane %v1525, 1
      %v1527 = vmax.f32 %v1525, %v1526
      %v1528 = vpack.i.bf16 %v1527, %v1527
      %v1530 = vsel %vm1059, %v521, 4286644096
      %v1532 = vunpack.i.l.bf16 %v1530
      %v1533 = vunpack.i.h.bf16 %v1530
      %v1534 = vmax.f32 %v1532, %v1533
      %v1535 = vrot.slane %v1534, 4
      %v1536 = vmax.f32 %v1534, %v1535
      %v1537 = vrot.slane %v1536, 2
      %v1538 = vmax.f32 %v1536, %v1537
      %v1539 = vrot.slane %v1538, 1
      %v1540 = vmax.f32 %v1538, %v1539
      %v1541 = vpack.i.bf16 %v1540, %v1540
      %v1543 = vsel %vm1059, %v528, 4286644096
      %v1545 = vunpack.i.l.bf16 %v1543
      %v1546 = vunpack.i.h.bf16 %v1543
      %v1547 = vmax.f32 %v1545, %v1546
      %v1548 = vrot.slane %v1547, 4
      %v1549 = vmax.f32 %v1547, %v1548
      %v1550 = vrot.slane %v1549, 2
      %v1551 = vmax.f32 %v1549, %v1550
      %v1552 = vrot.slane %v1551, 1
      %v1553 = vmax.f32 %v1551, %v1552
      %v1554 = vpack.i.bf16 %v1553, %v1553
      %v1556 = vsel %vm1059, %v529, 4286644096
      %v1558 = vunpack.i.l.bf16 %v1556
      %v1559 = vunpack.i.h.bf16 %v1556
      %v1560 = vmax.f32 %v1558, %v1559
      %v1561 = vrot.slane %v1560, 4
      %v1562 = vmax.f32 %v1560, %v1561
      %v1563 = vrot.slane %v1562, 2
      %v1564 = vmax.f32 %v1562, %v1563
      %v1565 = vrot.slane %v1564, 1
      %v1566 = vmax.f32 %v1564, %v1565
      %v1567 = vpack.i.bf16 %v1566, %v1566
      %v1569 = vsel %vm1059, %v530, 4286644096
      %v1571 = vunpack.i.l.bf16 %v1569
      %v1572 = vunpack.i.h.bf16 %v1569
      %v1573 = vmax.f32 %v1571, %v1572
      %v1574 = vrot.slane %v1573, 4
      %v1575 = vmax.f32 %v1573, %v1574
      %v1576 = vrot.slane %v1575, 2
      %v1577 = vmax.f32 %v1575, %v1576
      %v1578 = vrot.slane %v1577, 1
      %v1579 = vmax.f32 %v1577, %v1578
      %v1580 = vpack.i.bf16 %v1579, %v1579
      %v1582 = vsel %vm1059, %v545, 4286644096
      %v1584 = vunpack.i.l.bf16 %v1582
      %v1585 = vunpack.i.h.bf16 %v1582
      %v1586 = vmax.f32 %v1584, %v1585
      %v1587 = vrot.slane %v1586, 4
      %v1588 = vmax.f32 %v1586, %v1587
      %v1589 = vrot.slane %v1588, 2
      %v1590 = vmax.f32 %v1588, %v1589
      %v1591 = vrot.slane %v1590, 1
      %v1592 = vmax.f32 %v1590, %v1591
      %v1593 = vpack.i.bf16 %v1592, %v1592
      %v1595 = vsel %vm1059, %v552, 4286644096
      %v1597 = vunpack.i.l.bf16 %v1595
      %v1598 = vunpack.i.h.bf16 %v1595
      %v1599 = vmax.f32 %v1597, %v1598
      %v1600 = vrot.slane %v1599, 4
      %v1601 = vmax.f32 %v1599, %v1600
      %v1602 = vrot.slane %v1601, 2
      %v1603 = vmax.f32 %v1601, %v1602
      %v1604 = vrot.slane %v1603, 1
      %v1605 = vmax.f32 %v1603, %v1604
      %v1606 = vpack.i.bf16 %v1605, %v1605
      %v1608 = vsel %vm1059, %v553, 4286644096
      %v1610 = vunpack.i.l.bf16 %v1608
      %v1611 = vunpack.i.h.bf16 %v1608
      %v1612 = vmax.f32 %v1610, %v1611
      %v1613 = vrot.slane %v1612, 4
      %v1614 = vmax.f32 %v1612, %v1613
      %v1615 = vrot.slane %v1614, 2
      %v1616 = vmax.f32 %v1614, %v1615
      %v1617 = vrot.slane %v1616, 1
      %v1618 = vmax.f32 %v1616, %v1617
      %v1619 = vpack.i.bf16 %v1618, %v1618
      %v1621 = vsel %vm1059, %v554, 4286644096
      %v1623 = vunpack.i.l.bf16 %v1621
      %v1624 = vunpack.i.h.bf16 %v1621
      %v1625 = vmax.f32 %v1623, %v1624
      %v1626 = vrot.slane %v1625, 4
      %v1627 = vmax.f32 %v1625, %v1626
      %v1628 = vrot.slane %v1627, 2
      %v1629 = vmax.f32 %v1627, %v1628
      %v1630 = vrot.slane %v1629, 1
      %v1631 = vmax.f32 %v1629, %v1630
      %v1632 = vpack.i.bf16 %v1631, %v1631
      %v1634 = vsel %vm1059, %v569, 4286644096
      %v1636 = vunpack.i.l.bf16 %v1634
      %v1637 = vunpack.i.h.bf16 %v1634
      %v1638 = vmax.f32 %v1636, %v1637
      %v1639 = vrot.slane %v1638, 4
      %v1640 = vmax.f32 %v1638, %v1639
      %v1641 = vrot.slane %v1640, 2
      %v1642 = vmax.f32 %v1640, %v1641
      %v1643 = vrot.slane %v1642, 1
      %v1644 = vmax.f32 %v1642, %v1643
      %v1645 = vpack.i.bf16 %v1644, %v1644
      %v1647 = vsel %vm1059, %v576, 4286644096
      %v1649 = vunpack.i.l.bf16 %v1647
      %v1650 = vunpack.i.h.bf16 %v1647
      %v1651 = vmax.f32 %v1649, %v1650
      %v1652 = vrot.slane %v1651, 4
      %v1653 = vmax.f32 %v1651, %v1652
      %v1654 = vrot.slane %v1653, 2
      %v1655 = vmax.f32 %v1653, %v1654
      %v1656 = vrot.slane %v1655, 1
      %v1657 = vmax.f32 %v1655, %v1656
      %v1658 = vpack.i.bf16 %v1657, %v1657
      %v1660 = vsel %vm1059, %v577, 4286644096
      %v1662 = vunpack.i.l.bf16 %v1660
      %v1663 = vunpack.i.h.bf16 %v1660
      %v1664 = vmax.f32 %v1662, %v1663
      %v1665 = vrot.slane %v1664, 4
      %v1666 = vmax.f32 %v1664, %v1665
      %v1667 = vrot.slane %v1666, 2
      %v1668 = vmax.f32 %v1666, %v1667
      %v1669 = vrot.slane %v1668, 1
      %v1670 = vmax.f32 %v1668, %v1669
      %v1671 = vpack.i.bf16 %v1670, %v1670
      %v1673 = vsel %vm1059, %v578, 4286644096
      %v1675 = vunpack.i.l.bf16 %v1673
      %v1676 = vunpack.i.h.bf16 %v1673
      %v1677 = vmax.f32 %v1675, %v1676
      %v1678 = vrot.slane %v1677, 4
      %v1679 = vmax.f32 %v1677, %v1678
      %v1680 = vrot.slane %v1679, 2
      %v1681 = vmax.f32 %v1679, %v1680
      %v1682 = vrot.slane %v1681, 1
      %v1683 = vmax.f32 %v1681, %v1682
      %v1684 = vpack.i.bf16 %v1683, %v1683
      %v1686 = vsel %vm1059, %v593, 4286644096
      %v1688 = vunpack.i.l.bf16 %v1686
      %v1689 = vunpack.i.h.bf16 %v1686
      %v1690 = vmax.f32 %v1688, %v1689
      %v1691 = vrot.slane %v1690, 4
      %v1692 = vmax.f32 %v1690, %v1691
      %v1693 = vrot.slane %v1692, 2
      %v1694 = vmax.f32 %v1692, %v1693
      %v1695 = vrot.slane %v1694, 1
      %v1696 = vmax.f32 %v1694, %v1695
      %v1697 = vpack.i.bf16 %v1696, %v1696
      %v1699 = vsel %vm1059, %v600, 4286644096
      %v1701 = vunpack.i.l.bf16 %v1699
      %v1702 = vunpack.i.h.bf16 %v1699
      %v1703 = vmax.f32 %v1701, %v1702
      %v1704 = vrot.slane %v1703, 4
      %v1705 = vmax.f32 %v1703, %v1704
      %v1706 = vrot.slane %v1705, 2
      %v1707 = vmax.f32 %v1705, %v1706
      %v1708 = vrot.slane %v1707, 1
      %v1709 = vmax.f32 %v1707, %v1708
      %v1710 = vpack.i.bf16 %v1709, %v1709
      %v1712 = vsel %vm1059, %v601, 4286644096
      %v1714 = vunpack.i.l.bf16 %v1712
      %v1715 = vunpack.i.h.bf16 %v1712
      %v1716 = vmax.f32 %v1714, %v1715
      %v1717 = vrot.slane %v1716, 4
      %v1718 = vmax.f32 %v1716, %v1717
      %v1719 = vrot.slane %v1718, 2
      %v1720 = vmax.f32 %v1718, %v1719
      %v1721 = vrot.slane %v1720, 1
      %v1722 = vmax.f32 %v1720, %v1721
      %v1723 = vpack.i.bf16 %v1722, %v1722
      %v1725 = vsel %vm1059, %v602, 4286644096
      %v1727 = vunpack.i.l.bf16 %v1725
      %v1728 = vunpack.i.h.bf16 %v1725
      %v1729 = vmax.f32 %v1727, %v1728
      %v1730 = vrot.slane %v1729, 4
      %v1731 = vmax.f32 %v1729, %v1730
      %v1732 = vrot.slane %v1731, 2
      %v1733 = vmax.f32 %v1731, %v1732
      %v1734 = vrot.slane %v1733, 1
      %v1735 = vmax.f32 %v1733, %v1734
      %v1736 = vpack.i.bf16 %v1735, %v1735
      %v1738 = vsel %vm1059, %v617, 4286644096
      %v1740 = vunpack.i.l.bf16 %v1738
      %v1741 = vunpack.i.h.bf16 %v1738
      %v1742 = vmax.f32 %v1740, %v1741
      %v1743 = vrot.slane %v1742, 4
      %v1744 = vmax.f32 %v1742, %v1743
      %v1745 = vrot.slane %v1744, 2
      %v1746 = vmax.f32 %v1744, %v1745
      %v1747 = vrot.slane %v1746, 1
      %v1748 = vmax.f32 %v1746, %v1747
      %v1749 = vpack.i.bf16 %v1748, %v1748
      %v1751 = vsel %vm1059, %v624, 4286644096
      %v1753 = vunpack.i.l.bf16 %v1751
      %v1754 = vunpack.i.h.bf16 %v1751
      %v1755 = vmax.f32 %v1753, %v1754
      %v1756 = vrot.slane %v1755, 4
      %v1757 = vmax.f32 %v1755, %v1756
      %v1758 = vrot.slane %v1757, 2
      %v1759 = vmax.f32 %v1757, %v1758
      %v1760 = vrot.slane %v1759, 1
      %v1761 = vmax.f32 %v1759, %v1760
      %v1762 = vpack.i.bf16 %v1761, %v1761
      %v1764 = vsel %vm1059, %v625, 4286644096
      %v1766 = vunpack.i.l.bf16 %v1764
      %v1767 = vunpack.i.h.bf16 %v1764
      %v1768 = vmax.f32 %v1766, %v1767
      %v1769 = vrot.slane %v1768, 4
      %v1770 = vmax.f32 %v1768, %v1769
      %v1771 = vrot.slane %v1770, 2
      %v1772 = vmax.f32 %v1770, %v1771
      %v1773 = vrot.slane %v1772, 1
      %v1774 = vmax.f32 %v1772, %v1773
      %v1775 = vpack.i.bf16 %v1774, %v1774
      %v1777 = vsel %vm1059, %v626, 4286644096
      %v1779 = vunpack.i.l.bf16 %v1777
      %v1780 = vunpack.i.h.bf16 %v1777
      %v1781 = vmax.f32 %v1779, %v1780
      %v1782 = vrot.slane %v1781, 4
      %v1783 = vmax.f32 %v1781, %v1782
      %v1784 = vrot.slane %v1783, 2
      %v1785 = vmax.f32 %v1783, %v1784
      %v1786 = vrot.slane %v1785, 1
      %v1787 = vmax.f32 %v1785, %v1786
      %v1788 = vpack.i.bf16 %v1787, %v1787
      %v1790 = vsel %vm1059, %v641, 4286644096
      %v1792 = vunpack.i.l.bf16 %v1790
      %v1793 = vunpack.i.h.bf16 %v1790
      %v1794 = vmax.f32 %v1792, %v1793
      %v1795 = vrot.slane %v1794, 4
      %v1796 = vmax.f32 %v1794, %v1795
      %v1797 = vrot.slane %v1796, 2
      %v1798 = vmax.f32 %v1796, %v1797
      %v1799 = vrot.slane %v1798, 1
      %v1800 = vmax.f32 %v1798, %v1799
      %v1801 = vpack.i.bf16 %v1800, %v1800
      %v1803 = vsel %vm1059, %v648, 4286644096
      %v1805 = vunpack.i.l.bf16 %v1803
      %v1806 = vunpack.i.h.bf16 %v1803
      %v1807 = vmax.f32 %v1805, %v1806
      %v1808 = vrot.slane %v1807, 4
      %v1809 = vmax.f32 %v1807, %v1808
      %v1810 = vrot.slane %v1809, 2
      %v1811 = vmax.f32 %v1809, %v1810
      %v1812 = vrot.slane %v1811, 1
      %v1813 = vmax.f32 %v1811, %v1812
      %v1814 = vpack.i.bf16 %v1813, %v1813
      %v1816 = vsel %vm1059, %v649, 4286644096
      %v1818 = vunpack.i.l.bf16 %v1816
      %v1819 = vunpack.i.h.bf16 %v1816
      %v1820 = vmax.f32 %v1818, %v1819
      %v1821 = vrot.slane %v1820, 4
      %v1822 = vmax.f32 %v1820, %v1821
      %v1823 = vrot.slane %v1822, 2
      %v1824 = vmax.f32 %v1822, %v1823
      %v1825 = vrot.slane %v1824, 1
      %v1826 = vmax.f32 %v1824, %v1825
      %v1827 = vpack.i.bf16 %v1826, %v1826
      %v1829 = vsel %vm1059, %v650, 4286644096
      %v1831 = vunpack.i.l.bf16 %v1829
      %v1832 = vunpack.i.h.bf16 %v1829
      %v1833 = vmax.f32 %v1831, %v1832
      %v1834 = vrot.slane %v1833, 4
      %v1835 = vmax.f32 %v1833, %v1834
      %v1836 = vrot.slane %v1835, 2
      %v1837 = vmax.f32 %v1835, %v1836
      %v1838 = vrot.slane %v1837, 1
      %v1839 = vmax.f32 %v1837, %v1838
      %v1840 = vpack.i.bf16 %v1839, %v1839
      %v1842 = vsel %vm1059, %v665, 4286644096
      %v1844 = vunpack.i.l.bf16 %v1842
      %v1845 = vunpack.i.h.bf16 %v1842
      %v1846 = vmax.f32 %v1844, %v1845
      %v1847 = vrot.slane %v1846, 4
      %v1848 = vmax.f32 %v1846, %v1847
      %v1849 = vrot.slane %v1848, 2
      %v1850 = vmax.f32 %v1848, %v1849
      %v1851 = vrot.slane %v1850, 1
      %v1852 = vmax.f32 %v1850, %v1851
      %v1853 = vpack.i.bf16 %v1852, %v1852
      %v1855 = vsel %vm1059, %v672, 4286644096
      %v1857 = vunpack.i.l.bf16 %v1855
      %v1858 = vunpack.i.h.bf16 %v1855
      %v1859 = vmax.f32 %v1857, %v1858
      %v1860 = vrot.slane %v1859, 4
      %v1861 = vmax.f32 %v1859, %v1860
      %v1862 = vrot.slane %v1861, 2
      %v1863 = vmax.f32 %v1861, %v1862
      %v1864 = vrot.slane %v1863, 1
      %v1865 = vmax.f32 %v1863, %v1864
      %v1866 = vpack.i.bf16 %v1865, %v1865
      %v1868 = vsel %vm1059, %v673, 4286644096
      %v1870 = vunpack.i.l.bf16 %v1868
      %v1871 = vunpack.i.h.bf16 %v1868
      %v1872 = vmax.f32 %v1870, %v1871
      %v1873 = vrot.slane %v1872, 4
      %v1874 = vmax.f32 %v1872, %v1873
      %v1875 = vrot.slane %v1874, 2
      %v1876 = vmax.f32 %v1874, %v1875
      %v1877 = vrot.slane %v1876, 1
      %v1878 = vmax.f32 %v1876, %v1877
      %v1879 = vpack.i.bf16 %v1878, %v1878
      %v1881 = vsel %vm1059, %v674, 4286644096
      %v1883 = vunpack.i.l.bf16 %v1881
      %v1884 = vunpack.i.h.bf16 %v1881
      %v1885 = vmax.f32 %v1883, %v1884
      %v1886 = vrot.slane %v1885, 4
      %v1887 = vmax.f32 %v1885, %v1886
      %v1888 = vrot.slane %v1887, 2
      %v1889 = vmax.f32 %v1887, %v1888
      %v1890 = vrot.slane %v1889, 1
      %v1891 = vmax.f32 %v1889, %v1890
      %v1892 = vpack.i.bf16 %v1891, %v1891
      %v1894 = vsel %vm1059, %v689, 4286644096
      %v1896 = vunpack.i.l.bf16 %v1894
      %v1897 = vunpack.i.h.bf16 %v1894
      %v1898 = vmax.f32 %v1896, %v1897
      %v1899 = vrot.slane %v1898, 4
      %v1900 = vmax.f32 %v1898, %v1899
      %v1901 = vrot.slane %v1900, 2
      %v1902 = vmax.f32 %v1900, %v1901
      %v1903 = vrot.slane %v1902, 1
      %v1904 = vmax.f32 %v1902, %v1903
      %v1905 = vpack.i.bf16 %v1904, %v1904
      %v1907 = vsel %vm1059, %v696, 4286644096
      %v1909 = vunpack.i.l.bf16 %v1907
      %v1910 = vunpack.i.h.bf16 %v1907
      %v1911 = vmax.f32 %v1909, %v1910
      %v1912 = vrot.slane %v1911, 4
      %v1913 = vmax.f32 %v1911, %v1912
      %v1914 = vrot.slane %v1913, 2
      %v1915 = vmax.f32 %v1913, %v1914
      %v1916 = vrot.slane %v1915, 1
      %v1917 = vmax.f32 %v1915, %v1916
      %v1918 = vpack.i.bf16 %v1917, %v1917
      %v1920 = vsel %vm1059, %v697, 4286644096
      %v1922 = vunpack.i.l.bf16 %v1920
      %v1923 = vunpack.i.h.bf16 %v1920
      %v1924 = vmax.f32 %v1922, %v1923
      %v1925 = vrot.slane %v1924, 4
      %v1926 = vmax.f32 %v1924, %v1925
      %v1927 = vrot.slane %v1926, 2
      %v1928 = vmax.f32 %v1926, %v1927
      %v1929 = vrot.slane %v1928, 1
      %v1930 = vmax.f32 %v1928, %v1929
      %v1931 = vpack.i.bf16 %v1930, %v1930
      %v1933 = vsel %vm1059, %v698, 4286644096
      %v1935 = vunpack.i.l.bf16 %v1933
      %v1936 = vunpack.i.h.bf16 %v1933
      %v1937 = vmax.f32 %v1935, %v1936
      %v1938 = vrot.slane %v1937, 4
      %v1939 = vmax.f32 %v1937, %v1938
      %v1940 = vrot.slane %v1939, 2
      %v1941 = vmax.f32 %v1939, %v1940
      %v1942 = vrot.slane %v1941, 1
      %v1943 = vmax.f32 %v1941, %v1942
      %v1944 = vpack.i.bf16 %v1943, %v1943
      %v1946 = vsel %vm1059, %v713, 4286644096
      %v1948 = vunpack.i.l.bf16 %v1946
      %v1949 = vunpack.i.h.bf16 %v1946
      %v1950 = vmax.f32 %v1948, %v1949
      %v1951 = vrot.slane %v1950, 4
      %v1952 = vmax.f32 %v1950, %v1951
      %v1953 = vrot.slane %v1952, 2
      %v1954 = vmax.f32 %v1952, %v1953
      %v1955 = vrot.slane %v1954, 1
      %v1956 = vmax.f32 %v1954, %v1955
      %v1957 = vpack.i.bf16 %v1956, %v1956
      %v1959 = vsel %vm1059, %v720, 4286644096
      %v1961 = vunpack.i.l.bf16 %v1959
      %v1962 = vunpack.i.h.bf16 %v1959
      %v1963 = vmax.f32 %v1961, %v1962
      %v1964 = vrot.slane %v1963, 4
      %v1965 = vmax.f32 %v1963, %v1964
      %v1966 = vrot.slane %v1965, 2
      %v1967 = vmax.f32 %v1965, %v1966
      %v1968 = vrot.slane %v1967, 1
      %v1969 = vmax.f32 %v1967, %v1968
      %v1970 = vpack.i.bf16 %v1969, %v1969
      %v1972 = vsel %vm1059, %v721, 4286644096
      %v1974 = vunpack.i.l.bf16 %v1972
      %v1975 = vunpack.i.h.bf16 %v1972
      %v1976 = vmax.f32 %v1974, %v1975
      %v1977 = vrot.slane %v1976, 4
      %v1978 = vmax.f32 %v1976, %v1977
      %v1979 = vrot.slane %v1978, 2
      %v1980 = vmax.f32 %v1978, %v1979
      %v1981 = vrot.slane %v1980, 1
      %v1982 = vmax.f32 %v1980, %v1981
      %v1983 = vpack.i.bf16 %v1982, %v1982
      %v1985 = vsel %vm1059, %v722, 4286644096
      %v1987 = vunpack.i.l.bf16 %v1985
      %v1988 = vunpack.i.h.bf16 %v1985
      %v1989 = vmax.f32 %v1987, %v1988
      %v1990 = vrot.slane %v1989, 4
      %v1991 = vmax.f32 %v1989, %v1990
      %v1992 = vrot.slane %v1991, 2
      %v1993 = vmax.f32 %v1991, %v1992
      %v1994 = vrot.slane %v1993, 1
      %v1995 = vmax.f32 %v1993, %v1994
      %v1996 = vpack.i.bf16 %v1995, %v1995
      %v1998 = vsel %vm1059, %v737, 4286644096
      %v2000 = vunpack.i.l.bf16 %v1998
      %v2001 = vunpack.i.h.bf16 %v1998
      %v2002 = vmax.f32 %v2000, %v2001
      %v2003 = vrot.slane %v2002, 4
      %v2004 = vmax.f32 %v2002, %v2003
      %v2005 = vrot.slane %v2004, 2
      %v2006 = vmax.f32 %v2004, %v2005
      %v2007 = vrot.slane %v2006, 1
      %v2008 = vmax.f32 %v2006, %v2007
      %v2009 = vpack.i.bf16 %v2008, %v2008
      %v2011 = vsel %vm1059, %v744, 4286644096
      %v2013 = vunpack.i.l.bf16 %v2011
      %v2014 = vunpack.i.h.bf16 %v2011
      %v2015 = vmax.f32 %v2013, %v2014
      %v2016 = vrot.slane %v2015, 4
      %v2017 = vmax.f32 %v2015, %v2016
      %v2018 = vrot.slane %v2017, 2
      %v2019 = vmax.f32 %v2017, %v2018
      %v2020 = vrot.slane %v2019, 1
      %v2021 = vmax.f32 %v2019, %v2020
      %v2022 = vpack.i.bf16 %v2021, %v2021
      %v2024 = vsel %vm1059, %v745, 4286644096
      %v2026 = vunpack.i.l.bf16 %v2024
      %v2027 = vunpack.i.h.bf16 %v2024
      %v2028 = vmax.f32 %v2026, %v2027
      %v2029 = vrot.slane %v2028, 4
      %v2030 = vmax.f32 %v2028, %v2029
      %v2031 = vrot.slane %v2030, 2
      %v2032 = vmax.f32 %v2030, %v2031
      %v2033 = vrot.slane %v2032, 1
      %v2034 = vmax.f32 %v2032, %v2033
      %v2035 = vpack.i.bf16 %v2034, %v2034
      %v2037 = vsel %vm1059, %v746, 4286644096
      %v2039 = vunpack.i.l.bf16 %v2037
      %v2040 = vunpack.i.h.bf16 %v2037
      %v2041 = vmax.f32 %v2039, %v2040
      %v2042 = vrot.slane %v2041, 4
      %v2043 = vmax.f32 %v2041, %v2042
      %v2044 = vrot.slane %v2043, 2
      %v2045 = vmax.f32 %v2043, %v2044
      %v2046 = vrot.slane %v2045, 1
      %v2047 = vmax.f32 %v2045, %v2046
      %v2048 = vpack.i.bf16 %v2047, %v2047
      %v2050 = vsel %vm1059, %v761, 4286644096
      %v2052 = vunpack.i.l.bf16 %v2050
      %v2053 = vunpack.i.h.bf16 %v2050
      %v2054 = vmax.f32 %v2052, %v2053
      %v2055 = vrot.slane %v2054, 4
      %v2056 = vmax.f32 %v2054, %v2055
      %v2057 = vrot.slane %v2056, 2
      %v2058 = vmax.f32 %v2056, %v2057
      %v2059 = vrot.slane %v2058, 1
      %v2060 = vmax.f32 %v2058, %v2059
      %v2061 = vpack.i.bf16 %v2060, %v2060
      %v2063 = vsel %vm1059, %v768, 4286644096
      %v2065 = vunpack.i.l.bf16 %v2063
      %v2066 = vunpack.i.h.bf16 %v2063
      %v2067 = vmax.f32 %v2065, %v2066
      %v2068 = vrot.slane %v2067, 4
      %v2069 = vmax.f32 %v2067, %v2068
      %v2070 = vrot.slane %v2069, 2
      %v2071 = vmax.f32 %v2069, %v2070
      %v2072 = vrot.slane %v2071, 1
      %v2073 = vmax.f32 %v2071, %v2072
      %v2074 = vpack.i.bf16 %v2073, %v2073
      %v2076 = vsel %vm1059, %v769, 4286644096
      %v2078 = vunpack.i.l.bf16 %v2076
      %v2079 = vunpack.i.h.bf16 %v2076
      %v2080 = vmax.f32 %v2078, %v2079
      %v2081 = vrot.slane %v2080, 4
      %v2082 = vmax.f32 %v2080, %v2081
      %v2083 = vrot.slane %v2082, 2
      %v2084 = vmax.f32 %v2082, %v2083
      %v2085 = vrot.slane %v2084, 1
      %v2086 = vmax.f32 %v2084, %v2085
      %v2087 = vpack.i.bf16 %v2086, %v2086
      %v2089 = vsel %vm1059, %v770, 4286644096
      %v2091 = vunpack.i.l.bf16 %v2089
      %v2092 = vunpack.i.h.bf16 %v2089
      %v2093 = vmax.f32 %v2091, %v2092
      %v2094 = vrot.slane %v2093, 4
      %v2095 = vmax.f32 %v2093, %v2094
      %v2096 = vrot.slane %v2095, 2
      %v2097 = vmax.f32 %v2095, %v2096
      %v2098 = vrot.slane %v2097, 1
      %v2099 = vmax.f32 %v2097, %v2098
      %v2100 = vpack.i.bf16 %v2099, %v2099
      %v2102 = vsel %vm1059, %v785, 4286644096
      %v2104 = vunpack.i.l.bf16 %v2102
      %v2105 = vunpack.i.h.bf16 %v2102
      %v2106 = vmax.f32 %v2104, %v2105
      %v2107 = vrot.slane %v2106, 4
      %v2108 = vmax.f32 %v2106, %v2107
      %v2109 = vrot.slane %v2108, 2
      %v2110 = vmax.f32 %v2108, %v2109
      %v2111 = vrot.slane %v2110, 1
      %v2112 = vmax.f32 %v2110, %v2111
      %v2113 = vpack.i.bf16 %v2112, %v2112
      %v2115 = vsel %vm1059, %v792, 4286644096
      %v2117 = vunpack.i.l.bf16 %v2115
      %v2118 = vunpack.i.h.bf16 %v2115
      %v2119 = vmax.f32 %v2117, %v2118
      %v2120 = vrot.slane %v2119, 4
      %v2121 = vmax.f32 %v2119, %v2120
      %v2122 = vrot.slane %v2121, 2
      %v2123 = vmax.f32 %v2121, %v2122
      %v2124 = vrot.slane %v2123, 1
      %v2125 = vmax.f32 %v2123, %v2124
      %v2126 = vpack.i.bf16 %v2125, %v2125
      %v2128 = vsel %vm1059, %v793, 4286644096
      %v2130 = vunpack.i.l.bf16 %v2128
      %v2131 = vunpack.i.h.bf16 %v2128
      %v2132 = vmax.f32 %v2130, %v2131
      %v2133 = vrot.slane %v2132, 4
      %v2134 = vmax.f32 %v2132, %v2133
      %v2135 = vrot.slane %v2134, 2
      %v2136 = vmax.f32 %v2134, %v2135
      %v2137 = vrot.slane %v2136, 1
      %v2138 = vmax.f32 %v2136, %v2137
      %v2139 = vpack.i.bf16 %v2138, %v2138
      %v2141 = vsel %vm1059, %v794, 4286644096
      %v2143 = vunpack.i.l.bf16 %v2141
      %v2144 = vunpack.i.h.bf16 %v2141
      %v2145 = vmax.f32 %v2143, %v2144
      %v2146 = vrot.slane %v2145, 4
      %v2147 = vmax.f32 %v2145, %v2146
      %v2148 = vrot.slane %v2147, 2
      %v2149 = vmax.f32 %v2147, %v2148
      %v2150 = vrot.slane %v2149, 1
      %v2151 = vmax.f32 %v2149, %v2150
      %v2152 = vpack.i.bf16 %v2151, %v2151
      %v2154 = vsel %vm1059, %v809, 4286644096
      %v2156 = vunpack.i.l.bf16 %v2154
      %v2157 = vunpack.i.h.bf16 %v2154
      %v2158 = vmax.f32 %v2156, %v2157
      %v2159 = vrot.slane %v2158, 4
      %v2160 = vmax.f32 %v2158, %v2159
      %v2161 = vrot.slane %v2160, 2
      %v2162 = vmax.f32 %v2160, %v2161
      %v2163 = vrot.slane %v2162, 1
      %v2164 = vmax.f32 %v2162, %v2163
      %v2165 = vpack.i.bf16 %v2164, %v2164
      %v2167 = vsel %vm1059, %v816, 4286644096
      %v2169 = vunpack.i.l.bf16 %v2167
      %v2170 = vunpack.i.h.bf16 %v2167
      %v2171 = vmax.f32 %v2169, %v2170
      %v2172 = vrot.slane %v2171, 4
      %v2173 = vmax.f32 %v2171, %v2172
      %v2174 = vrot.slane %v2173, 2
      %v2175 = vmax.f32 %v2173, %v2174
      %v2176 = vrot.slane %v2175, 1
      %v2177 = vmax.f32 %v2175, %v2176
      %v2178 = vpack.i.bf16 %v2177, %v2177
      %v2180 = vsel %vm1059, %v817, 4286644096
      %v2182 = vunpack.i.l.bf16 %v2180
      %v2183 = vunpack.i.h.bf16 %v2180
      %v2184 = vmax.f32 %v2182, %v2183
      %v2185 = vrot.slane %v2184, 4
      %v2186 = vmax.f32 %v2184, %v2185
      %v2187 = vrot.slane %v2186, 2
      %v2188 = vmax.f32 %v2186, %v2187
      %v2189 = vrot.slane %v2188, 1
      %v2190 = vmax.f32 %v2188, %v2189
      %v2191 = vpack.i.bf16 %v2190, %v2190
      %v2193 = vsel %vm1059, %v818, 4286644096
      %v2195 = vunpack.i.l.bf16 %v2193
      %v2196 = vunpack.i.h.bf16 %v2193
      %v2197 = vmax.f32 %v2195, %v2196
      %v2198 = vrot.slane %v2197, 4
      %v2199 = vmax.f32 %v2197, %v2198
      %v2200 = vrot.slane %v2199, 2
      %v2201 = vmax.f32 %v2199, %v2200
      %v2202 = vrot.slane %v2201, 1
      %v2203 = vmax.f32 %v2201, %v2202
      %v2204 = vpack.i.bf16 %v2203, %v2203
      %v2206 = vsel %vm1059, %v833, 4286644096
      %v2208 = vunpack.i.l.bf16 %v2206
      %v2209 = vunpack.i.h.bf16 %v2206
      %v2210 = vmax.f32 %v2208, %v2209
      %v2211 = vrot.slane %v2210, 4
      %v2212 = vmax.f32 %v2210, %v2211
      %v2213 = vrot.slane %v2212, 2
      %v2214 = vmax.f32 %v2212, %v2213
      %v2215 = vrot.slane %v2214, 1
      %v2216 = vmax.f32 %v2214, %v2215
      %v2217 = vpack.i.bf16 %v2216, %v2216
      %v2219 = vsel %vm1059, %v840, 4286644096
      %v2221 = vunpack.i.l.bf16 %v2219
      %v2222 = vunpack.i.h.bf16 %v2219
      %v2223 = vmax.f32 %v2221, %v2222
      %v2224 = vrot.slane %v2223, 4
      %v2225 = vmax.f32 %v2223, %v2224
      %v2226 = vrot.slane %v2225, 2
      %v2227 = vmax.f32 %v2225, %v2226
      %v2228 = vrot.slane %v2227, 1
      %v2229 = vmax.f32 %v2227, %v2228
      %v2230 = vpack.i.bf16 %v2229, %v2229
      %v2232 = vsel %vm1059, %v841, 4286644096
      %v2234 = vunpack.i.l.bf16 %v2232
      %v2235 = vunpack.i.h.bf16 %v2232
      %v2236 = vmax.f32 %v2234, %v2235
      %v2237 = vrot.slane %v2236, 4
      %v2238 = vmax.f32 %v2236, %v2237
      %v2239 = vrot.slane %v2238, 2
      %v2240 = vmax.f32 %v2238, %v2239
      %v2241 = vrot.slane %v2240, 1
      %v2242 = vmax.f32 %v2240, %v2241
      %v2243 = vpack.i.bf16 %v2242, %v2242
      %v2245 = vsel %vm1059, %v842, 4286644096
      %v2247 = vunpack.i.l.bf16 %v2245
      %v2248 = vunpack.i.h.bf16 %v2245
      %v2249 = vmax.f32 %v2247, %v2248
      %v2250 = vrot.slane %v2249, 4
      %v2251 = vmax.f32 %v2249, %v2250
      %v2252 = vrot.slane %v2251, 2
      %v2253 = vmax.f32 %v2251, %v2252
      %v2254 = vrot.slane %v2253, 1
      %v2255 = vmax.f32 %v2253, %v2254
      %v2256 = vpack.i.bf16 %v2255, %v2255
      %v2258 = vsel %vm1059, %v857, 4286644096
      %v2260 = vunpack.i.l.bf16 %v2258
      %v2261 = vunpack.i.h.bf16 %v2258
      %v2262 = vmax.f32 %v2260, %v2261
      %v2263 = vrot.slane %v2262, 4
      %v2264 = vmax.f32 %v2262, %v2263
      %v2265 = vrot.slane %v2264, 2
      %v2266 = vmax.f32 %v2264, %v2265
      %v2267 = vrot.slane %v2266, 1
      %v2268 = vmax.f32 %v2266, %v2267
      %v2269 = vpack.i.bf16 %v2268, %v2268
      %v2271 = vsel %vm1059, %v864, 4286644096
      %v2273 = vunpack.i.l.bf16 %v2271
      %v2274 = vunpack.i.h.bf16 %v2271
      %v2275 = vmax.f32 %v2273, %v2274
      %v2276 = vrot.slane %v2275, 4
      %v2277 = vmax.f32 %v2275, %v2276
      %v2278 = vrot.slane %v2277, 2
      %v2279 = vmax.f32 %v2277, %v2278
      %v2280 = vrot.slane %v2279, 1
      %v2281 = vmax.f32 %v2279, %v2280
      %v2282 = vpack.i.bf16 %v2281, %v2281
      %v2284 = vsel %vm1059, %v865, 4286644096
      %v2286 = vunpack.i.l.bf16 %v2284
      %v2287 = vunpack.i.h.bf16 %v2284
      %v2288 = vmax.f32 %v2286, %v2287
      %v2289 = vrot.slane %v2288, 4
      %v2290 = vmax.f32 %v2288, %v2289
      %v2291 = vrot.slane %v2290, 2
      %v2292 = vmax.f32 %v2290, %v2291
      %v2293 = vrot.slane %v2292, 1
      %v2294 = vmax.f32 %v2292, %v2293
      %v2295 = vpack.i.bf16 %v2294, %v2294
      %v2297 = vsel %vm1059, %v866, 4286644096
      %v2299 = vunpack.i.l.bf16 %v2297
      %v2300 = vunpack.i.h.bf16 %v2297
      %v2301 = vmax.f32 %v2299, %v2300
      %v2302 = vrot.slane %v2301, 4
      %v2303 = vmax.f32 %v2301, %v2302
      %v2304 = vrot.slane %v2303, 2
      %v2305 = vmax.f32 %v2303, %v2304
      %v2306 = vrot.slane %v2305, 1
      %v2307 = vmax.f32 %v2305, %v2306
      %v2308 = vpack.i.bf16 %v2307, %v2307
      %v2310 = vsel %vm1059, %v881, 4286644096
      %v2312 = vunpack.i.l.bf16 %v2310
      %v2313 = vunpack.i.h.bf16 %v2310
      %v2314 = vmax.f32 %v2312, %v2313
      %v2315 = vrot.slane %v2314, 4
      %v2316 = vmax.f32 %v2314, %v2315
      %v2317 = vrot.slane %v2316, 2
      %v2318 = vmax.f32 %v2316, %v2317
      %v2319 = vrot.slane %v2318, 1
      %v2320 = vmax.f32 %v2318, %v2319
      %v2321 = vpack.i.bf16 %v2320, %v2320
      %v2323 = vsel %vm1059, %v888, 4286644096
      %v2325 = vunpack.i.l.bf16 %v2323
      %v2326 = vunpack.i.h.bf16 %v2323
      %v2327 = vmax.f32 %v2325, %v2326
      %v2328 = vrot.slane %v2327, 4
      %v2329 = vmax.f32 %v2327, %v2328
      %v2330 = vrot.slane %v2329, 2
      %v2331 = vmax.f32 %v2329, %v2330
      %v2332 = vrot.slane %v2331, 1
      %v2333 = vmax.f32 %v2331, %v2332
      %v2334 = vpack.i.bf16 %v2333, %v2333
      %v2336 = vsel %vm1059, %v889, 4286644096
      %v2338 = vunpack.i.l.bf16 %v2336
      %v2339 = vunpack.i.h.bf16 %v2336
      %v2340 = vmax.f32 %v2338, %v2339
      %v2341 = vrot.slane %v2340, 4
      %v2342 = vmax.f32 %v2340, %v2341
      %v2343 = vrot.slane %v2342, 2
      %v2344 = vmax.f32 %v2342, %v2343
      %v2345 = vrot.slane %v2344, 1
      %v2346 = vmax.f32 %v2344, %v2345
      %v2347 = vpack.i.bf16 %v2346, %v2346
      %v2349 = vsel %vm1059, %v890, 4286644096
      %v2351 = vunpack.i.l.bf16 %v2349
      %v2352 = vunpack.i.h.bf16 %v2349
      %v2353 = vmax.f32 %v2351, %v2352
      %v2354 = vrot.slane %v2353, 4
      %v2355 = vmax.f32 %v2353, %v2354
      %v2356 = vrot.slane %v2355, 2
      %v2357 = vmax.f32 %v2355, %v2356
      %v2358 = vrot.slane %v2357, 1
      %v2359 = vmax.f32 %v2357, %v2358
      %v2360 = vpack.i.bf16 %v2359, %v2359
      %v2362 = vsel %vm1059, %v905, 4286644096
      %v2364 = vunpack.i.l.bf16 %v2362
      %v2365 = vunpack.i.h.bf16 %v2362
      %v2366 = vmax.f32 %v2364, %v2365
      %v2367 = vrot.slane %v2366, 4
      %v2368 = vmax.f32 %v2366, %v2367
      %v2369 = vrot.slane %v2368, 2
      %v2370 = vmax.f32 %v2368, %v2369
      %v2371 = vrot.slane %v2370, 1
      %v2372 = vmax.f32 %v2370, %v2371
      %v2373 = vpack.i.bf16 %v2372, %v2372
      %v2375 = vsel %vm1059, %v912, 4286644096
      %v2377 = vunpack.i.l.bf16 %v2375
      %v2378 = vunpack.i.h.bf16 %v2375
      %v2379 = vmax.f32 %v2377, %v2378
      %v2380 = vrot.slane %v2379, 4
      %v2381 = vmax.f32 %v2379, %v2380
      %v2382 = vrot.slane %v2381, 2
      %v2383 = vmax.f32 %v2381, %v2382
      %v2384 = vrot.slane %v2383, 1
      %v2385 = vmax.f32 %v2383, %v2384
      %v2386 = vpack.i.bf16 %v2385, %v2385
      %v2388 = vsel %vm1059, %v913, 4286644096
      %v2390 = vunpack.i.l.bf16 %v2388
      %v2391 = vunpack.i.h.bf16 %v2388
      %v2392 = vmax.f32 %v2390, %v2391
      %v2393 = vrot.slane %v2392, 4
      %v2394 = vmax.f32 %v2392, %v2393
      %v2395 = vrot.slane %v2394, 2
      %v2396 = vmax.f32 %v2394, %v2395
      %v2397 = vrot.slane %v2396, 1
      %v2398 = vmax.f32 %v2396, %v2397
      %v2399 = vpack.i.bf16 %v2398, %v2398
      %v2401 = vsel %vm1059, %v914, 4286644096
      %v2403 = vunpack.i.l.bf16 %v2401
      %v2404 = vunpack.i.h.bf16 %v2401
      %v2405 = vmax.f32 %v2403, %v2404
      %v2406 = vrot.slane %v2405, 4
      %v2407 = vmax.f32 %v2405, %v2406
      %v2408 = vrot.slane %v2407, 2
      %v2409 = vmax.f32 %v2407, %v2408
      %v2410 = vrot.slane %v2409, 1
      %v2411 = vmax.f32 %v2409, %v2410
      %v2412 = vpack.i.bf16 %v2411, %v2411
      %v2414 = vsel %vm1059, %v929, 4286644096
      %v2416 = vunpack.i.l.bf16 %v2414
      %v2417 = vunpack.i.h.bf16 %v2414
      %v2418 = vmax.f32 %v2416, %v2417
      %v2419 = vrot.slane %v2418, 4
      %v2420 = vmax.f32 %v2418, %v2419
      %v2421 = vrot.slane %v2420, 2
      %v2422 = vmax.f32 %v2420, %v2421
      %v2423 = vrot.slane %v2422, 1
      %v2424 = vmax.f32 %v2422, %v2423
      %v2425 = vpack.i.bf16 %v2424, %v2424
      %v2427 = vsel %vm1059, %v936, 4286644096
      %v2429 = vunpack.i.l.bf16 %v2427
      %v2430 = vunpack.i.h.bf16 %v2427
      %v2431 = vmax.f32 %v2429, %v2430
      %v2432 = vrot.slane %v2431, 4
      %v2433 = vmax.f32 %v2431, %v2432
      %v2434 = vrot.slane %v2433, 2
      %v2435 = vmax.f32 %v2433, %v2434
      %v2436 = vrot.slane %v2435, 1
      %v2437 = vmax.f32 %v2435, %v2436
      %v2438 = vpack.i.bf16 %v2437, %v2437
      %v2440 = vsel %vm1059, %v937, 4286644096
      %v2442 = vunpack.i.l.bf16 %v2440
      %v2443 = vunpack.i.h.bf16 %v2440
      %v2444 = vmax.f32 %v2442, %v2443
      %v2445 = vrot.slane %v2444, 4
      %v2446 = vmax.f32 %v2444, %v2445
      %v2447 = vrot.slane %v2446, 2
      %v2448 = vmax.f32 %v2446, %v2447
      %v2449 = vrot.slane %v2448, 1
      %v2450 = vmax.f32 %v2448, %v2449
      %v2451 = vpack.i.bf16 %v2450, %v2450
      %v2453 = vsel %vm1059, %v938, 4286644096
      %v2455 = vunpack.i.l.bf16 %v2453
      %v2456 = vunpack.i.h.bf16 %v2453
      %v2457 = vmax.f32 %v2455, %v2456
      %v2458 = vrot.slane %v2457, 4
      %v2459 = vmax.f32 %v2457, %v2458
      %v2460 = vrot.slane %v2459, 2
      %v2461 = vmax.f32 %v2459, %v2460
      %v2462 = vrot.slane %v2461, 1
      %v2463 = vmax.f32 %v2461, %v2462
      %v2464 = vpack.i.bf16 %v2463, %v2463
      %v2466 = vsel %vm1059, %v953, 4286644096
      %v2468 = vunpack.i.l.bf16 %v2466
      %v2469 = vunpack.i.h.bf16 %v2466
      %v2470 = vmax.f32 %v2468, %v2469
      %v2471 = vrot.slane %v2470, 4
      %v2472 = vmax.f32 %v2470, %v2471
      %v2473 = vrot.slane %v2472, 2
      %v2474 = vmax.f32 %v2472, %v2473
      %v2475 = vrot.slane %v2474, 1
      %v2476 = vmax.f32 %v2474, %v2475
      %v2477 = vpack.i.bf16 %v2476, %v2476
      %v2479 = vsel %vm1059, %v960, 4286644096
      %v2481 = vunpack.i.l.bf16 %v2479
      %v2482 = vunpack.i.h.bf16 %v2479
      %v2483 = vmax.f32 %v2481, %v2482
      %v2484 = vrot.slane %v2483, 4
      %v2485 = vmax.f32 %v2483, %v2484
      %v2486 = vrot.slane %v2485, 2
      %v2487 = vmax.f32 %v2485, %v2486
      %v2488 = vrot.slane %v2487, 1
      %v2489 = vmax.f32 %v2487, %v2488
      %v2490 = vpack.i.bf16 %v2489, %v2489
      %v2492 = vsel %vm1059, %v961, 4286644096
      %v2494 = vunpack.i.l.bf16 %v2492
      %v2495 = vunpack.i.h.bf16 %v2492
      %v2496 = vmax.f32 %v2494, %v2495
      %v2497 = vrot.slane %v2496, 4
      %v2498 = vmax.f32 %v2496, %v2497
      %v2499 = vrot.slane %v2498, 2
      %v2500 = vmax.f32 %v2498, %v2499
      %v2501 = vrot.slane %v2500, 1
      %v2502 = vmax.f32 %v2500, %v2501
      %v2503 = vpack.i.bf16 %v2502, %v2502
      %v2505 = vsel %vm1059, %v962, 4286644096
      %v2507 = vunpack.i.l.bf16 %v2505
      %v2508 = vunpack.i.h.bf16 %v2505
      %v2509 = vmax.f32 %v2507, %v2508
      %v2510 = vrot.slane %v2509, 4
      %v2511 = vmax.f32 %v2509, %v2510
      %v2512 = vrot.slane %v2511, 2
      %v2513 = vmax.f32 %v2511, %v2512
      %v2514 = vrot.slane %v2513, 1
      %v2515 = vmax.f32 %v2513, %v2514
      %v2516 = vpack.i.bf16 %v2515, %v2515
      %v2518 = vsel %vm1059, %v977, 4286644096
      %v2520 = vunpack.i.l.bf16 %v2518
      %v2521 = vunpack.i.h.bf16 %v2518
      %v2522 = vmax.f32 %v2520, %v2521
      %v2523 = vrot.slane %v2522, 4
      %v2524 = vmax.f32 %v2522, %v2523
      %v2525 = vrot.slane %v2524, 2
      %v2526 = vmax.f32 %v2524, %v2525
      %v2527 = vrot.slane %v2526, 1
      %v2528 = vmax.f32 %v2526, %v2527
      %v2529 = vpack.i.bf16 %v2528, %v2528
      %v2531 = vsel %vm1059, %v984, 4286644096
      %v2533 = vunpack.i.l.bf16 %v2531
      %v2534 = vunpack.i.h.bf16 %v2531
      %v2535 = vmax.f32 %v2533, %v2534
      %v2536 = vrot.slane %v2535, 4
      %v2537 = vmax.f32 %v2535, %v2536
      %v2538 = vrot.slane %v2537, 2
      %v2539 = vmax.f32 %v2537, %v2538
      %v2540 = vrot.slane %v2539, 1
      %v2541 = vmax.f32 %v2539, %v2540
      %v2542 = vpack.i.bf16 %v2541, %v2541
      %v2544 = vsel %vm1059, %v985, 4286644096
      %v2546 = vunpack.i.l.bf16 %v2544
      %v2547 = vunpack.i.h.bf16 %v2544
      %v2548 = vmax.f32 %v2546, %v2547
      %v2549 = vrot.slane %v2548, 4
      %v2550 = vmax.f32 %v2548, %v2549
      %v2551 = vrot.slane %v2550, 2
      %v2552 = vmax.f32 %v2550, %v2551
      %v2553 = vrot.slane %v2552, 1
      %v2554 = vmax.f32 %v2552, %v2553
      %v2555 = vpack.i.bf16 %v2554, %v2554
      %v2557 = vsel %vm1059, %v986, 4286644096
      %v2559 = vunpack.i.l.bf16 %v2557
      %v2560 = vunpack.i.h.bf16 %v2557
      %v2561 = vmax.f32 %v2559, %v2560
      %v2562 = vrot.slane %v2561, 4
      %v2563 = vmax.f32 %v2561, %v2562
      %v2564 = vrot.slane %v2563, 2
      %v2565 = vmax.f32 %v2563, %v2564
      %v2566 = vrot.slane %v2565, 1
      %v2567 = vmax.f32 %v2565, %v2566
      %v2568 = vpack.i.bf16 %v2567, %v2567
      %v2570 = vsel %vm1059, %v1001, 4286644096
      %v2572 = vunpack.i.l.bf16 %v2570
      %v2573 = vunpack.i.h.bf16 %v2570
      %v2574 = vmax.f32 %v2572, %v2573
      %v2575 = vrot.slane %v2574, 4
      %v2576 = vmax.f32 %v2574, %v2575
      %v2577 = vrot.slane %v2576, 2
      %v2578 = vmax.f32 %v2576, %v2577
      %v2579 = vrot.slane %v2578, 1
      %v2580 = vmax.f32 %v2578, %v2579
      %v2581 = vpack.i.bf16 %v2580, %v2580
      %v2583 = vsel %vm1059, %v1008, 4286644096
      %v2585 = vunpack.i.l.bf16 %v2583
      %v2586 = vunpack.i.h.bf16 %v2583
      %v2587 = vmax.f32 %v2585, %v2586
      %v2588 = vrot.slane %v2587, 4
      %v2589 = vmax.f32 %v2587, %v2588
      %v2590 = vrot.slane %v2589, 2
      %v2591 = vmax.f32 %v2589, %v2590
      %v2592 = vrot.slane %v2591, 1
      %v2593 = vmax.f32 %v2591, %v2592
      %v2594 = vpack.i.bf16 %v2593, %v2593
      %v2596 = vsel %vm1059, %v1009, 4286644096
      %v2598 = vunpack.i.l.bf16 %v2596
      %v2599 = vunpack.i.h.bf16 %v2596
      %v2600 = vmax.f32 %v2598, %v2599
      %v2601 = vrot.slane %v2600, 4
      %v2602 = vmax.f32 %v2600, %v2601
      %v2603 = vrot.slane %v2602, 2
      %v2604 = vmax.f32 %v2602, %v2603
      %v2605 = vrot.slane %v2604, 1
      %v2606 = vmax.f32 %v2604, %v2605
      %v2607 = vpack.i.bf16 %v2606, %v2606
      %v2609 = vsel %vm1059, %v1010, 4286644096
      %v2611 = vunpack.i.l.bf16 %v2609
      %v2612 = vunpack.i.h.bf16 %v2609
      %v2613 = vmax.f32 %v2611, %v2612
      %v2614 = vrot.slane %v2613, 4
      %v2615 = vmax.f32 %v2613, %v2614
      %v2616 = vrot.slane %v2615, 2
      %v2617 = vmax.f32 %v2615, %v2616
      %v2618 = vrot.slane %v2617, 1
      %v2619 = vmax.f32 %v2617, %v2618
      %v2620 = vpack.i.bf16 %v2619, %v2619
      %v2622 = vsel %vm1059, %v1025, 4286644096
      %v2624 = vunpack.i.l.bf16 %v2622
      %v2625 = vunpack.i.h.bf16 %v2622
      %v2626 = vmax.f32 %v2624, %v2625
      %v2627 = vrot.slane %v2626, 4
      %v2628 = vmax.f32 %v2626, %v2627
      %v2629 = vrot.slane %v2628, 2
      %v2630 = vmax.f32 %v2628, %v2629
      %v2631 = vrot.slane %v2630, 1
      %v2632 = vmax.f32 %v2630, %v2631
      %v2633 = vpack.i.bf16 %v2632, %v2632
      %v2635 = vsel %vm1059, %v1032, 4286644096
      %v2637 = vunpack.i.l.bf16 %v2635
      %v2638 = vunpack.i.h.bf16 %v2635
      %v2639 = vmax.f32 %v2637, %v2638
      %v2640 = vrot.slane %v2639, 4
      %v2641 = vmax.f32 %v2639, %v2640
      %v2642 = vrot.slane %v2641, 2
      %v2643 = vmax.f32 %v2641, %v2642
      %v2644 = vrot.slane %v2643, 1
      %v2645 = vmax.f32 %v2643, %v2644
      %v2646 = vpack.i.bf16 %v2645, %v2645
      %v2648 = vsel %vm1059, %v1033, 4286644096
      %v2650 = vunpack.i.l.bf16 %v2648
      %v2651 = vunpack.i.h.bf16 %v2648
      %v2652 = vmax.f32 %v2650, %v2651
      %v2653 = vrot.slane %v2652, 4
      %v2654 = vmax.f32 %v2652, %v2653
      %v2655 = vrot.slane %v2654, 2
      %v2656 = vmax.f32 %v2654, %v2655
      %v2657 = vrot.slane %v2656, 1
      %v2658 = vmax.f32 %v2656, %v2657
      %v2659 = vpack.i.bf16 %v2658, %v2658
      %v2661 = vsel %vm1059, %v1034, 4286644096
      %v2663 = vunpack.i.l.bf16 %v2661
      %v2664 = vunpack.i.h.bf16 %v2661
      %v2665 = vmax.f32 %v2663, %v2664
      %v2666 = vrot.slane %v2665, 4
      %v2667 = vmax.f32 %v2665, %v2666
      %v2668 = vrot.slane %v2667, 2
      %v2669 = vmax.f32 %v2667, %v2668
      %v2670 = vrot.slane %v2669, 1
      %v2671 = vmax.f32 %v2669, %v2670
      %v2672 = vpack.i.bf16 %v2671, %v2671
      %v2674 = vsel %vm1059, %v1049, 4286644096
      %v2676 = vunpack.i.l.bf16 %v2674
      %v2677 = vunpack.i.h.bf16 %v2674
      %v2678 = vmax.f32 %v2676, %v2677
      %v2679 = vrot.slane %v2678, 4
      %v2680 = vmax.f32 %v2678, %v2679
      %v2681 = vrot.slane %v2680, 2
      %v2682 = vmax.f32 %v2680, %v2681
      %v2683 = vrot.slane %v2682, 1
      %v2684 = vmax.f32 %v2682, %v2683
      %v2685 = vpack.i.bf16 %v2684, %v2684
      %v2687 = vsel %vm1059, %v1056, 4286644096
      %v2689 = vunpack.i.l.bf16 %v2687
      %v2690 = vunpack.i.h.bf16 %v2687
      %v2691 = vmax.f32 %v2689, %v2690
      %v2692 = vrot.slane %v2691, 4
      %v2693 = vmax.f32 %v2691, %v2692
      %v2694 = vrot.slane %v2693, 2
      %v2695 = vmax.f32 %v2693, %v2694
      %v2696 = vrot.slane %v2695, 1
      %v2697 = vmax.f32 %v2695, %v2696
      %v2698 = vpack.i.bf16 %v2697, %v2697
      %v2700 = vsel %vm1059, %v1057, 4286644096
      %v2702 = vunpack.i.l.bf16 %v2700
      %v2703 = vunpack.i.h.bf16 %v2700
      %v2704 = vmax.f32 %v2702, %v2703
      %v2705 = vrot.slane %v2704, 4
      %v2706 = vmax.f32 %v2704, %v2705
      %v2707 = vrot.slane %v2706, 2
      %v2708 = vmax.f32 %v2706, %v2707
      %v2709 = vrot.slane %v2708, 1
      %v2710 = vmax.f32 %v2708, %v2709
      %v2711 = vpack.i.bf16 %v2710, %v2710
      %v2713 = vsel %vm1059, %v1058, 4286644096
      %v2715 = vunpack.i.l.bf16 %v2713
      %v2716 = vunpack.i.h.bf16 %v2713
      %v2717 = vmax.f32 %v2715, %v2716
      %v2718 = vrot.slane %v2717, 4
      %v2719 = vmax.f32 %v2717, %v2718
      %v2720 = vrot.slane %v2719, 2
      %v2721 = vmax.f32 %v2719, %v2720
      %v2722 = vrot.slane %v2721, 1
      %v2723 = vmax.f32 %v2721, %v2722
      %v2724 = vpack.i.bf16 %v2723, %v2723
      %vm2725 = vcmask 31744
      %v2727 = vsel %vm2725, %v1073, 4286644096
      %v2730 = vsel %vm2725, %v1177, 4286644096
      %v2732 = vmax.bf16 %v2727, %v2730
      %v2734 = vsel %vm2725, %v1086, 4286644096
      %v2737 = vsel %vm2725, %v1190, 4286644096
      %v2739 = vmax.bf16 %v2734, %v2737
      %v2741 = vsel %vm2725, %v1099, 4286644096
      %v2744 = vsel %vm2725, %v1203, 4286644096
      %v2746 = vmax.bf16 %v2741, %v2744
      %v2748 = vsel %vm2725, %v1112, 4286644096
      %v2751 = vsel %vm2725, %v1216, 4286644096
      %v2753 = vmax.bf16 %v2748, %v2751
      %v2755 = vsel %vm2725, %v1125, 4286644096
      %v2758 = vsel %vm2725, %v1229, 4286644096
      %v2760 = vmax.bf16 %v2755, %v2758
      %v2762 = vsel %vm2725, %v1138, 4286644096
      %v2765 = vsel %vm2725, %v1242, 4286644096
      %v2767 = vmax.bf16 %v2762, %v2765
      %v2769 = vsel %vm2725, %v1151, 4286644096
      %v2772 = vsel %vm2725, %v1255, 4286644096
      %v2774 = vmax.bf16 %v2769, %v2772
      %v2776 = vsel %vm2725, %v1164, 4286644096
      %v2779 = vsel %vm2725, %v1268, 4286644096
      %v2781 = vmax.bf16 %v2776, %v2779
      %v2783 = vsel %vm2725, %v1281, 4286644096
      %v2786 = vsel %vm2725, %v1385, 4286644096
      %v2788 = vmax.bf16 %v2783, %v2786
      %v2790 = vsel %vm2725, %v1294, 4286644096
      %v2793 = vsel %vm2725, %v1398, 4286644096
      %v2795 = vmax.bf16 %v2790, %v2793
      %v2797 = vsel %vm2725, %v1307, 4286644096
      %v2800 = vsel %vm2725, %v1411, 4286644096
      %v2802 = vmax.bf16 %v2797, %v2800
      %v2804 = vsel %vm2725, %v1320, 4286644096
      %v2807 = vsel %vm2725, %v1424, 4286644096
      %v2809 = vmax.bf16 %v2804, %v2807
      %v2811 = vsel %vm2725, %v1333, 4286644096
      %v2814 = vsel %vm2725, %v1437, 4286644096
      %v2816 = vmax.bf16 %v2811, %v2814
      %v2818 = vsel %vm2725, %v1346, 4286644096
      %v2821 = vsel %vm2725, %v1450, 4286644096
      %v2823 = vmax.bf16 %v2818, %v2821
      %v2825 = vsel %vm2725, %v1359, 4286644096
      %v2828 = vsel %vm2725, %v1463, 4286644096
      %v2830 = vmax.bf16 %v2825, %v2828
      %v2832 = vsel %vm2725, %v1372, 4286644096
      %v2835 = vsel %vm2725, %v1476, 4286644096
      %v2837 = vmax.bf16 %v2832, %v2835
      %v2839 = vsel %vm2725, %v1489, 4286644096
      %v2842 = vsel %vm2725, %v1593, 4286644096
      %v2844 = vmax.bf16 %v2839, %v2842
      %v2846 = vsel %vm2725, %v1502, 4286644096
      %v2849 = vsel %vm2725, %v1606, 4286644096
      %v2851 = vmax.bf16 %v2846, %v2849
      %v2853 = vsel %vm2725, %v1515, 4286644096
      %v2856 = vsel %vm2725, %v1619, 4286644096
      %v2858 = vmax.bf16 %v2853, %v2856
      %v2860 = vsel %vm2725, %v1528, 4286644096
      %v2863 = vsel %vm2725, %v1632, 4286644096
      %v2865 = vmax.bf16 %v2860, %v2863
      %v2867 = vsel %vm2725, %v1541, 4286644096
      %v2870 = vsel %vm2725, %v1645, 4286644096
      %v2872 = vmax.bf16 %v2867, %v2870
      %v2874 = vsel %vm2725, %v1554, 4286644096
      %v2877 = vsel %vm2725, %v1658, 4286644096
      %v2879 = vmax.bf16 %v2874, %v2877
      %v2881 = vsel %vm2725, %v1567, 4286644096
      %v2884 = vsel %vm2725, %v1671, 4286644096
      %v2886 = vmax.bf16 %v2881, %v2884
      %v2888 = vsel %vm2725, %v1580, 4286644096
      %v2891 = vsel %vm2725, %v1684, 4286644096
      %v2893 = vmax.bf16 %v2888, %v2891
      %v2895 = vsel %vm2725, %v1697, 4286644096
      %v2898 = vsel %vm2725, %v1801, 4286644096
      %v2900 = vmax.bf16 %v2895, %v2898
      %v2902 = vsel %vm2725, %v1710, 4286644096
      %v2905 = vsel %vm2725, %v1814, 4286644096
      %v2907 = vmax.bf16 %v2902, %v2905
      %v2909 = vsel %vm2725, %v1723, 4286644096
      %v2912 = vsel %vm2725, %v1827, 4286644096
      %v2914 = vmax.bf16 %v2909, %v2912
      %v2916 = vsel %vm2725, %v1736, 4286644096
      %v2919 = vsel %vm2725, %v1840, 4286644096
      %v2921 = vmax.bf16 %v2916, %v2919
      %v2923 = vsel %vm2725, %v1749, 4286644096
      %v2926 = vsel %vm2725, %v1853, 4286644096
      %v2928 = vmax.bf16 %v2923, %v2926
      %v2930 = vsel %vm2725, %v1762, 4286644096
      %v2933 = vsel %vm2725, %v1866, 4286644096
      %v2935 = vmax.bf16 %v2930, %v2933
      %v2937 = vsel %vm2725, %v1775, 4286644096
      %v2940 = vsel %vm2725, %v1879, 4286644096
      %v2942 = vmax.bf16 %v2937, %v2940
      %v2944 = vsel %vm2725, %v1788, 4286644096
      %v2947 = vsel %vm2725, %v1892, 4286644096
      %v2949 = vmax.bf16 %v2944, %v2947
      %v2951 = vsel %vm2725, %v1905, 4286644096
      %v2954 = vsel %vm2725, %v2009, 4286644096
      %v2956 = vmax.bf16 %v2951, %v2954
      %v2958 = vsel %vm2725, %v1918, 4286644096
      %v2961 = vsel %vm2725, %v2022, 4286644096
      %v2963 = vmax.bf16 %v2958, %v2961
      %v2965 = vsel %vm2725, %v1931, 4286644096
      %v2968 = vsel %vm2725, %v2035, 4286644096
      %v2970 = vmax.bf16 %v2965, %v2968
      %v2972 = vsel %vm2725, %v1944, 4286644096
      %v2975 = vsel %vm2725, %v2048, 4286644096
      %v2977 = vmax.bf16 %v2972, %v2975
      %v2979 = vsel %vm2725, %v1957, 4286644096
      %v2982 = vsel %vm2725, %v2061, 4286644096
      %v2984 = vmax.bf16 %v2979, %v2982
      %v2986 = vsel %vm2725, %v1970, 4286644096
      %v2989 = vsel %vm2725, %v2074, 4286644096
      %v2991 = vmax.bf16 %v2986, %v2989
      %v2993 = vsel %vm2725, %v1983, 4286644096
      %v2996 = vsel %vm2725, %v2087, 4286644096
      %v2998 = vmax.bf16 %v2993, %v2996
      %v3000 = vsel %vm2725, %v1996, 4286644096
      %v3003 = vsel %vm2725, %v2100, 4286644096
      %v3005 = vmax.bf16 %v3000, %v3003
      %v3007 = vsel %vm2725, %v2113, 4286644096
      %v3010 = vsel %vm2725, %v2217, 4286644096
      %v3012 = vmax.bf16 %v3007, %v3010
      %v3014 = vsel %vm2725, %v2126, 4286644096
      %v3017 = vsel %vm2725, %v2230, 4286644096
      %v3019 = vmax.bf16 %v3014, %v3017
      %v3021 = vsel %vm2725, %v2139, 4286644096
      %v3024 = vsel %vm2725, %v2243, 4286644096
      %v3026 = vmax.bf16 %v3021, %v3024
      %v3028 = vsel %vm2725, %v2152, 4286644096
      %v3031 = vsel %vm2725, %v2256, 4286644096
      %v3033 = vmax.bf16 %v3028, %v3031
      %v3035 = vsel %vm2725, %v2165, 4286644096
      %v3038 = vsel %vm2725, %v2269, 4286644096
      %v3040 = vmax.bf16 %v3035, %v3038
      %v3042 = vsel %vm2725, %v2178, 4286644096
      %v3045 = vsel %vm2725, %v2282, 4286644096
      %v3047 = vmax.bf16 %v3042, %v3045
      %v3049 = vsel %vm2725, %v2191, 4286644096
      %v3052 = vsel %vm2725, %v2295, 4286644096
      %v3054 = vmax.bf16 %v3049, %v3052
      %v3056 = vsel %vm2725, %v2204, 4286644096
      %v3059 = vsel %vm2725, %v2308, 4286644096
      %v3061 = vmax.bf16 %v3056, %v3059
      %v3063 = vsel %vm2725, %v2321, 4286644096
      %v3066 = vsel %vm2725, %v2425, 4286644096
      %v3068 = vmax.bf16 %v3063, %v3066
      %v3070 = vsel %vm2725, %v2334, 4286644096
      %v3073 = vsel %vm2725, %v2438, 4286644096
      %v3075 = vmax.bf16 %v3070, %v3073
      %v3077 = vsel %vm2725, %v2347, 4286644096
      %v3080 = vsel %vm2725, %v2451, 4286644096
      %v3082 = vmax.bf16 %v3077, %v3080
      %v3084 = vsel %vm2725, %v2360, 4286644096
      %v3087 = vsel %vm2725, %v2464, 4286644096
      %v3089 = vmax.bf16 %v3084, %v3087
      %v3091 = vsel %vm2725, %v2373, 4286644096
      %v3094 = vsel %vm2725, %v2477, 4286644096
      %v3096 = vmax.bf16 %v3091, %v3094
      %v3098 = vsel %vm2725, %v2386, 4286644096
      %v3101 = vsel %vm2725, %v2490, 4286644096
      %v3103 = vmax.bf16 %v3098, %v3101
      %v3105 = vsel %vm2725, %v2399, 4286644096
      %v3108 = vsel %vm2725, %v2503, 4286644096
      %v3110 = vmax.bf16 %v3105, %v3108
      %v3112 = vsel %vm2725, %v2412, 4286644096
      %v3115 = vsel %vm2725, %v2516, 4286644096
      %v3117 = vmax.bf16 %v3112, %v3115
      %v3119 = vsel %vm2725, %v2529, 4286644096
      %v3122 = vsel %vm2725, %v2633, 4286644096
      %v3124 = vmax.bf16 %v3119, %v3122
      %v3126 = vsel %vm2725, %v2542, 4286644096
      %v3129 = vsel %vm2725, %v2646, 4286644096
      %v3131 = vmax.bf16 %v3126, %v3129
      %v3133 = vsel %vm2725, %v2555, 4286644096
      %v3136 = vsel %vm2725, %v2659, 4286644096
      %v3138 = vmax.bf16 %v3133, %v3136
      %v3140 = vsel %vm2725, %v2568, 4286644096
      %v3143 = vsel %vm2725, %v2672, 4286644096
      %v3145 = vmax.bf16 %v3140, %v3143
      %v3147 = vsel %vm2725, %v2581, 4286644096
      %v3150 = vsel %vm2725, %v2685, 4286644096
      %v3152 = vmax.bf16 %v3147, %v3150
      %v3154 = vsel %vm2725, %v2594, 4286644096
      %v3157 = vsel %vm2725, %v2698, 4286644096
      %v3159 = vmax.bf16 %v3154, %v3157
      %v3161 = vsel %vm2725, %v2607, 4286644096
      %v3164 = vsel %vm2725, %v2711, 4286644096
      %v3166 = vmax.bf16 %v3161, %v3164
      %v3168 = vsel %vm2725, %v2620, 4286644096
      %v3171 = vsel %vm2725, %v2724, 4286644096
      %v3173 = vmax.bf16 %v3168, %v3171
      %vm3174 = vcmask 27648
      %3175 = vst.msk [vmem:[#allocation2] sm:$0xf] %vm3174, 0
      %3176 = vst.msk [vmem:[#allocation2 + $0x4] sm:$0x1] %vm1059, 0
      %3177 = vst.msk [vmem:[#allocation2 + $0x8] sm:$0xf] %vm3174, 0
      %3178 = vst.msk [vmem:[#allocation2 + $0xc] sm:$0x1] %vm1059, 0
      %3179 = vst.msk [vmem:[#allocation2 + $0x10] sm:$0xf] %vm3174, 0
      %3180 = vst.msk [vmem:[#allocation2 + $0x14] sm:$0x1] %vm1059, 0
      %3181 = vst.msk [vmem:[#allocation2 + $0x18] sm:$0xf] %vm3174, 0
      %3182 = vst.msk [vmem:[#allocation2 + $0x1c] sm:$0x1] %vm1059, 0
      %3183 = vst.msk [vmem:[#allocation2 + $0x20] sm:$0xf] %vm3174, 0
      %3184 = vst.msk [vmem:[#allocation2 + $0x24] sm:$0x1] %vm1059, 0
      %3185 = vst.msk [vmem:[#allocation2 + $0x28] sm:$0xf] %vm3174, 0
      %3186 = vst.msk [vmem:[#allocation2 + $0x2c] sm:$0x1] %vm1059, 0
      %3187 = vst.msk [vmem:[#allocation2 + $0x30] sm:$0xf] %vm3174, 0
      %3188 = vst.msk [vmem:[#allocation2 + $0x34] sm:$0x1] %vm1059, 0
      %3189 = vst.msk [vmem:[#allocation2 + $0x38] sm:$0xf] %vm3174, 0
      %3190 = vst.msk [vmem:[#allocation2 + $0x3c] sm:$0x1] %vm1059, 0
      %3191 = vst.msk [vmem:[#allocation2 + $0x40] sm:$0xf] %vm3174, 0
      %3192 = vst.msk [vmem:[#allocation2 + $0x44] sm:$0x1] %vm1059, 0
      %3193 = vst.msk [vmem:[#allocation2 + $0x48] sm:$0xf] %vm3174, 0
      %3194 = vst.msk [vmem:[#allocation2 + $0x4c] sm:$0x1] %vm1059, 0
      %v3259 = vunpack.c.l.b16 %v2732
      %v3260 = vunpack.c.l.b16 %v2739
      %v3261 = vunpack.c.l.b16 %v2746
      %v3262 = vunpack.c.l.b16 %v2753
      %v3263 = vunpack.c.l.b16 %v2760
      %v3264 = vunpack.c.l.b16 %v2767
      %v3265 = vunpack.c.l.b16 %v2774
      %v3266 = vunpack.c.l.b16 %v2781
      %v3267 = vunpack.c.l.b16 %v2788
      %v3268 = vunpack.c.l.b16 %v2795
      %v3269 = vunpack.c.l.b16 %v2802
      %v3270 = vunpack.c.l.b16 %v2809
      %v3271 = vunpack.c.l.b16 %v2816
      %v3272 = vunpack.c.l.b16 %v2823
      %v3273 = vunpack.c.l.b16 %v2830
      %v3274 = vunpack.c.l.b16 %v2837
      %v3275 = vunpack.c.l.b16 %v2844
      %v3276 = vunpack.c.l.b16 %v2851
      %v3277 = vunpack.c.l.b16 %v2858
      %v3278 = vunpack.c.l.b16 %v2865
      %v3279 = vunpack.c.l.b16 %v2872
      %v3280 = vunpack.c.l.b16 %v2879
      %v3281 = vunpack.c.l.b16 %v2886
      %v3282 = vunpack.c.l.b16 %v2893
      %v3283 = vunpack.c.l.b16 %v2900
      %v3284 = vunpack.c.l.b16 %v2907
      %v3285 = vunpack.c.l.b16 %v2914
      %v3286 = vunpack.c.l.b16 %v2921
      %v3287 = vunpack.c.l.b16 %v2928
      %v3288 = vunpack.c.l.b16 %v2935
      %v3289 = vunpack.c.l.b16 %v2942
      %v3290 = vunpack.c.l.b16 %v2949
      %v3291 = vunpack.c.l.b16 %v2956
      %v3292 = vunpack.c.l.b16 %v2963
      %v3293 = vunpack.c.l.b16 %v2970
      %v3294 = vunpack.c.l.b16 %v2977
      %v3295 = vunpack.c.l.b16 %v2984
      %v3296 = vunpack.c.l.b16 %v2991
      %v3297 = vunpack.c.l.b16 %v2998
      %v3298 = vunpack.c.l.b16 %v3005
      %v3299 = vunpack.c.l.b16 %v3012
      %v3300 = vunpack.c.l.b16 %v3019
      %v3301 = vunpack.c.l.b16 %v3026
      %v3302 = vunpack.c.l.b16 %v3033
      %v3303 = vunpack.c.l.b16 %v3040
      %v3304 = vunpack.c.l.b16 %v3047
      %v3305 = vunpack.c.l.b16 %v3054
      %v3306 = vunpack.c.l.b16 %v3061
      %v3307 = vunpack.c.l.b16 %v3068
      %v3308 = vunpack.c.l.b16 %v3075
      %v3309 = vunpack.c.l.b16 %v3082
      %v3310 = vunpack.c.l.b16 %v3089
      %v3311 = vunpack.c.l.b16 %v3096
      %v3312 = vunpack.c.l.b16 %v3103
      %v3313 = vunpack.c.l.b16 %v3110
      %v3314 = vunpack.c.l.b16 %v3117
      %v3315 = vunpack.c.l.b16 %v3124
      %v3316 = vunpack.c.l.b16 %v3131
      %v3317 = vunpack.c.l.b16 %v3138
      %v3318 = vunpack.c.l.b16 %v3145
      %v3319 = vunpack.c.l.b16 %v3152
      %v3320 = vunpack.c.l.b16 %v3159
      %v3321 = vunpack.c.l.b16 %v3166
      %v3322 = vunpack.c.l.b16 %v3173
      %v3323 = vpack.c.b16 %v3259, %v3259
      %v3324 = vpack.c.b16 %v3260, %v3260
      %v3325 = vpack.c.b16 %v3261, %v3261
      %v3326 = vpack.c.b16 %v3262, %v3262
      %v3327 = vpack.c.b16 %v3263, %v3263
      %v3328 = vpack.c.b16 %v3264, %v3264
      %v3329 = vpack.c.b16 %v3265, %v3265
      %v3330 = vpack.c.b16 %v3266, %v3266
      %v3331 = vpack.c.b16 %v3267, %v3267
      %v3332 = vpack.c.b16 %v3268, %v3268
      %v3333 = vpack.c.b16 %v3269, %v3269
      %v3334 = vpack.c.b16 %v3270, %v3270
      %v3335 = vpack.c.b16 %v3271, %v3271
      %v3336 = vpack.c.b16 %v3272, %v3272
      %v3337 = vpack.c.b16 %v3273, %v3273
      %v3338 = vpack.c.b16 %v3274, %v3274
      %v3339 = vpack.c.b16 %v3275, %v3275
      %v3340 = vpack.c.b16 %v3276, %v3276
      %v3341 = vpack.c.b16 %v3277, %v3277
      %v3342 = vpack.c.b16 %v3278, %v3278
      %v3343 = vpack.c.b16 %v3279, %v3279
      %v3344 = vpack.c.b16 %v3280, %v3280
      %v3345 = vpack.c.b16 %v3281, %v3281
      %v3346 = vpack.c.b16 %v3282, %v3282
      %v3347 = vpack.c.b16 %v3283, %v3283
      %v3348 = vpack.c.b16 %v3284, %v3284
      %v3349 = vpack.c.b16 %v3285, %v3285
      %v3350 = vpack.c.b16 %v3286, %v3286
      %v3351 = vpack.c.b16 %v3287, %v3287
      %v3352 = vpack.c.b16 %v3288, %v3288
      %v3353 = vpack.c.b16 %v3289, %v3289
      %v3354 = vpack.c.b16 %v3290, %v3290
      %v3355 = vpack.c.b16 %v3291, %v3291
      %v3356 = vpack.c.b16 %v3292, %v3292
      %v3357 = vpack.c.b16 %v3293, %v3293
      %v3358 = vpack.c.b16 %v3294, %v3294
      %v3359 = vpack.c.b16 %v3295, %v3295
      %v3360 = vpack.c.b16 %v3296, %v3296
      %v3361 = vpack.c.b16 %v3297, %v3297
      %v3362 = vpack.c.b16 %v3298, %v3298
      %v3363 = vpack.c.b16 %v3299, %v3299
      %v3364 = vpack.c.b16 %v3300, %v3300
      %v3365 = vpack.c.b16 %v3301, %v3301
      %v3366 = vpack.c.b16 %v3302, %v3302
      %v3367 = vpack.c.b16 %v3303, %v3303
      %v3368 = vpack.c.b16 %v3304, %v3304
      %v3369 = vpack.c.b16 %v3305, %v3305
      %v3370 = vpack.c.b16 %v3306, %v3306
      %v3371 = vpack.c.b16 %v3307, %v3307
      %v3372 = vpack.c.b16 %v3308, %v3308
      %v3373 = vpack.c.b16 %v3309, %v3309
      %v3374 = vpack.c.b16 %v3310, %v3310
      %v3375 = vpack.c.b16 %v3311, %v3311
      %v3376 = vpack.c.b16 %v3312, %v3312
      %v3377 = vpack.c.b16 %v3313, %v3313
      %v3378 = vpack.c.b16 %v3314, %v3314
      %v3379 = vpack.c.b16 %v3315, %v3315
      %v3380 = vpack.c.b16 %v3316, %v3316
      %v3381 = vpack.c.b16 %v3317, %v3317
      %v3382 = vpack.c.b16 %v3318, %v3318
      %v3383 = vpack.c.b16 %v3319, %v3319
      %v3384 = vpack.c.b16 %v3320, %v3320
      %v3385 = vpack.c.b16 %v3321, %v3321
      %v3386 = vpack.c.b16 %v3322, %v3322
      %v3387 = vunpack.c.l.b16 %v3323
      %v3388 = vunpack.c.l.b16 %v3324
      %v3389 = vunpack.c.l.b16 %v3325
      %v3390 = vunpack.c.l.b16 %v3326
      %v3391 = vunpack.c.l.b16 %v3327
      %v3392 = vunpack.c.l.b16 %v3328
      %v3393 = vunpack.c.l.b16 %v3329
      %v3394 = vunpack.c.l.b16 %v3330
      %v3395 = vunpack.c.l.b16 %v3331
      %v3396 = vunpack.c.l.b16 %v3332
      %v3397 = vunpack.c.l.b16 %v3333
      %v3398 = vunpack.c.l.b16 %v3334
      %v3399 = vunpack.c.l.b16 %v3335
      %v3400 = vunpack.c.l.b16 %v3336
      %v3401 = vunpack.c.l.b16 %v3337
      %v3402 = vunpack.c.l.b16 %v3338
      %v3403 = vunpack.c.l.b16 %v3339
      %v3404 = vunpack.c.l.b16 %v3340
      %v3405 = vunpack.c.l.b16 %v3341
      %v3406 = vunpack.c.l.b16 %v3342
      %v3407 = vunpack.c.l.b16 %v3343
      %v3408 = vunpack.c.l.b16 %v3344
      %v3409 = vunpack.c.l.b16 %v3345
      %v3410 = vunpack.c.l.b16 %v3346
      %v3411 = vunpack.c.l.b16 %v3347
      %v3412 = vunpack.c.l.b16 %v3348
      %v3413 = vunpack.c.l.b16 %v3349
      %v3414 = vunpack.c.l.b16 %v3350
      %v3415 = vunpack.c.l.b16 %v3351
      %v3416 = vunpack.c.l.b16 %v3352
      %v3417 = vunpack.c.l.b16 %v3353
      %v3418 = vunpack.c.l.b16 %v3354
      %v3419 = vunpack.c.l.b16 %v3355
      %v3420 = vunpack.c.l.b16 %v3356
      %v3421 = vunpack.c.l.b16 %v3357
      %v3422 = vunpack.c.l.b16 %v3358
      %v3423 = vunpack.c.l.b16 %v3359
      %v3424 = vunpack.c.l.b16 %v3360
      %v3425 = vunpack.c.l.b16 %v3361
      %v3426 = vunpack.c.l.b16 %v3362
      %v3427 = vunpack.c.l.b16 %v3363
      %v3428 = vunpack.c.l.b16 %v3364
      %v3429 = vunpack.c.l.b16 %v3365
      %v3430 = vunpack.c.l.b16 %v3366
      %v3431 = vunpack.c.l.b16 %v3367
      %v3432 = vunpack.c.l.b16 %v3368
      %v3433 = vunpack.c.l.b16 %v3369
      %v3434 = vunpack.c.l.b16 %v3370
      %v3435 = vunpack.c.l.b16 %v3371
      %v3436 = vunpack.c.l.b16 %v3372
      %v3437 = vunpack.c.l.b16 %v3373
      %v3438 = vunpack.c.l.b16 %v3374
      %v3439 = vunpack.c.l.b16 %v3375
      %v3440 = vunpack.c.l.b16 %v3376
      %v3441 = vunpack.c.l.b16 %v3377
      %v3442 = vunpack.c.l.b16 %v3378
      %v3443 = vunpack.c.l.b16 %v3379
      %v3444 = vunpack.c.l.b16 %v3380
      %v3445 = vunpack.c.l.b16 %v3381
      %v3446 = vunpack.c.l.b16 %v3382
      %v3447 = vunpack.c.l.b16 %v3383
      %v3448 = vunpack.c.l.b16 %v3384
      %v3449 = vunpack.c.l.b16 %v3385
      %v3450 = vunpack.c.l.b16 %v3386
      %vm3451 = vcmask 1042434
      %v3452 = vsel %vm3451, %v3388, %v3387
      %vm3453 = vcmask 1043459
      %v3454 = vsel %vm3453, %v3389, %v3452
      %vm3455 = vcmask 1044484
      %v3456 = vsel %vm3455, %v3390, %v3454
      %vm3457 = vcmask 1045509
      %v3458 = vsel %vm3457, %v3391, %v3456
      %vm3459 = vcmask 1046534
      %v3460 = vsel %vm3459, %v3392, %v3458
      %vm3461 = vcmask 1047559
      %v3462 = vsel %vm3461, %v3393, %v3460
      %v3463 = vsel %vm3451, %v3396, %v3395
      %v3464 = vsel %vm3453, %v3397, %v3463
      %v3465 = vsel %vm3455, %v3398, %v3464
      %v3466 = vsel %vm3457, %v3399, %v3465
      %v3467 = vsel %vm3459, %v3400, %v3466
      %v3468 = vsel %vm3461, %v3401, %v3467
      %v3469 = vsel %vm3451, %v3404, %v3403
      %v3470 = vsel %vm3453, %v3405, %v3469
      %v3471 = vsel %vm3455, %v3406, %v3470
      %v3472 = vsel %vm3457, %v3407, %v3471
      %v3473 = vsel %vm3459, %v3408, %v3472
      %v3474 = vsel %vm3461, %v3409, %v3473
      %v3475 = vsel %vm3451, %v3412, %v3411
      %v3476 = vsel %vm3453, %v3413, %v3475
      %v3477 = vsel %vm3455, %v3414, %v3476
      %v3478 = vsel %vm3457, %v3415, %v3477
      %v3479 = vsel %vm3459, %v3416, %v3478
      %v3480 = vsel %vm3461, %v3417, %v3479
      %v3481 = vsel %vm3451, %v3420, %v3419
      %v3482 = vsel %vm3453, %v3421, %v3481
      %v3483 = vsel %vm3455, %v3422, %v3482
      %v3484 = vsel %vm3457, %v3423, %v3483
      %v3485 = vsel %vm3459, %v3424, %v3484
      %v3486 = vsel %vm3461, %v3425, %v3485
      %v3487 = vsel %vm3451, %v3428, %v3427
      %v3488 = vsel %vm3453, %v3429, %v3487
      %v3489 = vsel %vm3455, %v3430, %v3488
      %v3490 = vsel %vm3457, %v3431, %v3489
      %v3491 = vsel %vm3459, %v3432, %v3490
      %v3492 = vsel %vm3461, %v3433, %v3491
      %v3493 = vsel %vm3451, %v3436, %v3435
      %v3494 = vsel %vm3453, %v3437, %v3493
      %v3495 = vsel %vm3455, %v3438, %v3494
      %v3496 = vsel %vm3457, %v3439, %v3495
      %v3497 = vsel %vm3459, %v3440, %v3496
      %v3498 = vsel %vm3461, %v3441, %v3497
      %v3499 = vsel %vm3451, %v3444, %v3443
      %v3500 = vsel %vm3453, %v3445, %v3499
      %v3501 = vsel %vm3455, %v3446, %v3500
      %v3502 = vsel %vm3457, %v3447, %v3501
      %v3503 = vsel %vm3459, %v3448, %v3502
      %v3504 = vsel %vm3461, %v3449, %v3503
      %v3505 = vpack.c.b16 %v3462, %v3462
      %v3506 = vpack.c.b16 %v3394, %v3394
      %v3507 = vpack.c.b16 %v3468, %v3468
      %v3508 = vpack.c.b16 %v3402, %v3402
      %v3509 = vpack.c.b16 %v3474, %v3474
      %v3510 = vpack.c.b16 %v3410, %v3410
      %v3511 = vpack.c.b16 %v3480, %v3480
      %v3512 = vpack.c.b16 %v3418, %v3418
      %v3513 = vpack.c.b16 %v3486, %v3486
      %v3514 = vpack.c.b16 %v3426, %v3426
      %v3515 = vpack.c.b16 %v3492, %v3492
      %v3516 = vpack.c.b16 %v3434, %v3434
      %v3517 = vpack.c.b16 %v3498, %v3498
      %v3518 = vpack.c.b16 %v3442, %v3442
      %v3519 = vpack.c.b16 %v3504, %v3504
      %v3520 = vpack.c.b16 %v3450, %v3450
      %s3537 = scalar_lea.vmem [#allocation2], 8
      %vm3538 = vcmask 27648
      %vm3539 = vsmask.f32 7938
      %vm3540 = vmand %vm3538, %vm3539
      %v3541 = vld [vmem:[%s3537] sm:$0xf]
      %v3542 = vsel %vm3540, %v3505, %v3541
      %3543 = vst [vmem:[%s3537] sm:$0xf] %v3542
      %vm3544 = vcmask 24576
      %vm3545 = vsmask.f32 256
      %vm3546 = vmand %vm3544, %vm3545
      %v3547 = vld [vmem:[%s3537 + $0x4] sm:$0x1]
      %v3548 = vsel %vm3546, %v3506, %v3547
      %3549 = vst [vmem:[%s3537 + $0x4] sm:$0x1] %v3548
      %v3550 = vld [vmem:[%s3537 + $0x8] sm:$0xf]
      %v3551 = vsel %vm3540, %v3507, %v3550
      %3552 = vst [vmem:[%s3537 + $0x8] sm:$0xf] %v3551
      %v3553 = vld [vmem:[%s3537 + $0xc] sm:$0x1]
      %v3554 = vsel %vm3546, %v3508, %v3553
      %3555 = vst [vmem:[%s3537 + $0xc] sm:$0x1] %v3554
      %v3556 = vld [vmem:[%s3537 + $0x10] sm:$0xf]
      %v3557 = vsel %vm3540, %v3509, %v3556
      %3558 = vst [vmem:[%s3537 + $0x10] sm:$0xf] %v3557
      %v3559 = vld [vmem:[%s3537 + $0x14] sm:$0x1]
      %v3560 = vsel %vm3546, %v3510, %v3559
      %3561 = vst [vmem:[%s3537 + $0x14] sm:$0x1] %v3560
      %v3562 = vld [vmem:[%s3537 + $0x18] sm:$0xf]
      %v3563 = vsel %vm3540, %v3511, %v3562
      %3564 = vst [vmem:[%s3537 + $0x18] sm:$0xf] %v3563
      %v3565 = vld [vmem:[%s3537 + $0x1c] sm:$0x1]
      %v3566 = vsel %vm3546, %v3512, %v3565
      %3567 = vst [vmem:[%s3537 + $0x1c] sm:$0x1] %v3566
      %v3568 = vld [vmem:[%s3537 + $0x20] sm:$0xf]
      %v3569 = vsel %vm3540, %v3513, %v3568
      %3570 = vst [vmem:[%s3537 + $0x20] sm:$0xf] %v3569
      %v3571 = vld [vmem:[%s3537 + $0x24] sm:$0x1]
      %v3572 = vsel %vm3546, %v3514, %v3571
      %3573 = vst [vmem:[%s3537 + $0x24] sm:$0x1] %v3572
      %v3574 = vld [vmem:[%s3537 + $0x28] sm:$0xf]
      %v3575 = vsel %vm3540, %v3515, %v3574
      %3576 = vst [vmem:[%s3537 + $0x28] sm:$0xf] %v3575
      %v3577 = vld [vmem:[%s3537 + $0x2c] sm:$0x1]
      %v3578 = vsel %vm3546, %v3516, %v3577
      %3579 = vst [vmem:[%s3537 + $0x2c] sm:$0x1] %v3578
      %v3580 = vld [vmem:[%s3537 + $0x30] sm:$0xf]
      %v3581 = vsel %vm3540, %v3517, %v3580
      %3582 = vst [vmem:[%s3537 + $0x30] sm:$0xf] %v3581
      %v3583 = vld [vmem:[%s3537 + $0x34] sm:$0x1]
      %v3584 = vsel %vm3546, %v3518, %v3583
      %3585 = vst [vmem:[%s3537 + $0x34] sm:$0x1] %v3584
      %v3586 = vld [vmem:[%s3537 + $0x38] sm:$0xf]
      %v3587 = vsel %vm3540, %v3519, %v3586
      %3588 = vst [vmem:[%s3537 + $0x38] sm:$0xf] %v3587
      %v3589 = vld [vmem:[%s3537 + $0x3c] sm:$0x1]
      %v3590 = vsel %vm3546, %v3520, %v3589
      %3591 = vst [vmem:[%s3537 + $0x3c] sm:$0x1] %v3590
      %v3592 = vld [vmem:[#allocation2] sm:$0xf]
      %v3593 = vld [vmem:[#allocation2 + $0x8] sm:$0xf]
      %v3594 = vld [vmem:[#allocation2 + $0x10] sm:$0xf]
      %v3595 = vld [vmem:[#allocation2 + $0x18] sm:$0xf]
      %v3596 = vld [vmem:[#allocation2 + $0x20] sm:$0xf]
      %v3597 = vld [vmem:[#allocation2 + $0x28] sm:$0xf]
      %v3598 = vld [vmem:[#allocation2 + $0x30] sm:$0xf]
      %v3599 = vld [vmem:[#allocation2 + $0x38] sm:$0xf]
      %v3600 = vld [vmem:[#allocation2 + $0x4] sm:$0x1]
      %v3601 = vld [vmem:[#allocation2 + $0xc] sm:$0x1]
      %v3602 = vld [vmem:[#allocation2 + $0x14] sm:$0x1]
      %v3603 = vld [vmem:[#allocation2 + $0x1c] sm:$0x1]
      %v3604 = vld [vmem:[#allocation2 + $0x24] sm:$0x1]
      %v3605 = vld [vmem:[#allocation2 + $0x2c] sm:$0x1]
      %v3606 = vld [vmem:[#allocation2 + $0x34] sm:$0x1]
      %v3607 = vld [vmem:[#allocation2 + $0x3c] sm:$0x1]
      %v3608 = vld [vmem:[#allocation2] sm:$0xe]
      %v3609 = vld [vmem:[#allocation2 + $0x8] sm:$0xe]
      %v3610 = vld [vmem:[#allocation2 + $0x10] sm:$0xe]
      %v3611 = vld [vmem:[#allocation2 + $0x18] sm:$0xe]
      %v3612 = vld [vmem:[#allocation2 + $0x20] sm:$0xe]
      %v3613 = vld [vmem:[#allocation2 + $0x28] sm:$0xe]
      %v3614 = vld [vmem:[#allocation2 + $0x30] sm:$0xe]
      %v3615 = vld [vmem:[#allocation2 + $0x38] sm:$0xe]
      %v3632 = vunpack.c.l.b16 %v3592
      %v3633 = vunpack.c.l.b16 %v3600
      %v3634 = vunpack.c.l.b16 %v3593
      %v3635 = vunpack.c.l.b16 %v3601
      %v3636 = vunpack.c.l.b16 %v3594
      %v3637 = vunpack.c.l.b16 %v3602
      %v3638 = vunpack.c.l.b16 %v3595
      %v3639 = vunpack.c.l.b16 %v3603
      %v3640 = vunpack.c.l.b16 %v3596
      %v3641 = vunpack.c.l.b16 %v3604
      %v3642 = vunpack.c.l.b16 %v3597
      %v3643 = vunpack.c.l.b16 %v3605
      %v3644 = vunpack.c.l.b16 %v3598
      %v3645 = vunpack.c.l.b16 %v3606
      %v3646 = vunpack.c.l.b16 %v3599
      %v3647 = vunpack.c.l.b16 %v3607
      %v3648 = vpack.c.b16 %v3633, %v3632
      %v3649 = vpack.c.b16 %v3635, %v3634
      %v3650 = vpack.c.b16 %v3637, %v3636
      %v3651 = vpack.c.b16 %v3639, %v3638
      %v3652 = vpack.c.b16 %v3641, %v3640
      %v3653 = vpack.c.b16 %v3643, %v3642
      %v3654 = vpack.c.b16 %v3645, %v3644
      %v3655 = vpack.c.b16 %v3647, %v3646
      %v3657 = vshrl.u32 %v3648, 16
      %v3659 = vshll.u32 %v3648, 16
      %v3661 = vrot.slane %v3659, 1
      %v3662 = vor.u32 %v3657, %v3661
      %v3664 = vshrl.u32 %v3649, 16
      %v3666 = vshll.u32 %v3649, 16
      %v3668 = vrot.slane %v3666, 1
      %v3669 = vor.u32 %v3664, %v3668
      %v3671 = vshrl.u32 %v3650, 16
      %v3673 = vshll.u32 %v3650, 16
      %v3675 = vrot.slane %v3673, 1
      %v3676 = vor.u32 %v3671, %v3675
      %v3678 = vshrl.u32 %v3651, 16
      %v3680 = vshll.u32 %v3651, 16
      %v3682 = vrot.slane %v3680, 1
      %v3683 = vor.u32 %v3678, %v3682
      %v3685 = vshrl.u32 %v3652, 16
      %v3687 = vshll.u32 %v3652, 16
      %v3689 = vrot.slane %v3687, 1
      %v3690 = vor.u32 %v3685, %v3689
      %v3692 = vshrl.u32 %v3653, 16
      %v3694 = vshll.u32 %v3653, 16
      %v3696 = vrot.slane %v3694, 1
      %v3697 = vor.u32 %v3692, %v3696
      %v3699 = vshrl.u32 %v3654, 16
      %v3701 = vshll.u32 %v3654, 16
      %v3703 = vrot.slane %v3701, 1
      %v3704 = vor.u32 %v3699, %v3703
      %v3706 = vshrl.u32 %v3655, 16
      %v3708 = vshll.u32 %v3655, 16
      %v3710 = vrot.slane %v3708, 1
      %v3711 = vor.u32 %v3706, %v3710
      %3712 = vrot.lane.b32.xlu0 %v3662, 4
      %v3713 = vpop.permute.xlu0 %3712
      %3714 = vrot.lane.b32.xlu0 %v3669, 4
      %v3715 = vpop.permute.xlu0 %3714
      %3716 = vrot.lane.b32.xlu0 %v3676, 4
      %v3717 = vpop.permute.xlu0 %3716
      %3718 = vrot.lane.b32.xlu0 %v3683, 4
      %v3719 = vpop.permute.xlu0 %3718
      %3720 = vrot.lane.b32.xlu0 %v3690, 4
      %v3721 = vpop.permute.xlu0 %3720
      %3722 = vrot.lane.b32.xlu0 %v3697, 4
      %v3723 = vpop.permute.xlu0 %3722
      %3724 = vrot.lane.b32.xlu0 %v3704, 4
      %v3725 = vpop.permute.xlu0 %3724
      %3726 = vrot.lane.b32.xlu0 %v3711, 4
      %v3727 = vpop.permute.xlu0 %3726
      %v3736 = vunpack.c.l.b16 %v3608
      %v3737 = vunpack.c.l.b16 %v3609
      %v3738 = vunpack.c.l.b16 %v3610
      %v3739 = vunpack.c.l.b16 %v3611
      %v3740 = vunpack.c.l.b16 %v3612
      %v3741 = vunpack.c.l.b16 %v3613
      %v3742 = vunpack.c.l.b16 %v3614
      %v3743 = vunpack.c.l.b16 %v3615
      %v3744 = vpack.c.b16 %v3633, %v3736
      %v3745 = vpack.c.b16 %v3635, %v3737
      %v3746 = vpack.c.b16 %v3637, %v3738
      %v3747 = vpack.c.b16 %v3639, %v3739
      %v3748 = vpack.c.b16 %v3641, %v3740
      %v3749 = vpack.c.b16 %v3643, %v3741
      %v3750 = vpack.c.b16 %v3645, %v3742
      %v3751 = vpack.c.b16 %v3647, %v3743
      %v3752 = vrot.slane %v3744, 1
      %v3753 = vrot.slane %v3745, 1
      %v3754 = vrot.slane %v3746, 1
      %v3755 = vrot.slane %v3747, 1
      %v3756 = vrot.slane %v3748, 1
      %v3757 = vrot.slane %v3749, 1
      %v3758 = vrot.slane %v3750, 1
      %v3759 = vrot.slane %v3751, 1
      %3760 = vrot.lane.b32.xlu0 %v3752, 8
      %v3761 = vpop.permute.xlu0 %3760
      %3762 = vrot.lane.b32.xlu0 %v3753, 8
      %v3763 = vpop.permute.xlu0 %3762
      %3764 = vrot.lane.b32.xlu0 %v3754, 8
      %v3765 = vpop.permute.xlu0 %3764
      %3766 = vrot.lane.b32.xlu0 %v3755, 8
      %v3767 = vpop.permute.xlu0 %3766
      %3768 = vrot.lane.b32.xlu0 %v3756, 8
      %v3769 = vpop.permute.xlu0 %3768
      %3770 = vrot.lane.b32.xlu0 %v3757, 8
      %v3771 = vpop.permute.xlu0 %3770
      %3772 = vrot.lane.b32.xlu0 %v3758, 8
      %v3773 = vpop.permute.xlu0 %3772
      %3774 = vrot.lane.b32.xlu0 %v3759, 8
      %v3775 = vpop.permute.xlu0 %3774
      %v3778 = vsel %vm2725, %v3592, %v3713
      %v3781 = vsel %vm2725, %v3593, %v3715
      %v3784 = vsel %vm2725, %v3594, %v3717
      %v3787 = vsel %vm2725, %v3595, %v3719
      %v3790 = vsel %vm2725, %v3596, %v3721
      %v3793 = vsel %vm2725, %v3597, %v3723
      %v3796 = vsel %vm2725, %v3598, %v3725
      %v3799 = vsel %vm2725, %v3599, %v3727
      %vm3800 = vcmask 64512
      %v3802 = vsel %vm3800, %v3778, %v3761
      %v3804 = vsel %vm3800, %v3781, %v3763
      %v3806 = vsel %vm3800, %v3784, %v3765
      %v3808 = vsel %vm3800, %v3787, %v3767
      %v3810 = vsel %vm3800, %v3790, %v3769
      %v3812 = vsel %vm3800, %v3793, %v3771
      %v3814 = vsel %vm3800, %v3796, %v3773
      %v3816 = vsel %vm3800, %v3799, %v3775
      %v3817 = vld [vmem:[%s1] sm:$0xf]
      %v3818 = vld [vmem:[%s1 + $0x4] sm:$0x3]
      %v3819 = vld [vmem:[%s3537] sm:$0xf]
      %v3820 = vld [vmem:[%s3537 + $0x8] sm:$0xf]
      %v3821 = vld [vmem:[%s3537 + $0x10] sm:$0xf]
      %v3822 = vld [vmem:[%s3537 + $0x18] sm:$0xf]
      %v3823 = vld [vmem:[%s3537 + $0x20] sm:$0xf]
      %v3824 = vld [vmem:[%s3537 + $0x28] sm:$0xf]
      %v3825 = vld [vmem:[%s3537 + $0x30] sm:$0xf]
      %v3826 = vld [vmem:[%s3537 + $0x38] sm:$0xf]
      %v3827 = vld [vmem:[%s3537 + $0x4] sm:$0x1]
      %v3828 = vld [vmem:[%s3537 + $0xc] sm:$0x1]
      %v3829 = vld [vmem:[%s3537 + $0x14] sm:$0x1]
      %v3830 = vld [vmem:[%s3537 + $0x1c] sm:$0x1]
      %v3831 = vld [vmem:[%s3537 + $0x24] sm:$0x1]
      %v3832 = vld [vmem:[%s3537 + $0x2c] sm:$0x1]
      %v3833 = vld [vmem:[%s3537 + $0x34] sm:$0x1]
      %v3834 = vld [vmem:[%s3537 + $0x3c] sm:$0x1]
      %v3835 = vld [vmem:[%s3537] sm:$0xe]
      %v3836 = vld [vmem:[%s3537 + $0x8] sm:$0xe]
      %v3837 = vld [vmem:[%s3537 + $0x10] sm:$0xe]
      %v3838 = vld [vmem:[%s3537 + $0x18] sm:$0xe]
      %v3839 = vld [vmem:[%s3537 + $0x20] sm:$0xe]
      %v3840 = vld [vmem:[%s3537 + $0x28] sm:$0xe]
      %v3841 = vld [vmem:[%s3537 + $0x30] sm:$0xe]
      %v3842 = vld [vmem:[%s3537 + $0x38] sm:$0xe]
      %v3859 = vunpack.c.l.b16 %v3819
      %v3860 = vunpack.c.l.b16 %v3827
      %v3861 = vunpack.c.l.b16 %v3820
      %v3862 = vunpack.c.l.b16 %v3828
      %v3863 = vunpack.c.l.b16 %v3821
      %v3864 = vunpack.c.l.b16 %v3829
      %v3865 = vunpack.c.l.b16 %v3822
      %v3866 = vunpack.c.l.b16 %v3830
      %v3867 = vunpack.c.l.b16 %v3823
      %v3868 = vunpack.c.l.b16 %v3831
      %v3869 = vunpack.c.l.b16 %v3824
      %v3870 = vunpack.c.l.b16 %v3832
      %v3871 = vunpack.c.l.b16 %v3825
      %v3872 = vunpack.c.l.b16 %v3833
      %v3873 = vunpack.c.l.b16 %v3826
      %v3874 = vunpack.c.l.b16 %v3834
      %v3875 = vpack.c.b16 %v3860, %v3859
      %v3876 = vpack.c.b16 %v3862, %v3861
      %v3877 = vpack.c.b16 %v3864, %v3863
      %v3878 = vpack.c.b16 %v3866, %v3865
      %v3879 = vpack.c.b16 %v3868, %v3867
      %v3880 = vpack.c.b16 %v3870, %v3869
      %v3881 = vpack.c.b16 %v3872, %v3871
      %v3882 = vpack.c.b16 %v3874, %v3873
      %v3884 = vshrl.u32 %v3875, 16
      %v3886 = vshll.u32 %v3875, 16
      %v3888 = vrot.slane %v3886, 1
      %v3889 = vor.u32 %v3884, %v3888
      %v3891 = vshrl.u32 %v3876, 16
      %v3893 = vshll.u32 %v3876, 16
      %v3895 = vrot.slane %v3893, 1
      %v3896 = vor.u32 %v3891, %v3895
      %v3898 = vshrl.u32 %v3877, 16
      %v3900 = vshll.u32 %v3877, 16
      %v3902 = vrot.slane %v3900, 1
      %v3903 = vor.u32 %v3898, %v3902
      %v3905 = vshrl.u32 %v3878, 16
      %v3907 = vshll.u32 %v3878, 16
      %v3909 = vrot.slane %v3907, 1
      %v3910 = vor.u32 %v3905, %v3909
      %v3912 = vshrl.u32 %v3879, 16
      %v3914 = vshll.u32 %v3879, 16
      %v3916 = vrot.slane %v3914, 1
      %v3917 = vor.u32 %v3912, %v3916
      %v3919 = vshrl.u32 %v3880, 16
      %v3921 = vshll.u32 %v3880, 16
      %v3923 = vrot.slane %v3921, 1
      %v3924 = vor.u32 %v3919, %v3923
      %v3926 = vshrl.u32 %v3881, 16
      %v3928 = vshll.u32 %v3881, 16
      %v3930 = vrot.slane %v3928, 1
      %v3931 = vor.u32 %v3926, %v3930
      %v3933 = vshrl.u32 %v3882, 16
      %v3935 = vshll.u32 %v3882, 16
      %v3937 = vrot.slane %v3935, 1
      %v3938 = vor.u32 %v3933, %v3937
      %3939 = vrot.lane.b32.xlu0 %v3889, 4
      %v3940 = vpop.permute.xlu0 %3939
      %3941 = vrot.lane.b32.xlu0 %v3896, 4
      %v3942 = vpop.permute.xlu0 %3941
      %3943 = vrot.lane.b32.xlu0 %v3903, 4
      %v3944 = vpop.permute.xlu0 %3943
      %3945 = vrot.lane.b32.xlu0 %v3910, 4
      %v3946 = vpop.permute.xlu0 %3945
      %3947 = vrot.lane.b32.xlu0 %v3917, 4
      %v3948 = vpop.permute.xlu0 %3947
      %3949 = vrot.lane.b32.xlu0 %v3924, 4
      %v3950 = vpop.permute.xlu0 %3949
      %3951 = vrot.lane.b32.xlu0 %v3931, 4
      %v3952 = vpop.permute.xlu0 %3951
      %3953 = vrot.lane.b32.xlu0 %v3938, 4
      %v3954 = vpop.permute.xlu0 %3953
      %v3963 = vunpack.c.l.b16 %v3835
      %v3964 = vunpack.c.l.b16 %v3836
      %v3965 = vunpack.c.l.b16 %v3837
      %v3966 = vunpack.c.l.b16 %v3838
      %v3967 = vunpack.c.l.b16 %v3839
      %v3968 = vunpack.c.l.b16 %v3840
      %v3969 = vunpack.c.l.b16 %v3841
      %v3970 = vunpack.c.l.b16 %v3842
      %v3971 = vpack.c.b16 %v3860, %v3963
      %v3972 = vpack.c.b16 %v3862, %v3964
      %v3973 = vpack.c.b16 %v3864, %v3965
      %v3974 = vpack.c.b16 %v3866, %v3966
      %v3975 = vpack.c.b16 %v3868, %v3967
      %v3976 = vpack.c.b16 %v3870, %v3968
      %v3977 = vpack.c.b16 %v3872, %v3969
      %v3978 = vpack.c.b16 %v3874, %v3970
      %v3979 = vrot.slane %v3971, 1
      %v3980 = vrot.slane %v3972, 1
      %v3981 = vrot.slane %v3973, 1
      %v3982 = vrot.slane %v3974, 1
      %v3983 = vrot.slane %v3975, 1
      %v3984 = vrot.slane %v3976, 1
      %v3985 = vrot.slane %v3977, 1
      %v3986 = vrot.slane %v3978, 1
      %3987 = vrot.lane.b32.xlu0 %v3979, 8
      %v3988 = vpop.permute.xlu0 %3987
      %3989 = vrot.lane.b32.xlu0 %v3980, 8
      %v3990 = vpop.permute.xlu0 %3989
      %3991 = vrot.lane.b32.xlu0 %v3981, 8
      %v3992 = vpop.permute.xlu0 %3991
      %3993 = vrot.lane.b32.xlu0 %v3982, 8
      %v3994 = vpop.permute.xlu0 %3993
      %3995 = vrot.lane.b32.xlu0 %v3983, 8
      %v3996 = vpop.permute.xlu0 %3995
      %3997 = vrot.lane.b32.xlu0 %v3984, 8
      %v3998 = vpop.permute.xlu0 %3997
      %3999 = vrot.lane.b32.xlu0 %v3985, 8
      %v4000 = vpop.permute.xlu0 %3999
      %4001 = vrot.lane.b32.xlu0 %v3986, 8
      %v4002 = vpop.permute.xlu0 %4001
      %v4005 = vsel %vm2725, %v3819, %v3940
      %v4008 = vsel %vm2725, %v3820, %v3942
      %v4011 = vsel %vm2725, %v3821, %v3944
      %v4014 = vsel %vm2725, %v3822, %v3946
      %v4017 = vsel %vm2725, %v3823, %v3948
      %v4020 = vsel %vm2725, %v3824, %v3950
      %v4023 = vsel %vm2725, %v3825, %v3952
      %v4026 = vsel %vm2725, %v3826, %v3954
      %v4028 = vsel %vm3800, %v4005, %v3988
      %v4030 = vsel %vm3800, %v4008, %v3990
      %v4032 = vsel %vm3800, %v4011, %v3992
      %v4034 = vsel %vm3800, %v4014, %v3994
      %v4036 = vsel %vm3800, %v4017, %v3996
      %v4038 = vsel %vm3800, %v4020, %v3998
      %v4040 = vsel %vm3800, %v4023, %v4000
      %v4042 = vsel %vm3800, %v4026, %v4002
      %s4043 = scalar_lea.vmem %s1, 8
      %v4044 = vld [vmem:[%s4043] sm:$0xf]
      %v4045 = vld [vmem:[%s4043 + $0x4] sm:$0x3]
      %v4054 = vunpack.c.l.b16 %v4028
      %v4055 = vunpack.c.l.b16 %v4030
      %v4056 = vunpack.c.l.b16 %v4032
      %v4057 = vunpack.c.l.b16 %v4034
      %v4058 = vunpack.c.l.b16 %v4036
      %v4059 = vunpack.c.l.b16 %v4038
      %v4060 = vunpack.c.l.b16 %v4040
      %v4061 = vunpack.c.l.b16 %v4042
      %v4062 = vpack.c.b16 %v4055, %v4054
      %v4063 = vpack.c.b16 %v4057, %v4056
      %v4064 = vpack.c.b16 %v4059, %v4058
      %v4065 = vpack.c.b16 %v4061, %v4060
      %v4068 = vunpack.c.l.b16 %v4044
      %v4069 = vunpack.c.l.b16 %v4045
      %v4070 = vpack.c.b16 %v4069, %v4068
      %vm4071 = vcmask 97280
      %v4073 = vsel %vm4071, %v4062, 0
      %v4076 = vsel %vm4071, %v4063, 0
      %v4079 = vsel %vm4071, %v4064, 0
      %v4082 = vsel %vm4071, %v4065, 0
      %vm4084 = vcmask 1045504
      %v4086 = vsel %vm4084, %v4070, 0
      %4088 = vmatprep.subr.bf16.mxu0 0
      %4089 = vmatpush1.bf16.msra.mxu0 %v4086
      %4090 = vmatprep.subr.bf16.mxu0 0
      %4091 = vmatpush1.bf16.msra.mxu0 0
      %4092 = vmatprep.subr.bf16.mxu0 0
      %4093 = vmatpush1.bf16.msra.mxu0 0
      %4094 = vmatprep.subr.bf16.mxu0 0
      %4095 = vmatpush1.bf16.msra.mxu0 0
      %4096 = vmatprep.subr.bf16.mxu0 0
      %4097 = vmatpush1.bf16.msra.mxu0 0
      %4098 = vmatprep.subr.bf16.mxu0 0
      %4099 = vmatpush1.bf16.msra.mxu0 0
      %4100 = vmatprep.subr.bf16.mxu0 0
      %4101 = vmatpush1.bf16.msra.mxu0 0
      %4102 = vmatprep.subr.bf16.mxu0 0
      %4103 = vmatpush1.bf16.msra.mxu0 0
      %4104 = vmatprep.subr.bf16.mxu0 0
      %4105 = vmatpush1.bf16.msra.mxu0 0
      %4106 = vmatprep.subr.bf16.mxu0 0
      %4107 = vmatpush1.bf16.msra.mxu0 0
      %4108 = vmatprep.subr.bf16.mxu0 0
      %4109 = vmatpush1.bf16.msra.mxu0 0
      %4110 = vmatprep.subr.bf16.mxu0 0
      %4111 = vmatpush1.bf16.msra.mxu0 0
      %4112 = vmatprep.subr.bf16.mxu0 0
      %4113 = vmatpush1.bf16.msra.mxu0 0
      %4114 = vmatprep.subr.bf16.mxu0 0
      %4115 = vmatpush1.bf16.msra.mxu0 0
      %4116 = vmatprep.subr.bf16.mxu0 0
      %4117 = vmatpush1.bf16.msra.mxu0 0
      %4118 = vmatprep.subr.bf16.mxu0 0
      %4119 = vmatpush1.bf16.msra.mxu0 0
      %4120 = vmatprep.mubr.bf16.mxu0 0
      %4121 = vmatmul.mubr.bf16.gmra.mrb[0].mxu0 %v4073
      %v4122 = vpop.f32.mrb[0].mxu0
      %v4123 = vadd.f32 0.0, %v4122
      %v4124 = vpop.f32.mrb[0].mxu0
      %v4125 = vpop.f32.mrb[0].mxu0
      %v4126 = vadd.f32 0.0, %v4125
      %v4127 = vpop.f32.mrb[0].mxu0
      %4128 = vmatprep.mubr.bf16.mxu0 0
      %4129 = vmatmul.mubr.bf16.gmra.mrb[0].mxu0 %v4076
      %v4130 = vpop.f32.mrb[0].mxu0
      %v4131 = vadd.f32 0.0, %v4130
      %v4132 = vpop.f32.mrb[0].mxu0
      %v4133 = vpop.f32.mrb[0].mxu0
      %v4134 = vadd.f32 0.0, %v4133
      %v4135 = vpop.f32.mrb[0].mxu0
      %4136 = vmatprep.mubr.bf16.mxu0 0
      %4137 = vmatmul.mubr.bf16.gmra.mrb[0].mxu0 %v4079
      %v4138 = vpop.f32.mrb[0].mxu0
      %v4139 = vadd.f32 0.0, %v4138
      %v4140 = vpop.f32.mrb[0].mxu0
      %v4141 = vpop.f32.mrb[0].mxu0
      %v4142 = vadd.f32 0.0, %v4141
      %v4143 = vpop.f32.mrb[0].mxu0
      %4144 = vmatprep.mubr.bf16.mxu0 0
      %4145 = vmatmul.mubr.bf16.gmra.mrb[0].mxu0 %v4082
      %v4146 = vpop.f32.mrb[0].mxu0
      %v4147 = vadd.f32 0.0, %v4146
      %v4148 = vpop.f32.mrb[0].mxu0
      %v4149 = vpop.f32.mrb[0].mxu0
      %v4150 = vadd.f32 0.0, %v4149
      %v4151 = vpop.f32.mrb[0].mxu0
      %4152 = vdwg.mxu0
      %v4161 = vunpack.c.l.b16 %v3802
      %v4162 = vunpack.c.l.b16 %v3804
      %v4163 = vunpack.c.l.b16 %v3806
      %v4164 = vunpack.c.l.b16 %v3808
      %v4165 = vunpack.c.l.b16 %v3810
      %v4166 = vunpack.c.l.b16 %v3812
      %v4167 = vunpack.c.l.b16 %v3814
      %v4168 = vunpack.c.l.b16 %v3816
      %v4169 = vpack.c.b16 %v4162, %v4161
      %v4170 = vpack.c.b16 %v4164, %v4163
      %v4171 = vpack.c.b16 %v4166, %v4165
      %v4172 = vpack.c.b16 %v4168, %v4167
      %v4175 = vunpack.c.l.b16 %v3817
      %v4176 = vunpack.c.l.b16 %v3818
      %v4177 = vpack.c.b16 %v4176, %v4175
      %v4179 = vsel %vm4071, %v4169, 0
      %v4182 = vsel %vm4071, %v4170, 0
      %v4185 = vsel %vm4071, %v4171, 0
      %v4188 = vsel %vm4071, %v4172, 0
      %v4191 = vsel %vm4084, %v4177, 0
      %4193 = vmatprep.subr.bf16.mxu0 0
      %4194 = vmatpush1.bf16.msra.mxu0 %v4191
      %4195 = vmatprep.subr.bf16.mxu0 0
      %4196 = vmatpush1.bf16.msra.mxu0 0
      %4197 = vmatprep.subr.bf16.mxu0 0
      %4198 = vmatpush1.bf16.msra.mxu0 0
      %4199 = vmatprep.subr.bf16.mxu0 0
      %4200 = vmatpush1.bf16.msra.mxu0 0
      %4201 = vmatprep.subr.bf16.mxu0 0
      %4202 = vmatpush1.bf16.msra.mxu0 0
      %4203 = vmatprep.subr.bf16.mxu0 0
      %4204 = vmatpush1.bf16.msra.mxu0 0
      %4205 = vmatprep.subr.bf16.mxu0 0
      %4206 = vmatpush1.bf16.msra.mxu0 0
      %4207 = vmatprep.subr.bf16.mxu0 0
      %4208 = vmatpush1.bf16.msra.mxu0 0
      %4209 = vmatprep.subr.bf16.mxu0 0
      %4210 = vmatpush1.bf16.msra.mxu0 0
      %4211 = vmatprep.subr.bf16.mxu0 0
      %4212 = vmatpush1.bf16.msra.mxu0 0
      %4213 = vmatprep.subr.bf16.mxu0 0
      %4214 = vmatpush1.bf16.msra.mxu0 0
      %4215 = vmatprep.subr.bf16.mxu0 0
      %4216 = vmatpush1.bf16.msra.mxu0 0
      %4217 = vmatprep.subr.bf16.mxu0 0
      %4218 = vmatpush1.bf16.msra.mxu0 0
      %4219 = vmatprep.subr.bf16.mxu0 0
      %4220 = vmatpush1.bf16.msra.mxu0 0
      %4221 = vmatprep.subr.bf16.mxu0 0
      %4222 = vmatpush1.bf16.msra.mxu0 0
      %4223 = vmatprep.subr.bf16.mxu0 0
      %4224 = vmatpush1.bf16.msra.mxu0 0
      %4225 = vmatprep.mubr.bf16.mxu0 0
      %4226 = vmatmul.mubr.bf16.gmra.mrb[0].mxu0 %v4179
      %v4227 = vpop.f32.mrb[0].mxu0
      %v4228 = vadd.f32 %v4123, %v4227
      %v4229 = vpop.f32.mrb[0].mxu0
      %v4230 = vpop.f32.mrb[0].mxu0
      %v4231 = vadd.f32 %v4126, %v4230
      %v4232 = vpop.f32.mrb[0].mxu0
      %4233 = vmatprep.mubr.bf16.mxu0 0
      %4234 = vmatmul.mubr.bf16.gmra.mrb[0].mxu0 %v4182
      %v4235 = vpop.f32.mrb[0].mxu0
      %v4236 = vadd.f32 %v4131, %v4235
      %v4237 = vpop.f32.mrb[0].mxu0
      %v4238 = vpop.f32.mrb[0].mxu0
      %v4239 = vadd.f32 %v4134, %v4238
      %v4240 = vpop.f32.mrb[0].mxu0
      %4241 = vmatprep.mubr.bf16.mxu0 0
      %4242 = vmatmul.mubr.bf16.gmra.mrb[0].mxu0 %v4185
      %v4243 = vpop.f32.mrb[0].mxu0
      %v4244 = vadd.f32 %v4139, %v4243
      %v4245 = vpop.f32.mrb[0].mxu0
      %v4246 = vpop.f32.mrb[0].mxu0
      %v4247 = vadd.f32 %v4142, %v4246
      %v4248 = vpop.f32.mrb[0].mxu0
      %4249 = vmatprep.mubr.bf16.mxu0 0
      %4250 = vmatmul.mubr.bf16.gmra.mrb[0].mxu0 %v4188
      %v4251 = vpop.f32.mrb[0].mxu0
      %v4252 = vadd.f32 %v4147, %v4251
      %v4253 = vpop.f32.mrb[0].mxu0
      %v4254 = vpop.f32.mrb[0].mxu0
      %v4255 = vadd.f32 %v4150, %v4254
      %v4256 = vpop.f32.mrb[0].mxu0
      %4257 = vdwg.mxu0
      %s4258 = scalar_lea.vmem [#allocation2], 16
      %v4259 = vld [vmem:[%s4258] sm:$0xf]
      %v4260 = vld [vmem:[%s4258 + $0x8] sm:$0xf]
      %v4261 = vld [vmem:[%s4258 + $0x10] sm:$0xf]
      %v4262 = vld [vmem:[%s4258 + $0x18] sm:$0xf]
      %v4263 = vld [vmem:[%s4258 + $0x20] sm:$0xf]
      %v4264 = vld [vmem:[%s4258 + $0x28] sm:$0xf]
      %v4265 = vld [vmem:[%s4258 + $0x30] sm:$0xf]
      %v4266 = vld [vmem:[%s4258 + $0x38] sm:$0xf]
      %v4267 = vld [vmem:[%s4258 + $0x4] sm:$0x1]
      %v4268 = vld [vmem:[%s4258 + $0xc] sm:$0x1]
      %v4269 = vld [vmem:[%s4258 + $0x14] sm:$0x1]
      %v4270 = vld [vmem:[%s4258 + $0x1c] sm:$0x1]
      %v4271 = vld [vmem:[%s4258 + $0x24] sm:$0x1]
      %v4272 = vld [vmem:[%s4258 + $0x2c] sm:$0x1]
      %v4273 = vld [vmem:[%s4258 + $0x34] sm:$0x1]
      %v4274 = vld [vmem:[%s4258 + $0x3c] sm:$0x1]
      %v4275 = vld [vmem:[%s4258] sm:$0xe]
      %v4276 = vld [vmem:[%s4258 + $0x8] sm:$0xe]
      %v4277 = vld [vmem:[%s4258 + $0x10] sm:$0xe]
      %v4278 = vld [vmem:[%s4258 + $0x18] sm:$0xe]
      %v4279 = vld [vmem:[%s4258 + $0x20] sm:$0xe]
      %v4280 = vld [vmem:[%s4258 + $0x28] sm:$0xe]
      %v4281 = vld [vmem:[%s4258 + $0x30] sm:$0xe]
      %v4282 = vld [vmem:[%s4258 + $0x38] sm:$0xe]
      %v4299 = vunpack.c.l.b16 %v4259
      %v4300 = vunpack.c.l.b16 %v4267
      %v4301 = vunpack.c.l.b16 %v4260
      %v4302 = vunpack.c.l.b16 %v4268
      %v4303 = vunpack.c.l.b16 %v4261
      %v4304 = vunpack.c.l.b16 %v4269
      %v4305 = vunpack.c.l.b16 %v4262
      %v4306 = vunpack.c.l.b16 %v4270
      %v4307 = vunpack.c.l.b16 %v4263
      %v4308 = vunpack.c.l.b16 %v4271
      %v4309 = vunpack.c.l.b16 %v4264
      %v4310 = vunpack.c.l.b16 %v4272
      %v4311 = vunpack.c.l.b16 %v4265
      %v4312 = vunpack.c.l.b16 %v4273
      %v4313 = vunpack.c.l.b16 %v4266
      %v4314 = vunpack.c.l.b16 %v4274
      %v4315 = vpack.c.b16 %v4300, %v4299
      %v4316 = vpack.c.b16 %v4302, %v4301
      %v4317 = vpack.c.b16 %v4304, %v4303
      %v4318 = vpack.c.b16 %v4306, %v4305
      %v4319 = vpack.c.b16 %v4308, %v4307
      %v4320 = vpack.c.b16 %v4310, %v4309
      %v4321 = vpack.c.b16 %v4312, %v4311
      %v4322 = vpack.c.b16 %v4314, %v4313
      %v4324 = vshrl.u32 %v4315, 16
      %v4326 = vshll.u32 %v4315, 16
      %v4328 = vrot.slane %v4326, 1
      %v4329 = vor.u32 %v4324, %v4328
      %v4331 = vshrl.u32 %v4316, 16
      %v4333 = vshll.u32 %v4316, 16
      %v4335 = vrot.slane %v4333, 1
      %v4336 = vor.u32 %v4331, %v4335
      %v4338 = vshrl.u32 %v4317, 16
      %v4340 = vshll.u32 %v4317, 16
      %v4342 = vrot.slane %v4340, 1
      %v4343 = vor.u32 %v4338, %v4342
      %v4345 = vshrl.u32 %v4318, 16
      %v4347 = vshll.u32 %v4318, 16
      %v4349 = vrot.slane %v4347, 1
      %v4350 = vor.u32 %v4345, %v4349
      %v4352 = vshrl.u32 %v4319, 16
      %v4354 = vshll.u32 %v4319, 16
      %v4356 = vrot.slane %v4354, 1
      %v4357 = vor.u32 %v4352, %v4356
      %v4359 = vshrl.u32 %v4320, 16
      %v4361 = vshll.u32 %v4320, 16
      %v4363 = vrot.slane %v4361, 1
      %v4364 = vor.u32 %v4359, %v4363
      %v4366 = vshrl.u32 %v4321, 16
      %v4368 = vshll.u32 %v4321, 16
      %v4370 = vrot.slane %v4368, 1
      %v4371 = vor.u32 %v4366, %v4370
      %v4373 = vshrl.u32 %v4322, 16
      %v4375 = vshll.u32 %v4322, 16
      %v4377 = vrot.slane %v4375, 1
      %v4378 = vor.u32 %v4373, %v4377
      %4379 = vrot.lane.b32.xlu0 %v4329, 4
      %v4380 = vpop.permute.xlu0 %4379
      %4381 = vrot.lane.b32.xlu0 %v4336, 4
      %v4382 = vpop.permute.xlu0 %4381
      %4383 = vrot.lane.b32.xlu0 %v4343, 4
      %v4384 = vpop.permute.xlu0 %4383
      %4385 = vrot.lane.b32.xlu0 %v4350, 4
      %v4386 = vpop.permute.xlu0 %4385
      %4387 = vrot.lane.b32.xlu0 %v4357, 4
      %v4388 = vpop.permute.xlu0 %4387
      %4389 = vrot.lane.b32.xlu0 %v4364, 4
      %v4390 = vpop.permute.xlu0 %4389
      %4391 = vrot.lane.b32.xlu0 %v4371, 4
      %v4392 = vpop.permute.xlu0 %4391
      %4393 = vrot.lane.b32.xlu0 %v4378, 4
      %v4394 = vpop.permute.xlu0 %4393
      %v4403 = vunpack.c.l.b16 %v4275
      %v4404 = vunpack.c.l.b16 %v4276
      %v4405 = vunpack.c.l.b16 %v4277
      %v4406 = vunpack.c.l.b16 %v4278
      %v4407 = vunpack.c.l.b16 %v4279
      %v4408 = vunpack.c.l.b16 %v4280
      %v4409 = vunpack.c.l.b16 %v4281
      %v4410 = vunpack.c.l.b16 %v4282
      %v4411 = vpack.c.b16 %v4300, %v4403
      %v4412 = vpack.c.b16 %v4302, %v4404
      %v4413 = vpack.c.b16 %v4304, %v4405
      %v4414 = vpack.c.b16 %v4306, %v4406
      %v4415 = vpack.c.b16 %v4308, %v4407
      %v4416 = vpack.c.b16 %v4310, %v4408
      %v4417 = vpack.c.b16 %v4312, %v4409
      %v4418 = vpack.c.b16 %v4314, %v4410
      %v4419 = vrot.slane %v4411, 1
      %v4420 = vrot.slane %v4412, 1
      %v4421 = vrot.slane %v4413, 1
      %v4422 = vrot.slane %v4414, 1
      %v4423 = vrot.slane %v4415, 1
      %v4424 = vrot.slane %v4416, 1
      %v4425 = vrot.slane %v4417, 1
      %v4426 = vrot.slane %v4418, 1
      %4427 = vrot.lane.b32.xlu0 %v4419, 8
      %v4428 = vpop.permute.xlu0 %4427
      %4429 = vrot.lane.b32.xlu0 %v4420, 8
      %v4430 = vpop.permute.xlu0 %4429
      %4431 = vrot.lane.b32.xlu0 %v4421, 8
      %v4432 = vpop.permute.xlu0 %4431
      %4433 = vrot.lane.b32.xlu0 %v4422, 8
      %v4434 = vpop.permute.xlu0 %4433
      %4435 = vrot.lane.b32.xlu0 %v4423, 8
      %v4436 = vpop.permute.xlu0 %4435
      %4437 = vrot.lane.b32.xlu0 %v4424, 8
      %v4438 = vpop.permute.xlu0 %4437
      %4439 = vrot.lane.b32.xlu0 %v4425, 8
      %v4440 = vpop.permute.xlu0 %4439
      %4441 = vrot.lane.b32.xlu0 %v4426, 8
      %v4442 = vpop.permute.xlu0 %4441
      %v4445 = vsel %vm2725, %v4259, %v4380
      %v4448 = vsel %vm2725, %v4260, %v4382
      %v4451 = vsel %vm2725, %v4261, %v4384
      %v4454 = vsel %vm2725, %v4262, %v4386
      %v4457 = vsel %vm2725, %v4263, %v4388
      %v4460 = vsel %vm2725, %v4264, %v4390
      %v4463 = vsel %vm2725, %v4265, %v4392
      %v4466 = vsel %vm2725, %v4266, %v4394
      %v4468 = vsel %vm3800, %v4445, %v4428
      %v4470 = vsel %vm3800, %v4448, %v4430
      %v4472 = vsel %vm3800, %v4451, %v4432
      %v4474 = vsel %vm3800, %v4454, %v4434
      %v4476 = vsel %vm3800, %v4457, %v4436
      %v4478 = vsel %vm3800, %v4460, %v4438
      %v4480 = vsel %vm3800, %v4463, %v4440
      %v4482 = vsel %vm3800, %v4466, %v4442
      %s4483 = scalar_lea.vmem %s1, 16
      %v4484 = vld [vmem:[%s4483] sm:$0xf]
      %v4485 = vld [vmem:[%s4483 + $0x4] sm:$0x3]
      %v4494 = vunpack.c.l.b16 %v4468
      %v4495 = vunpack.c.l.b16 %v4470
      %v4496 = vunpack.c.l.b16 %v4472
      %v4497 = vunpack.c.l.b16 %v4474
      %v4498 = vunpack.c.l.b16 %v4476
      %v4499 = vunpack.c.l.b16 %v4478
      %v4500 = vunpack.c.l.b16 %v4480
      %v4501 = vunpack.c.l.b16 %v4482
      %v4502 = vpack.c.b16 %v4495, %v4494
      %v4503 = vpack.c.b16 %v4497, %v4496
      %v4504 = vpack.c.b16 %v4499, %v4498
      %v4505 = vpack.c.b16 %v4501, %v4500
      %v4508 = vunpack.c.l.b16 %v4484
      %v4509 = vunpack.c.l.b16 %v4485
      %v4510 = vpack.c.b16 %v4509, %v4508
      %v4512 = vsel %vm4071, %v4502, 0
      %v4515 = vsel %vm4071, %v4503, 0
      %v4518 = vsel %vm4071, %v4504, 0
      %v4521 = vsel %vm4071, %v4505, 0
      %v4524 = vsel %vm4084, %v4510, 0
      %4526 = vmatprep.subr.bf16.mxu0 0
      %4527 = vmatpush1.bf16.msra.mxu0 %v4524
      %4528 = vmatprep.subr.bf16.mxu0 0
      %4529 = vmatpush1.bf16.msra.mxu0 0
      %4530 = vmatprep.subr.bf16.mxu0 0
      %4531 = vmatpush1.bf16.msra.mxu0 0
      %4532 = vmatprep.subr.bf16.mxu0 0
      %4533 = vmatpush1.bf16.msra.mxu0 0
      %4534 = vmatprep.subr.bf16.mxu0 0
      %4535 = vmatpush1.bf16.msra.mxu0 0
      %4536 = vmatprep.subr.bf16.mxu0 0
      %4537 = vmatpush1.bf16.msra.mxu0 0
      %4538 = vmatprep.subr.bf16.mxu0 0
      %4539 = vmatpush1.bf16.msra.mxu0 0
      %4540 = vmatprep.subr.bf16.mxu0 0
      %4541 = vmatpush1.bf16.msra.mxu0 0
      %4542 = vmatprep.subr.bf16.mxu0 0
      %4543 = vmatpush1.bf16.msra.mxu0 0
      %4544 = vmatprep.subr.bf16.mxu0 0
      %4545 = vmatpush1.bf16.msra.mxu0 0
      %4546 = vmatprep.subr.bf16.mxu0 0
      %4547 = vmatpush1.bf16.msra.mxu0 0
      %4548 = vmatprep.subr.bf16.mxu0 0
      %4549 = vmatpush1.bf16.msra.mxu0 0
      %4550 = vmatprep.subr.bf16.mxu0 0
      %4551 = vmatpush1.bf16.msra.mxu0 0
      %4552 = vmatprep.subr.bf16.mxu0 0
      %4553 = vmatpush1.bf16.msra.mxu0 0
      %4554 = vmatprep.subr.bf16.mxu0 0
      %4555 = vmatpush1.bf16.msra.mxu0 0
      %4556 = vmatprep.subr.bf16.mxu0 0
      %4557 = vmatpush1.bf16.msra.mxu0 0
      %4558 = vmatprep.mubr.bf16.mxu0 0
      %4559 = vmatmul.mubr.bf16.gmra.mrb[0].mxu0 %v4512
      %v4560 = vpop.f32.mrb[0].mxu0
      %v4561 = vadd.f32 0.0, %v4560
      %v4562 = vpop.f32.mrb[0].mxu0
      %v4563 = vpop.f32.mrb[0].mxu0
      %v4564 = vadd.f32 0.0, %v4563
      %v4565 = vpop.f32.mrb[0].mxu0
      %4566 = vmatprep.mubr.bf16.mxu0 0
      %4567 = vmatmul.mubr.bf16.gmra.mrb[0].mxu0 %v4515
      %v4568 = vpop.f32.mrb[0].mxu0
      %v4569 = vadd.f32 0.0, %v4568
      %v4570 = vpop.f32.mrb[0].mxu0
      %v4571 = vpop.f32.mrb[0].mxu0
      %v4572 = vadd.f32 0.0, %v4571
      %v4573 = vpop.f32.mrb[0].mxu0
      %4574 = vmatprep.mubr.bf16.mxu0 0
      %4575 = vmatmul.mubr.bf16.gmra.mrb[0].mxu0 %v4518
      %v4576 = vpop.f32.mrb[0].mxu0
      %v4577 = vadd.f32 0.0, %v4576
      %v4578 = vpop.f32.mrb[0].mxu0
      %v4579 = vpop.f32.mrb[0].mxu0
      %v4580 = vadd.f32 0.0, %v4579
      %v4581 = vpop.f32.mrb[0].mxu0
      %4582 = vmatprep.mubr.bf16.mxu0 0
      %4583 = vmatmul.mubr.bf16.gmra.mrb[0].mxu0 %v4521
      %v4584 = vpop.f32.mrb[0].mxu0
      %v4585 = vadd.f32 0.0, %v4584
      %v4586 = vpop.f32.mrb[0].mxu0
      %v4587 = vpop.f32.mrb[0].mxu0
      %v4588 = vadd.f32 0.0, %v4587
      %v4589 = vpop.f32.mrb[0].mxu0
      %4590 = vdwg.mxu0
      %v4591 = vadd.f32 %v4228, %v4561
      %v4592 = vadd.f32 %v4231, %v4564
      %v4593 = vadd.f32 %v4236, %v4569
      %v4594 = vadd.f32 %v4239, %v4572
      %v4595 = vadd.f32 %v4244, %v4577
      %v4596 = vadd.f32 %v4247, %v4580
      %v4597 = vadd.f32 %v4252, %v4585
      %v4598 = vadd.f32 %v4255, %v4588
      %v4599 = vld [vmem:[%s2] sm:$0x1]
      %v4601 = vlaneseq
      %v4602 = vshrl.u32 %v4601, 7
      %v4603 = vsub.s32 0, %v4602
      %v4604 = vrot.slane %v4599, %v4603
      %v4606 = vadd.f32 %v4591, %v4604
      %v4607 = vadd.f32 %v4592, %v4604
      %v4608 = vadd.f32 %v4593, %v4604
      %v4609 = vadd.f32 %v4594, %v4604
      %v4610 = vadd.f32 %v4595, %v4604
      %v4611 = vadd.f32 %v4596, %v4604
      %v4612 = vadd.f32 %v4597, %v4604
      %v4613 = vadd.f32 %v4598, %v4604
      %v4614 = vmax.f32 %v4606, 0.0
      %v4615 = vmax.f32 %v4607, 0.0
      %v4616 = vmax.f32 %v4608, 0.0
      %v4617 = vmax.f32 %v4609, 0.0
      %v4618 = vmax.f32 %v4610, 0.0
      %v4619 = vmax.f32 %v4611, 0.0
      %v4620 = vmax.f32 %v4612, 0.0
      %v4621 = vmax.f32 %v4613, 0.0
      %vm4622 = vcmask 60416
      %4623 = vst.msk [vmem:[#allocation3] sm:$0xf] %vm4622, 0
      %vm4624 = vcmask 57344
      %4625 = vst.msk [vmem:[#allocation3 + $0x4] sm:$0x1] %vm4624, 0
      %4626 = vst.msk [vmem:[#allocation3 + $0x8] sm:$0xf] %vm4622, 0
      %4627 = vst.msk [vmem:[#allocation3 + $0xc] sm:$0x1] %vm4624, 0
      %4628 = vst.msk [vmem:[#allocation3 + $0x10] sm:$0xf] %vm4622, 0
      %4629 = vst.msk [vmem:[#allocation3 + $0x14] sm:$0x1] %vm4624, 0
      %4630 = vst.msk [vmem:[#allocation3 + $0x18] sm:$0xf] %vm4622, 0
      %4631 = vst.msk [vmem:[#allocation3 + $0x1c] sm:$0x1] %vm4624, 0
      %4632 = vst.msk [vmem:[#allocation3 + $0x20] sm:$0xf] %vm4622, 0
      %4633 = vst.msk [vmem:[#allocation3 + $0x24] sm:$0x1] %vm4624, 0
      %4634 = vst.msk [vmem:[#allocation3 + $0x28] sm:$0xf] %vm4622, 0
      %4635 = vst.msk [vmem:[#allocation3 + $0x2c] sm:$0x1] %vm4624, 0
      %4636 = vst.msk [vmem:[#allocation3 + $0x30] sm:$0xf] %vm4622, 0
      %4637 = vst.msk [vmem:[#allocation3 + $0x34] sm:$0x1] %vm4624, 0
      %4638 = vst.msk [vmem:[#allocation3 + $0x38] sm:$0xf] %vm4622, 0
      %4639 = vst.msk [vmem:[#allocation3 + $0x3c] sm:$0x1] %vm4624, 0
      %4640 = vst.msk [vmem:[#allocation3 + $0x40] sm:$0xf] %vm4622, 0
      %4641 = vst.msk [vmem:[#allocation3 + $0x44] sm:$0x1] %vm4624, 0
      %4642 = vst.msk [vmem:[#allocation3 + $0x48] sm:$0xf] %vm4622, 0
      %4643 = vst.msk [vmem:[#allocation3 + $0x4c] sm:$0x1] %vm4624, 0
      %v4644 = vpack.c.bf16 %v4614, %v4614
      %v4645 = vpack.c.bf16 %v4615, %v4615
      %v4646 = vpack.c.bf16 %v4616, %v4616
      %v4647 = vpack.c.bf16 %v4617, %v4617
      %v4648 = vpack.c.bf16 %v4618, %v4618
      %v4649 = vpack.c.bf16 %v4619, %v4619
      %v4650 = vpack.c.bf16 %v4620, %v4620
      %v4651 = vpack.c.bf16 %v4621, %v4621
      %v4660 = vunpack.c.l.b16 %v4644
      %v4661 = vunpack.c.l.b16 %v4645
      %v4662 = vunpack.c.l.b16 %v4646
      %v4663 = vunpack.c.l.b16 %v4647
      %v4664 = vunpack.c.l.b16 %v4648
      %v4665 = vunpack.c.l.b16 %v4649
      %v4666 = vunpack.c.l.b16 %v4650
      %v4667 = vunpack.c.l.b16 %v4651
      %v4668 = vpack.c.b16 %v4660, %v4660
      %v4669 = vpack.c.b16 %v4661, %v4661
      %v4670 = vpack.c.b16 %v4662, %v4662
      %v4671 = vpack.c.b16 %v4663, %v4663
      %v4672 = vpack.c.b16 %v4664, %v4664
      %v4673 = vpack.c.b16 %v4665, %v4665
      %v4674 = vpack.c.b16 %v4666, %v4666
      %v4675 = vpack.c.b16 %v4667, %v4667
      %v4677 = vshrl.u32 %v4668, 16
      %v4679 = vrot.slane %v4677, 7
      %v4680 = vshll.u32 %v4668, 16
      %v4682 = vor.u32 %v4679, %v4680
      %v4683 = vrot.slane %v4679, 4
      %v4685 = vshrl.u32 %v4669, 16
      %v4687 = vrot.slane %v4685, 7
      %v4688 = vshll.u32 %v4669, 16
      %v4690 = vor.u32 %v4687, %v4688
      %v4691 = vrot.slane %v4687, 4
      %v4693 = vshrl.u32 %v4670, 16
      %v4695 = vrot.slane %v4693, 7
      %v4696 = vshll.u32 %v4670, 16
      %v4698 = vor.u32 %v4695, %v4696
      %v4699 = vrot.slane %v4695, 4
      %v4701 = vshrl.u32 %v4671, 16
      %v4703 = vrot.slane %v4701, 7
      %v4704 = vshll.u32 %v4671, 16
      %v4706 = vor.u32 %v4703, %v4704
      %v4707 = vrot.slane %v4703, 4
      %v4709 = vshrl.u32 %v4672, 16
      %v4711 = vrot.slane %v4709, 7
      %v4712 = vshll.u32 %v4672, 16
      %v4714 = vor.u32 %v4711, %v4712
      %v4715 = vrot.slane %v4711, 4
      %v4717 = vshrl.u32 %v4673, 16
      %v4719 = vrot.slane %v4717, 7
      %v4720 = vshll.u32 %v4673, 16
      %v4722 = vor.u32 %v4719, %v4720
      %v4723 = vrot.slane %v4719, 4
      %v4725 = vshrl.u32 %v4674, 16
      %v4727 = vrot.slane %v4725, 7
      %v4728 = vshll.u32 %v4674, 16
      %v4730 = vor.u32 %v4727, %v4728
      %v4731 = vrot.slane %v4727, 4
      %v4733 = vshrl.u32 %v4675, 16
      %v4735 = vrot.slane %v4733, 7
      %v4736 = vshll.u32 %v4675, 16
      %v4738 = vor.u32 %v4735, %v4736
      %v4739 = vrot.slane %v4735, 4
      %s4756 = scalar_lea.vmem [#allocation3], 8
      %vm4757 = vcmask 60416
      %vm4758 = vmand %vm4757, %vm3539
      %v4759 = vld [vmem:[%s4756] sm:$0xf]
      %v4760 = vsel %vm4758, %v4682, %v4759
      %4761 = vst [vmem:[%s4756] sm:$0xf] %v4760
      %vm4762 = vcmask 57344
      %vm4763 = vmand %vm4762, %vm3545
      %v4764 = vld [vmem:[%s4756 + $0x4] sm:$0x1]
      %v4765 = vsel %vm4763, %v4683, %v4764
      %4766 = vst [vmem:[%s4756 + $0x4] sm:$0x1] %v4765
      %v4767 = vld [vmem:[%s4756 + $0x8] sm:$0xf]
      %v4768 = vsel %vm4758, %v4690, %v4767
      %4769 = vst [vmem:[%s4756 + $0x8] sm:$0xf] %v4768
      %v4770 = vld [vmem:[%s4756 + $0xc] sm:$0x1]
      %v4771 = vsel %vm4763, %v4691, %v4770
      %4772 = vst [vmem:[%s4756 + $0xc] sm:$0x1] %v4771
      %v4773 = vld [vmem:[%s4756 + $0x10] sm:$0xf]
      %v4774 = vsel %vm4758, %v4698, %v4773
      %4775 = vst [vmem:[%s4756 + $0x10] sm:$0xf] %v4774
      %v4776 = vld [vmem:[%s4756 + $0x14] sm:$0x1]
      %v4777 = vsel %vm4763, %v4699, %v4776
      %4778 = vst [vmem:[%s4756 + $0x14] sm:$0x1] %v4777
      %v4779 = vld [vmem:[%s4756 + $0x18] sm:$0xf]
      %v4780 = vsel %vm4758, %v4706, %v4779
      %4781 = vst [vmem:[%s4756 + $0x18] sm:$0xf] %v4780
      %v4782 = vld [vmem:[%s4756 + $0x1c] sm:$0x1]
      %v4783 = vsel %vm4763, %v4707, %v4782
      %4784 = vst [vmem:[%s4756 + $0x1c] sm:$0x1] %v4783
      %v4785 = vld [vmem:[%s4756 + $0x20] sm:$0xf]
      %v4786 = vsel %vm4758, %v4714, %v4785
      %4787 = vst [vmem:[%s4756 + $0x20] sm:$0xf] %v4786
      %v4788 = vld [vmem:[%s4756 + $0x24] sm:$0x1]
      %v4789 = vsel %vm4763, %v4715, %v4788
      %4790 = vst [vmem:[%s4756 + $0x24] sm:$0x1] %v4789
      %v4791 = vld [vmem:[%s4756 + $0x28] sm:$0xf]
      %v4792 = vsel %vm4758, %v4722, %v4791
      %4793 = vst [vmem:[%s4756 + $0x28] sm:$0xf] %v4792
      %v4794 = vld [vmem:[%s4756 + $0x2c] sm:$0x1]
      %v4795 = vsel %vm4763, %v4723, %v4794
      %4796 = vst [vmem:[%s4756 + $0x2c] sm:$0x1] %v4795
      %v4797 = vld [vmem:[%s4756 + $0x30] sm:$0xf]
      %v4798 = vsel %vm4758, %v4730, %v4797
      %4799 = vst [vmem:[%s4756 + $0x30] sm:$0xf] %v4798
      %v4800 = vld [vmem:[%s4756 + $0x34] sm:$0x1]
      %v4801 = vsel %vm4763, %v4731, %v4800
      %4802 = vst [vmem:[%s4756 + $0x34] sm:$0x1] %v4801
      %v4803 = vld [vmem:[%s4756 + $0x38] sm:$0xf]
      %v4804 = vsel %vm4758, %v4738, %v4803
      %4805 = vst [vmem:[%s4756 + $0x38] sm:$0xf] %v4804
      %v4806 = vld [vmem:[%s4756 + $0x3c] sm:$0x1]
      %v4807 = vsel %vm4763, %v4739, %v4806
      %4808 = vst [vmem:[%s4756 + $0x3c] sm:$0x1] %v4807
      %v4809 = vld [vmem:[#allocation3] sm:$0xf]
      %v4810 = vld [vmem:[#allocation3 + $0x8] sm:$0xf]
      %v4811 = vld [vmem:[#allocation3 + $0x10] sm:$0xf]
      %v4812 = vld [vmem:[#allocation3 + $0x18] sm:$0xf]
      %v4813 = vld [vmem:[#allocation3 + $0x20] sm:$0xf]
      %v4814 = vld [vmem:[#allocation3 + $0x28] sm:$0xf]
      %v4815 = vld [vmem:[#allocation3 + $0x30] sm:$0xf]
      %v4816 = vld [vmem:[#allocation3 + $0x38] sm:$0xf]
      %v4817 = vld [vmem:[#allocation3 + $0x4] sm:$0x1]
      %v4818 = vld [vmem:[#allocation3 + $0xc] sm:$0x1]
      %v4819 = vld [vmem:[#allocation3 + $0x14] sm:$0x1]
      %v4820 = vld [vmem:[#allocation3 + $0x1c] sm:$0x1]
      %v4821 = vld [vmem:[#allocation3 + $0x24] sm:$0x1]
      %v4822 = vld [vmem:[#allocation3 + $0x2c] sm:$0x1]
      %v4823 = vld [vmem:[#allocation3 + $0x34] sm:$0x1]
      %v4824 = vld [vmem:[#allocation3 + $0x3c] sm:$0x1]
      %v4825 = vld [vmem:[#allocation3] sm:$0xe]
      %v4826 = vld [vmem:[#allocation3 + $0x8] sm:$0xe]
      %v4827 = vld [vmem:[#allocation3 + $0x10] sm:$0xe]
      %v4828 = vld [vmem:[#allocation3 + $0x18] sm:$0xe]
      %v4829 = vld [vmem:[#allocation3 + $0x20] sm:$0xe]
      %v4830 = vld [vmem:[#allocation3 + $0x28] sm:$0xe]
      %v4831 = vld [vmem:[#allocation3 + $0x30] sm:$0xe]
      %v4832 = vld [vmem:[#allocation3 + $0x38] sm:$0xe]
      %v4849 = vunpack.c.l.b16 %v4809
      %v4850 = vunpack.c.l.b16 %v4817
      %v4851 = vunpack.c.l.b16 %v4810
      %v4852 = vunpack.c.l.b16 %v4818
      %v4853 = vunpack.c.l.b16 %v4811
      %v4854 = vunpack.c.l.b16 %v4819
      %v4855 = vunpack.c.l.b16 %v4812
      %v4856 = vunpack.c.l.b16 %v4820
      %v4857 = vunpack.c.l.b16 %v4813
      %v4858 = vunpack.c.l.b16 %v4821
      %v4859 = vunpack.c.l.b16 %v4814
      %v4860 = vunpack.c.l.b16 %v4822
      %v4861 = vunpack.c.l.b16 %v4815
      %v4862 = vunpack.c.l.b16 %v4823
      %v4863 = vunpack.c.l.b16 %v4816
      %v4864 = vunpack.c.l.b16 %v4824
      %v4865 = vpack.c.b16 %v4850, %v4849
      %v4866 = vpack.c.b16 %v4852, %v4851
      %v4867 = vpack.c.b16 %v4854, %v4853
      %v4868 = vpack.c.b16 %v4856, %v4855
      %v4869 = vpack.c.b16 %v4858, %v4857
      %v4870 = vpack.c.b16 %v4860, %v4859
      %v4871 = vpack.c.b16 %v4862, %v4861
      %v4872 = vpack.c.b16 %v4864, %v4863
      %v4874 = vshrl.u32 %v4865, 16
      %v4876 = vshll.u32 %v4865, 16
      %v4878 = vrot.slane %v4876, 1
      %v4879 = vor.u32 %v4874, %v4878
      %v4881 = vshrl.u32 %v4866, 16
      %v4883 = vshll.u32 %v4866, 16
      %v4885 = vrot.slane %v4883, 1
      %v4886 = vor.u32 %v4881, %v4885
      %v4888 = vshrl.u32 %v4867, 16
      %v4890 = vshll.u32 %v4867, 16
      %v4892 = vrot.slane %v4890, 1
      %v4893 = vor.u32 %v4888, %v4892
      %v4895 = vshrl.u32 %v4868, 16
      %v4897 = vshll.u32 %v4868, 16
      %v4899 = vrot.slane %v4897, 1
      %v4900 = vor.u32 %v4895, %v4899
      %v4902 = vshrl.u32 %v4869, 16
      %v4904 = vshll.u32 %v4869, 16
      %v4906 = vrot.slane %v4904, 1
      %v4907 = vor.u32 %v4902, %v4906
      %v4909 = vshrl.u32 %v4870, 16
      %v4911 = vshll.u32 %v4870, 16
      %v4913 = vrot.slane %v4911, 1
      %v4914 = vor.u32 %v4909, %v4913
      %v4916 = vshrl.u32 %v4871, 16
      %v4918 = vshll.u32 %v4871, 16
      %v4920 = vrot.slane %v4918, 1
      %v4921 = vor.u32 %v4916, %v4920
      %v4923 = vshrl.u32 %v4872, 16
      %v4925 = vshll.u32 %v4872, 16
      %v4927 = vrot.slane %v4925, 1
      %v4928 = vor.u32 %v4923, %v4927
      %4929 = vrot.lane.b32.xlu0 %v4879, 8
      %v4930 = vpop.permute.xlu0 %4929
      %4931 = vrot.lane.b32.xlu0 %v4886, 8
      %v4932 = vpop.permute.xlu0 %4931
      %4933 = vrot.lane.b32.xlu0 %v4893, 8
      %v4934 = vpop.permute.xlu0 %4933
      %4935 = vrot.lane.b32.xlu0 %v4900, 8
      %v4936 = vpop.permute.xlu0 %4935
      %4937 = vrot.lane.b32.xlu0 %v4907, 8
      %v4938 = vpop.permute.xlu0 %4937
      %4939 = vrot.lane.b32.xlu0 %v4914, 8
      %v4940 = vpop.permute.xlu0 %4939
      %4941 = vrot.lane.b32.xlu0 %v4921, 8
      %v4942 = vpop.permute.xlu0 %4941
      %4943 = vrot.lane.b32.xlu0 %v4928, 8
      %v4944 = vpop.permute.xlu0 %4943
      %v4953 = vunpack.c.l.b16 %v4825
      %v4954 = vunpack.c.l.b16 %v4826
      %v4955 = vunpack.c.l.b16 %v4827
      %v4956 = vunpack.c.l.b16 %v4828
      %v4957 = vunpack.c.l.b16 %v4829
      %v4958 = vunpack.c.l.b16 %v4830
      %v4959 = vunpack.c.l.b16 %v4831
      %v4960 = vunpack.c.l.b16 %v4832
      %v4961 = vpack.c.b16 %v4850, %v4953
      %v4962 = vpack.c.b16 %v4852, %v4954
      %v4963 = vpack.c.b16 %v4854, %v4955
      %v4964 = vpack.c.b16 %v4856, %v4956
      %v4965 = vpack.c.b16 %v4858, %v4957
      %v4966 = vpack.c.b16 %v4860, %v4958
      %v4967 = vpack.c.b16 %v4862, %v4959
      %v4968 = vpack.c.b16 %v4864, %v4960
      %v4969 = vrot.slane %v4961, 1
      %v4970 = vrot.slane %v4962, 1
      %v4971 = vrot.slane %v4963, 1
      %v4972 = vrot.slane %v4964, 1
      %v4973 = vrot.slane %v4965, 1
      %v4974 = vrot.slane %v4966, 1
      %v4975 = vrot.slane %v4967, 1
      %v4976 = vrot.slane %v4968, 1
      %4977 = vrot.lane.b32.xlu0 %v4969, 16
      %v4978 = vpop.permute.xlu0 %4977
      %4979 = vrot.lane.b32.xlu0 %v4970, 16
      %v4980 = vpop.permute.xlu0 %4979
      %4981 = vrot.lane.b32.xlu0 %v4971, 16
      %v4982 = vpop.permute.xlu0 %4981
      %4983 = vrot.lane.b32.xlu0 %v4972, 16
      %v4984 = vpop.permute.xlu0 %4983
      %4985 = vrot.lane.b32.xlu0 %v4973, 16
      %v4986 = vpop.permute.xlu0 %4985
      %4987 = vrot.lane.b32.xlu0 %v4974, 16
      %v4988 = vpop.permute.xlu0 %4987
      %4989 = vrot.lane.b32.xlu0 %v4975, 16
      %v4990 = vpop.permute.xlu0 %4989
      %4991 = vrot.lane.b32.xlu0 %v4976, 16
      %v4992 = vpop.permute.xlu0 %4991
      %v4995 = vsel %vm3800, %v4809, %v4930
      %v4998 = vsel %vm3800, %v4810, %v4932
      %v5001 = vsel %vm3800, %v4811, %v4934
      %v5004 = vsel %vm3800, %v4812, %v4936
      %v5007 = vsel %vm3800, %v4813, %v4938
      %v5010 = vsel %vm3800, %v4814, %v4940
      %v5013 = vsel %vm3800, %v4815, %v4942
      %v5016 = vsel %vm3800, %v4816, %v4944
      %vm5017 = vcmask 130048
      %v5019 = vsel %vm5017, %v4995, %v4978
      %v5021 = vsel %vm5017, %v4998, %v4980
      %v5023 = vsel %vm5017, %v5001, %v4982
      %v5025 = vsel %vm5017, %v5004, %v4984
      %v5027 = vsel %vm5017, %v5007, %v4986
      %v5029 = vsel %vm5017, %v5010, %v4988
      %v5031 = vsel %vm5017, %v5013, %v4990
      %v5033 = vsel %vm5017, %v5016, %v4992
      %v5034 = vld [vmem:[%s3] sm:$0xf]
      %v5035 = vld [vmem:[%s3 + $0x4] sm:$0xf]
      %v5036 = vld [vmem:[%s3 + $0x8] sm:$0xf]
      %v5037 = vld [vmem:[%s4756] sm:$0xf]
      %v5038 = vld [vmem:[%s4756 + $0x8] sm:$0xf]
      %v5039 = vld [vmem:[%s4756 + $0x10] sm:$0xf]
      %v5040 = vld [vmem:[%s4756 + $0x18] sm:$0xf]
      %v5041 = vld [vmem:[%s4756 + $0x20] sm:$0xf]
      %v5042 = vld [vmem:[%s4756 + $0x28] sm:$0xf]
      %v5043 = vld [vmem:[%s4756 + $0x30] sm:$0xf]
      %v5044 = vld [vmem:[%s4756 + $0x38] sm:$0xf]
      %v5045 = vld [vmem:[%s4756 + $0x4] sm:$0x1]
      %v5046 = vld [vmem:[%s4756 + $0xc] sm:$0x1]
      %v5047 = vld [vmem:[%s4756 + $0x14] sm:$0x1]
      %v5048 = vld [vmem:[%s4756 + $0x1c] sm:$0x1]
      %v5049 = vld [vmem:[%s4756 + $0x24] sm:$0x1]
      %v5050 = vld [vmem:[%s4756 + $0x2c] sm:$0x1]
      %v5051 = vld [vmem:[%s4756 + $0x34] sm:$0x1]
      %v5052 = vld [vmem:[%s4756 + $0x3c] sm:$0x1]
      %v5053 = vld [vmem:[%s4756] sm:$0xe]
      %v5054 = vld [vmem:[%s4756 + $0x8] sm:$0xe]
      %v5055 = vld [vmem:[%s4756 + $0x10] sm:$0xe]
      %v5056 = vld [vmem:[%s4756 + $0x18] sm:$0xe]
      %v5057 = vld [vmem:[%s4756 + $0x20] sm:$0xe]
      %v5058 = vld [vmem:[%s4756 + $0x28] sm:$0xe]
      %v5059 = vld [vmem:[%s4756 + $0x30] sm:$0xe]
      %v5060 = vld [vmem:[%s4756 + $0x38] sm:$0xe]
      %v5077 = vunpack.c.l.b16 %v5037
      %v5078 = vunpack.c.l.b16 %v5045
      %v5079 = vunpack.c.l.b16 %v5038
      %v5080 = vunpack.c.l.b16 %v5046
      %v5081 = vunpack.c.l.b16 %v5039
      %v5082 = vunpack.c.l.b16 %v5047
      %v5083 = vunpack.c.l.b16 %v5040
      %v5084 = vunpack.c.l.b16 %v5048
      %v5085 = vunpack.c.l.b16 %v5041
      %v5086 = vunpack.c.l.b16 %v5049
      %v5087 = vunpack.c.l.b16 %v5042
      %v5088 = vunpack.c.l.b16 %v5050
      %v5089 = vunpack.c.l.b16 %v5043
      %v5090 = vunpack.c.l.b16 %v5051
      %v5091 = vunpack.c.l.b16 %v5044
      %v5092 = vunpack.c.l.b16 %v5052
      %v5093 = vpack.c.b16 %v5078, %v5077
      %v5094 = vpack.c.b16 %v5080, %v5079
      %v5095 = vpack.c.b16 %v5082, %v5081
      %v5096 = vpack.c.b16 %v5084, %v5083
      %v5097 = vpack.c.b16 %v5086, %v5085
      %v5098 = vpack.c.b16 %v5088, %v5087
      %v5099 = vpack.c.b16 %v5090, %v5089
      %v5100 = vpack.c.b16 %v5092, %v5091
      %v5102 = vshrl.u32 %v5093, 16
      %v5104 = vshll.u32 %v5093, 16
      %v5106 = vrot.slane %v5104, 1
      %v5107 = vor.u32 %v5102, %v5106
      %v5109 = vshrl.u32 %v5094, 16
      %v5111 = vshll.u32 %v5094, 16
      %v5113 = vrot.slane %v5111, 1
      %v5114 = vor.u32 %v5109, %v5113
      %v5116 = vshrl.u32 %v5095, 16
      %v5118 = vshll.u32 %v5095, 16
      %v5120 = vrot.slane %v5118, 1
      %v5121 = vor.u32 %v5116, %v5120
      %v5123 = vshrl.u32 %v5096, 16
      %v5125 = vshll.u32 %v5096, 16
      %v5127 = vrot.slane %v5125, 1
      %v5128 = vor.u32 %v5123, %v5127
      %v5130 = vshrl.u32 %v5097, 16
      %v5132 = vshll.u32 %v5097, 16
      %v5134 = vrot.slane %v5132, 1
      %v5135 = vor.u32 %v5130, %v5134
      %v5137 = vshrl.u32 %v5098, 16
      %v5139 = vshll.u32 %v5098, 16
      %v5141 = vrot.slane %v5139, 1
      %v5142 = vor.u32 %v5137, %v5141
      %v5144 = vshrl.u32 %v5099, 16
      %v5146 = vshll.u32 %v5099, 16
      %v5148 = vrot.slane %v5146, 1
      %v5149 = vor.u32 %v5144, %v5148
      %v5151 = vshrl.u32 %v5100, 16
      %v5153 = vshll.u32 %v5100, 16
      %v5155 = vrot.slane %v5153, 1
      %v5156 = vor.u32 %v5151, %v5155
      %5157 = vrot.lane.b32.xlu0 %v5107, 8
      %v5158 = vpop.permute.xlu0 %5157
      %5159 = vrot.lane.b32.xlu0 %v5114, 8
      %v5160 = vpop.permute.xlu0 %5159
      %5161 = vrot.lane.b32.xlu0 %v5121, 8
      %v5162 = vpop.permute.xlu0 %5161
      %5163 = vrot.lane.b32.xlu0 %v5128, 8
      %v5164 = vpop.permute.xlu0 %5163
      %5165 = vrot.lane.b32.xlu0 %v5135, 8
      %v5166 = vpop.permute.xlu0 %5165
      %5167 = vrot.lane.b32.xlu0 %v5142, 8
      %v5168 = vpop.permute.xlu0 %5167
      %5169 = vrot.lane.b32.xlu0 %v5149, 8
      %v5170 = vpop.permute.xlu0 %5169
      %5171 = vrot.lane.b32.xlu0 %v5156, 8
      %v5172 = vpop.permute.xlu0 %5171
      %v5181 = vunpack.c.l.b16 %v5053
      %v5182 = vunpack.c.l.b16 %v5054
      %v5183 = vunpack.c.l.b16 %v5055
      %v5184 = vunpack.c.l.b16 %v5056
      %v5185 = vunpack.c.l.b16 %v5057
      %v5186 = vunpack.c.l.b16 %v5058
      %v5187 = vunpack.c.l.b16 %v5059
      %v5188 = vunpack.c.l.b16 %v5060
      %v5189 = vpack.c.b16 %v5078, %v5181
      %v5190 = vpack.c.b16 %v5080, %v5182
      %v5191 = vpack.c.b16 %v5082, %v5183
      %v5192 = vpack.c.b16 %v5084, %v5184
      %v5193 = vpack.c.b16 %v5086, %v5185
      %v5194 = vpack.c.b16 %v5088, %v5186
      %v5195 = vpack.c.b16 %v5090, %v5187
      %v5196 = vpack.c.b16 %v5092, %v5188
      %v5197 = vrot.slane %v5189, 1
      %v5198 = vrot.slane %v5190, 1
      %v5199 = vrot.slane %v5191, 1
      %v5200 = vrot.slane %v5192, 1
      %v5201 = vrot.slane %v5193, 1
      %v5202 = vrot.slane %v5194, 1
      %v5203 = vrot.slane %v5195, 1
      %v5204 = vrot.slane %v5196, 1
      %5205 = vrot.lane.b32.xlu0 %v5197, 16
      %v5206 = vpop.permute.xlu0 %5205
      %5207 = vrot.lane.b32.xlu0 %v5198, 16
      %v5208 = vpop.permute.xlu0 %5207
      %5209 = vrot.lane.b32.xlu0 %v5199, 16
      %v5210 = vpop.permute.xlu0 %5209
      %5211 = vrot.lane.b32.xlu0 %v5200, 16
      %v5212 = vpop.permute.xlu0 %5211
      %5213 = vrot.lane.b32.xlu0 %v5201, 16
      %v5214 = vpop.permute.xlu0 %5213
      %5215 = vrot.lane.b32.xlu0 %v5202, 16
      %v5216 = vpop.permute.xlu0 %5215
      %5217 = vrot.lane.b32.xlu0 %v5203, 16
      %v5218 = vpop.permute.xlu0 %5217
      %5219 = vrot.lane.b32.xlu0 %v5204, 16
      %v5220 = vpop.permute.xlu0 %5219
      %v5223 = vsel %vm3800, %v5037, %v5158
      %v5226 = vsel %vm3800, %v5038, %v5160
      %v5229 = vsel %vm3800, %v5039, %v5162
      %v5232 = vsel %vm3800, %v5040, %v5164
      %v5235 = vsel %vm3800, %v5041, %v5166
      %v5238 = vsel %vm3800, %v5042, %v5168
      %v5241 = vsel %vm3800, %v5043, %v5170
      %v5244 = vsel %vm3800, %v5044, %v5172
      %v5246 = vsel %vm5017, %v5223, %v5206
      %v5248 = vsel %vm5017, %v5226, %v5208
      %v5250 = vsel %vm5017, %v5229, %v5210
      %v5252 = vsel %vm5017, %v5232, %v5212
      %v5254 = vsel %vm5017, %v5235, %v5214
      %v5256 = vsel %vm5017, %v5238, %v5216
      %v5258 = vsel %vm5017, %v5241, %v5218
      %v5260 = vsel %vm5017, %v5244, %v5220
      %s5261 = scalar_lea.vmem %s3, 12
      %v5262 = vld [vmem:[%s5261] sm:$0xf]
      %v5263 = vld [vmem:[%s5261 + $0x4] sm:$0xf]
      %v5264 = vld [vmem:[%s5261 + $0x8] sm:$0xf]
      %v5273 = vunpack.c.l.b16 %v5246
      %v5274 = vunpack.c.l.b16 %v5248
      %v5275 = vunpack.c.l.b16 %v5250
      %v5276 = vunpack.c.l.b16 %v5252
      %v5277 = vunpack.c.l.b16 %v5254
      %v5278 = vunpack.c.l.b16 %v5256
      %v5279 = vunpack.c.l.b16 %v5258
      %v5280 = vunpack.c.l.b16 %v5260
      %v5281 = vpack.c.b16 %v5274, %v5273
      %v5282 = vpack.c.b16 %v5276, %v5275
      %v5283 = vpack.c.b16 %v5278, %v5277
      %v5284 = vpack.c.b16 %v5280, %v5279
      %v5288 = vunpack.c.l.b16 %v5262
      %v5289 = vunpack.c.l.b16 %v5263
      %v5290 = vunpack.c.l.b16 %v5264
      %v5291 = vpack.c.b16 %v5289, %v5288
      %v5292 = vpack.c.b16 %v5290, %v5290
      %vm5294 = vcmask 195584
      %v5296 = vsel %vm5294, %v5281, 0
      %v5299 = vsel %vm5294, %v5282, 0
      %v5302 = vsel %vm5294, %v5283, 0
      %v5305 = vsel %vm5294, %v5284, 0
      %vm5307 = vcmask 1043456
      %v5309 = vsel %vm5307, %v5292, 0
      %5311 = vmatprep.subr.bf16.mxu0 0
      %5312 = vmatpush1.bf16.msra.mxu0 %v5291
      %5313 = vmatprep.subr.bf16.mxu0 0
      %5314 = vmatpush1.bf16.msra.mxu0 %v5309
      %5315 = vmatprep.subr.bf16.mxu0 0
      %5316 = vmatpush1.bf16.msra.mxu0 0
      %5317 = vmatprep.subr.bf16.mxu0 0
      %5318 = vmatpush1.bf16.msra.mxu0 0
      %5319 = vmatprep.subr.bf16.mxu0 0
      %5320 = vmatpush1.bf16.msra.mxu0 0
      %5321 = vmatprep.subr.bf16.mxu0 0
      %5322 = vmatpush1.bf16.msra.mxu0 0
      %5323 = vmatprep.subr.bf16.mxu0 0
      %5324 = vmatpush1.bf16.msra.mxu0 0
      %5325 = vmatprep.subr.bf16.mxu0 0
      %5326 = vmatpush1.bf16.msra.mxu0 0
      %5327 = vmatprep.subr.bf16.mxu0 0
      %5328 = vmatpush1.bf16.msra.mxu0 0
      %5329 = vmatprep.subr.bf16.mxu0 0
      %5330 = vmatpush1.bf16.msra.mxu0 0
      %5331 = vmatprep.subr.bf16.mxu0 0
      %5332 = vmatpush1.bf16.msra.mxu0 0
      %5333 = vmatprep.subr.bf16.mxu0 0
      %5334 = vmatpush1.bf16.msra.mxu0 0
      %5335 = vmatprep.subr.bf16.mxu0 0
      %5336 = vmatpush1.bf16.msra.mxu0 0
      %5337 = vmatprep.subr.bf16.mxu0 0
      %5338 = vmatpush1.bf16.msra.mxu0 0
      %5339 = vmatprep.subr.bf16.mxu0 0
      %5340 = vmatpush1.bf16.msra.mxu0 0
      %5341 = vmatprep.subr.bf16.mxu0 0
      %5342 = vmatpush1.bf16.msra.mxu0 0
      %5343 = vmatprep.mubr.bf16.mxu0 0
      %5344 = vmatmul.mubr.bf16.gmra.mrb[0].mxu0 %v5296
      %v5345 = vpop.f32.mrb[0].mxu0
      %v5346 = vadd.f32 0.0, %v5345
      %v5347 = vpop.f32.mrb[0].mxu0
      %v5348 = vpop.f32.mrb[0].mxu0
      %v5349 = vadd.f32 0.0, %v5348
      %v5350 = vpop.f32.mrb[0].mxu0
      %5351 = vmatprep.mubr.bf16.mxu0 0
      %5352 = vmatmul.mubr.bf16.gmra.mrb[0].mxu0 %v5299
      %v5353 = vpop.f32.mrb[0].mxu0
      %v5354 = vadd.f32 0.0, %v5353
      %v5355 = vpop.f32.mrb[0].mxu0
      %v5356 = vpop.f32.mrb[0].mxu0
      %v5357 = vadd.f32 0.0, %v5356
      %v5358 = vpop.f32.mrb[0].mxu0
      %5359 = vmatprep.mubr.bf16.mxu0 0
      %5360 = vmatmul.mubr.bf16.gmra.mrb[0].mxu0 %v5302
      %v5361 = vpop.f32.mrb[0].mxu0
      %v5362 = vadd.f32 0.0, %v5361
      %v5363 = vpop.f32.mrb[0].mxu0
      %v5364 = vpop.f32.mrb[0].mxu0
      %v5365 = vadd.f32 0.0, %v5364
      %v5366 = vpop.f32.mrb[0].mxu0
      %5367 = vmatprep.mubr.bf16.mxu0 0
      %5368 = vmatmul.mubr.bf16.gmra.mrb[0].mxu0 %v5305
      %v5369 = vpop.f32.mrb[0].mxu0
      %v5370 = vadd.f32 0.0, %v5369
      %v5371 = vpop.f32.mrb[0].mxu0
      %v5372 = vpop.f32.mrb[0].mxu0
      %v5373 = vadd.f32 0.0, %v5372
      %v5374 = vpop.f32.mrb[0].mxu0
      %5375 = vdwg.mxu0
      %v5384 = vunpack.c.l.b16 %v5019
      %v5385 = vunpack.c.l.b16 %v5021
      %v5386 = vunpack.c.l.b16 %v5023
      %v5387 = vunpack.c.l.b16 %v5025
      %v5388 = vunpack.c.l.b16 %v5027
      %v5389 = vunpack.c.l.b16 %v5029
      %v5390 = vunpack.c.l.b16 %v5031
      %v5391 = vunpack.c.l.b16 %v5033
      %v5392 = vpack.c.b16 %v5385, %v5384
      %v5393 = vpack.c.b16 %v5387, %v5386
      %v5394 = vpack.c.b16 %v5389, %v5388
      %v5395 = vpack.c.b16 %v5391, %v5390
      %v5399 = vunpack.c.l.b16 %v5034
      %v5400 = vunpack.c.l.b16 %v5035
      %v5401 = vunpack.c.l.b16 %v5036
      %v5402 = vpack.c.b16 %v5400, %v5399
      %v5403 = vpack.c.b16 %v5401, %v5401
      %v5406 = vsel %vm5294, %v5392, 0
      %v5409 = vsel %vm5294, %v5393, 0
      %v5412 = vsel %vm5294, %v5394, 0
      %v5415 = vsel %vm5294, %v5395, 0
      %v5418 = vsel %vm5307, %v5403, 0
      %5420 = vmatprep.subr.bf16.mxu0 0
      %5421 = vmatpush1.bf16.msra.mxu0 %v5402
      %5422 = vmatprep.subr.bf16.mxu0 0
      %5423 = vmatpush1.bf16.msra.mxu0 %v5418
      %5424 = vmatprep.subr.bf16.mxu0 0
      %5425 = vmatpush1.bf16.msra.mxu0 0
      %5426 = vmatprep.subr.bf16.mxu0 0
      %5427 = vmatpush1.bf16.msra.mxu0 0
      %5428 = vmatprep.subr.bf16.mxu0 0
      %5429 = vmatpush1.bf16.msra.mxu0 0
      %5430 = vmatprep.subr.bf16.mxu0 0
      %5431 = vmatpush1.bf16.msra.mxu0 0
      %5432 = vmatprep.subr.bf16.mxu0 0
      %5433 = vmatpush1.bf16.msra.mxu0 0
      %5434 = vmatprep.subr.bf16.mxu0 0
      %5435 = vmatpush1.bf16.msra.mxu0 0
      %5436 = vmatprep.subr.bf16.mxu0 0
      %5437 = vmatpush1.bf16.msra.mxu0 0
      %5438 = vmatprep.subr.bf16.mxu0 0
      %5439 = vmatpush1.bf16.msra.mxu0 0
      %5440 = vmatprep.subr.bf16.mxu0 0
      %5441 = vmatpush1.bf16.msra.mxu0 0
      %5442 = vmatprep.subr.bf16.mxu0 0
      %5443 = vmatpush1.bf16.msra.mxu0 0
      %5444 = vmatprep.subr.bf16.mxu0 0
      %5445 = vmatpush1.bf16.msra.mxu0 0
      %5446 = vmatprep.subr.bf16.mxu0 0
      %5447 = vmatpush1.bf16.msra.mxu0 0
      %5448 = vmatprep.subr.bf16.mxu0 0
      %5449 = vmatpush1.bf16.msra.mxu0 0
      %5450 = vmatprep.subr.bf16.mxu0 0
      %5451 = vmatpush1.bf16.msra.mxu0 0
      %5452 = vmatprep.mubr.bf16.mxu0 0
      %5453 = vmatmul.mubr.bf16.gmra.mrb[0].mxu0 %v5406
      %v5454 = vpop.f32.mrb[0].mxu0
      %v5455 = vadd.f32 %v5346, %v5454
      %v5456 = vpop.f32.mrb[0].mxu0
      %v5457 = vpop.f32.mrb[0].mxu0
      %v5458 = vadd.f32 %v5349, %v5457
      %v5459 = vpop.f32.mrb[0].mxu0
      %5460 = vmatprep.mubr.bf16.mxu0 0
      %5461 = vmatmul.mubr.bf16.gmra.mrb[0].mxu0 %v5409
      %v5462 = vpop.f32.mrb[0].mxu0
      %v5463 = vadd.f32 %v5354, %v5462
      %v5464 = vpop.f32.mrb[0].mxu0
      %v5465 = vpop.f32.mrb[0].mxu0
      %v5466 = vadd.f32 %v5357, %v5465
      %v5467 = vpop.f32.mrb[0].mxu0
      %5468 = vmatprep.mubr.bf16.mxu0 0
      %5469 = vmatmul.mubr.bf16.gmra.mrb[0].mxu0 %v5412
      %v5470 = vpop.f32.mrb[0].mxu0
      %v5471 = vadd.f32 %v5362, %v5470
      %v5472 = vpop.f32.mrb[0].mxu0
      %v5473 = vpop.f32.mrb[0].mxu0
      %v5474 = vadd.f32 %v5365, %v5473
      %v5475 = vpop.f32.mrb[0].mxu0
      %5476 = vmatprep.mubr.bf16.mxu0 0
      %5477 = vmatmul.mubr.bf16.gmra.mrb[0].mxu0 %v5415
      %v5478 = vpop.f32.mrb[0].mxu0
      %v5479 = vadd.f32 %v5370, %v5478
      %v5480 = vpop.f32.mrb[0].mxu0
      %v5481 = vpop.f32.mrb[0].mxu0
      %v5482 = vadd.f32 %v5373, %v5481
      %v5483 = vpop.f32.mrb[0].mxu0
      %5484 = vdwg.mxu0
      %s5485 = scalar_lea.vmem [#allocation3], 16
      %v5486 = vld [vmem:[%s5485] sm:$0xf]
      %v5487 = vld [vmem:[%s5485 + $0x8] sm:$0xf]
      %v5488 = vld [vmem:[%s5485 + $0x10] sm:$0xf]
      %v5489 = vld [vmem:[%s5485 + $0x18] sm:$0xf]
      %v5490 = vld [vmem:[%s5485 + $0x20] sm:$0xf]
      %v5491 = vld [vmem:[%s5485 + $0x28] sm:$0xf]
      %v5492 = vld [vmem:[%s5485 + $0x30] sm:$0xf]
      %v5493 = vld [vmem:[%s5485 + $0x38] sm:$0xf]
      %v5494 = vld [vmem:[%s5485 + $0x4] sm:$0x1]
      %v5495 = vld [vmem:[%s5485 + $0xc] sm:$0x1]
      %v5496 = vld [vmem:[%s5485 + $0x14] sm:$0x1]
      %v5497 = vld [vmem:[%s5485 + $0x1c] sm:$0x1]
      %v5498 = vld [vmem:[%s5485 + $0x24] sm:$0x1]
      %v5499 = vld [vmem:[%s5485 + $0x2c] sm:$0x1]
      %v5500 = vld [vmem:[%s5485 + $0x34] sm:$0x1]
      %v5501 = vld [vmem:[%s5485 + $0x3c] sm:$0x1]
      %v5502 = vld [vmem:[%s5485] sm:$0xe]
      %v5503 = vld [vmem:[%s5485 + $0x8] sm:$0xe]
      %v5504 = vld [vmem:[%s5485 + $0x10] sm:$0xe]
      %v5505 = vld [vmem:[%s5485 + $0x18] sm:$0xe]
      %v5506 = vld [vmem:[%s5485 + $0x20] sm:$0xe]
      %v5507 = vld [vmem:[%s5485 + $0x28] sm:$0xe]
      %v5508 = vld [vmem:[%s5485 + $0x30] sm:$0xe]
      %v5509 = vld [vmem:[%s5485 + $0x38] sm:$0xe]
      %v5526 = vunpack.c.l.b16 %v5486
      %v5527 = vunpack.c.l.b16 %v5494
      %v5528 = vunpack.c.l.b16 %v5487
      %v5529 = vunpack.c.l.b16 %v5495
      %v5530 = vunpack.c.l.b16 %v5488
      %v5531 = vunpack.c.l.b16 %v5496
      %v5532 = vunpack.c.l.b16 %v5489
      %v5533 = vunpack.c.l.b16 %v5497
      %v5534 = vunpack.c.l.b16 %v5490
      %v5535 = vunpack.c.l.b16 %v5498
      %v5536 = vunpack.c.l.b16 %v5491
      %v5537 = vunpack.c.l.b16 %v5499
      %v5538 = vunpack.c.l.b16 %v5492
      %v5539 = vunpack.c.l.b16 %v5500
      %v5540 = vunpack.c.l.b16 %v5493
      %v5541 = vunpack.c.l.b16 %v5501
      %v5542 = vpack.c.b16 %v5527, %v5526
      %v5543 = vpack.c.b16 %v5529, %v5528
      %v5544 = vpack.c.b16 %v5531, %v5530
      %v5545 = vpack.c.b16 %v5533, %v5532
      %v5546 = vpack.c.b16 %v5535, %v5534
      %v5547 = vpack.c.b16 %v5537, %v5536
      %v5548 = vpack.c.b16 %v5539, %v5538
      %v5549 = vpack.c.b16 %v5541, %v5540
      %v5551 = vshrl.u32 %v5542, 16
      %v5553 = vshll.u32 %v5542, 16
      %v5555 = vrot.slane %v5553, 1
      %v5556 = vor.u32 %v5551, %v5555
      %v5558 = vshrl.u32 %v5543, 16
      %v5560 = vshll.u32 %v5543, 16
      %v5562 = vrot.slane %v5560, 1
      %v5563 = vor.u32 %v5558, %v5562
      %v5565 = vshrl.u32 %v5544, 16
      %v5567 = vshll.u32 %v5544, 16
      %v5569 = vrot.slane %v5567, 1
      %v5570 = vor.u32 %v5565, %v5569
      %v5572 = vshrl.u32 %v5545, 16
      %v5574 = vshll.u32 %v5545, 16
      %v5576 = vrot.slane %v5574, 1
      %v5577 = vor.u32 %v5572, %v5576
      %v5579 = vshrl.u32 %v5546, 16
      %v5581 = vshll.u32 %v5546, 16
      %v5583 = vrot.slane %v5581, 1
      %v5584 = vor.u32 %v5579, %v5583
      %v5586 = vshrl.u32 %v5547, 16
      %v5588 = vshll.u32 %v5547, 16
      %v5590 = vrot.slane %v5588, 1
      %v5591 = vor.u32 %v5586, %v5590
      %v5593 = vshrl.u32 %v5548, 16
      %v5595 = vshll.u32 %v5548, 16
      %v5597 = vrot.slane %v5595, 1
      %v5598 = vor.u32 %v5593, %v5597
      %v5600 = vshrl.u32 %v5549, 16
      %v5602 = vshll.u32 %v5549, 16
      %v5604 = vrot.slane %v5602, 1
      %v5605 = vor.u32 %v5600, %v5604
      %5606 = vrot.lane.b32.xlu0 %v5556, 8
      %v5607 = vpop.permute.xlu0 %5606
      %5608 = vrot.lane.b32.xlu0 %v5563, 8
      %v5609 = vpop.permute.xlu0 %5608
      %5610 = vrot.lane.b32.xlu0 %v5570, 8
      %v5611 = vpop.permute.xlu0 %5610
      %5612 = vrot.lane.b32.xlu0 %v5577, 8
      %v5613 = vpop.permute.xlu0 %5612
      %5614 = vrot.lane.b32.xlu0 %v5584, 8
      %v5615 = vpop.permute.xlu0 %5614
      %5616 = vrot.lane.b32.xlu0 %v5591, 8
      %v5617 = vpop.permute.xlu0 %5616
      %5618 = vrot.lane.b32.xlu0 %v5598, 8
      %v5619 = vpop.permute.xlu0 %5618
      %5620 = vrot.lane.b32.xlu0 %v5605, 8
      %v5621 = vpop.permute.xlu0 %5620
      %v5630 = vunpack.c.l.b16 %v5502
      %v5631 = vunpack.c.l.b16 %v5503
      %v5632 = vunpack.c.l.b16 %v5504
      %v5633 = vunpack.c.l.b16 %v5505
      %v5634 = vunpack.c.l.b16 %v5506
      %v5635 = vunpack.c.l.b16 %v5507
      %v5636 = vunpack.c.l.b16 %v5508
      %v5637 = vunpack.c.l.b16 %v5509
      %v5638 = vpack.c.b16 %v5527, %v5630
      %v5639 = vpack.c.b16 %v5529, %v5631
      %v5640 = vpack.c.b16 %v5531, %v5632
      %v5641 = vpack.c.b16 %v5533, %v5633
      %v5642 = vpack.c.b16 %v5535, %v5634
      %v5643 = vpack.c.b16 %v5537, %v5635
      %v5644 = vpack.c.b16 %v5539, %v5636
      %v5645 = vpack.c.b16 %v5541, %v5637
      %v5646 = vrot.slane %v5638, 1
      %v5647 = vrot.slane %v5639, 1
      %v5648 = vrot.slane %v5640, 1
      %v5649 = vrot.slane %v5641, 1
      %v5650 = vrot.slane %v5642, 1
      %v5651 = vrot.slane %v5643, 1
      %v5652 = vrot.slane %v5644, 1
      %v5653 = vrot.slane %v5645, 1
      %5654 = vrot.lane.b32.xlu0 %v5646, 16
      %v5655 = vpop.permute.xlu0 %5654
      %5656 = vrot.lane.b32.xlu0 %v5647, 16
      %v5657 = vpop.permute.xlu0 %5656
      %5658 = vrot.lane.b32.xlu0 %v5648, 16
      %v5659 = vpop.permute.xlu0 %5658
      %5660 = vrot.lane.b32.xlu0 %v5649, 16
      %v5661 = vpop.permute.xlu0 %5660
      %5662 = vrot.lane.b32.xlu0 %v5650, 16
      %v5663 = vpop.permute.xlu0 %5662
      %5664 = vrot.lane.b32.xlu0 %v5651, 16
      %v5665 = vpop.permute.xlu0 %5664
      %5666 = vrot.lane.b32.xlu0 %v5652, 16
      %v5667 = vpop.permute.xlu0 %5666
      %5668 = vrot.lane.b32.xlu0 %v5653, 16
      %v5669 = vpop.permute.xlu0 %5668
      %v5672 = vsel %vm3800, %v5486, %v5607
      %v5675 = vsel %vm3800, %v5487, %v5609
      %v5678 = vsel %vm3800, %v5488, %v5611
      %v5681 = vsel %vm3800, %v5489, %v5613
      %v5684 = vsel %vm3800, %v5490, %v5615
      %v5687 = vsel %vm3800, %v5491, %v5617
      %v5690 = vsel %vm3800, %v5492, %v5619
      %v5693 = vsel %vm3800, %v5493, %v5621
      %v5695 = vsel %vm5017, %v5672, %v5655
      %v5697 = vsel %vm5017, %v5675, %v5657
      %v5699 = vsel %vm5017, %v5678, %v5659
      %v5701 = vsel %vm5017, %v5681, %v5661
      %v5703 = vsel %vm5017, %v5684, %v5663
      %v5705 = vsel %vm5017, %v5687, %v5665
      %v5707 = vsel %vm5017, %v5690, %v5667
      %v5709 = vsel %vm5017, %v5693, %v5669
      %s5710 = scalar_lea.vmem %s3, 24
      %v5711 = vld [vmem:[%s5710] sm:$0xf]
      %v5712 = vld [vmem:[%s5710 + $0x4] sm:$0xf]
      %v5713 = vld [vmem:[%s5710 + $0x8] sm:$0xf]
      %v5722 = vunpack.c.l.b16 %v5695
      %v5723 = vunpack.c.l.b16 %v5697
      %v5724 = vunpack.c.l.b16 %v5699
      %v5725 = vunpack.c.l.b16 %v5701
      %v5726 = vunpack.c.l.b16 %v5703
      %v5727 = vunpack.c.l.b16 %v5705
      %v5728 = vunpack.c.l.b16 %v5707
      %v5729 = vunpack.c.l.b16 %v5709
      %v5730 = vpack.c.b16 %v5723, %v5722
      %v5731 = vpack.c.b16 %v5725, %v5724
      %v5732 = vpack.c.b16 %v5727, %v5726
      %v5733 = vpack.c.b16 %v5729, %v5728
      %v5737 = vunpack.c.l.b16 %v5711
      %v5738 = vunpack.c.l.b16 %v5712
      %v5739 = vunpack.c.l.b16 %v5713
      %v5740 = vpack.c.b16 %v5738, %v5737
      %v5741 = vpack.c.b16 %v5739, %v5739
      %v5744 = vsel %vm5294, %v5730, 0
      %v5747 = vsel %vm5294, %v5731, 0
      %v5750 = vsel %vm5294, %v5732, 0
      %v5753 = vsel %vm5294, %v5733, 0
      %v5756 = vsel %vm5307, %v5741, 0
      %5758 = vmatprep.subr.bf16.mxu0 0
      %5759 = vmatpush1.bf16.msra.mxu0 %v5740
      %5760 = vmatprep.subr.bf16.mxu0 0
      %5761 = vmatpush1.bf16.msra.mxu0 %v5756
      %5762 = vmatprep.subr.bf16.mxu0 0
      %5763 = vmatpush1.bf16.msra.mxu0 0
      %5764 = vmatprep.subr.bf16.mxu0 0
      %5765 = vmatpush1.bf16.msra.mxu0 0
      %5766 = vmatprep.subr.bf16.mxu0 0
      %5767 = vmatpush1.bf16.msra.mxu0 0
      %5768 = vmatprep.subr.bf16.mxu0 0
      %5769 = vmatpush1.bf16.msra.mxu0 0
      %5770 = vmatprep.subr.bf16.mxu0 0
      %5771 = vmatpush1.bf16.msra.mxu0 0
      %5772 = vmatprep.subr.bf16.mxu0 0
      %5773 = vmatpush1.bf16.msra.mxu0 0
      %5774 = vmatprep.subr.bf16.mxu0 0
      %5775 = vmatpush1.bf16.msra.mxu0 0
      %5776 = vmatprep.subr.bf16.mxu0 0
      %5777 = vmatpush1.bf16.msra.mxu0 0
      %5778 = vmatprep.subr.bf16.mxu0 0
      %5779 = vmatpush1.bf16.msra.mxu0 0
      %5780 = vmatprep.subr.bf16.mxu0 0
      %5781 = vmatpush1.bf16.msra.mxu0 0
      %5782 = vmatprep.subr.bf16.mxu0 0
      %5783 = vmatpush1.bf16.msra.mxu0 0
      %5784 = vmatprep.subr.bf16.mxu0 0
      %5785 = vmatpush1.bf16.msra.mxu0 0
      %5786 = vmatprep.subr.bf16.mxu0 0
      %5787 = vmatpush1.bf16.msra.mxu0 0
      %5788 = vmatprep.subr.bf16.mxu0 0
      %5789 = vmatpush1.bf16.msra.mxu0 0
      %5790 = vmatprep.mubr.bf16.mxu0 0
      %5791 = vmatmul.mubr.bf16.gmra.mrb[0].mxu0 %v5744
      %v5792 = vpop.f32.mrb[0].mxu0
      %v5793 = vadd.f32 0.0, %v5792
      %v5794 = vpop.f32.mrb[0].mxu0
      %v5795 = vpop.f32.mrb[0].mxu0
      %v5796 = vadd.f32 0.0, %v5795
      %v5797 = vpop.f32.mrb[0].mxu0
      %5798 = vmatprep.mubr.bf16.mxu0 0
      %5799 = vmatmul.mubr.bf16.gmra.mrb[0].mxu0 %v5747
      %v5800 = vpop.f32.mrb[0].mxu0
      %v5801 = vadd.f32 0.0, %v5800
      %v5802 = vpop.f32.mrb[0].mxu0
      %v5803 = vpop.f32.mrb[0].mxu0
      %v5804 = vadd.f32 0.0, %v5803
      %v5805 = vpop.f32.mrb[0].mxu0
      %5806 = vmatprep.mubr.bf16.mxu0 0
      %5807 = vmatmul.mubr.bf16.gmra.mrb[0].mxu0 %v5750
      %v5808 = vpop.f32.mrb[0].mxu0
      %v5809 = vadd.f32 0.0, %v5808
      %v5810 = vpop.f32.mrb[0].mxu0
      %v5811 = vpop.f32.mrb[0].mxu0
      %v5812 = vadd.f32 0.0, %v5811
      %v5813 = vpop.f32.mrb[0].mxu0
      %5814 = vmatprep.mubr.bf16.mxu0 0
      %5815 = vmatmul.mubr.bf16.gmra.mrb[0].mxu0 %v5753
      %v5816 = vpop.f32.mrb[0].mxu0
      %v5817 = vadd.f32 0.0, %v5816
      %v5818 = vpop.f32.mrb[0].mxu0
      %v5819 = vpop.f32.mrb[0].mxu0
      %v5820 = vadd.f32 0.0, %v5819
      %v5821 = vpop.f32.mrb[0].mxu0
      %5822 = vdwg.mxu0
      %v5823 = vadd.f32 %v5455, %v5793
      %v5824 = vadd.f32 %v5458, %v5796
      %v5825 = vadd.f32 %v5463, %v5801
      %v5826 = vadd.f32 %v5466, %v5804
      %v5827 = vadd.f32 %v5471, %v5809
      %v5828 = vadd.f32 %v5474, %v5812
      %v5829 = vadd.f32 %v5479, %v5817
      %v5830 = vadd.f32 %v5482, %v5820
      %v5831 = vld [vmem:[%s4] sm:$0x1]
      %v5833 = vlaneseq
      %v5834 = vshrl.u32 %v5833, 7
      %v5835 = vsub.s32 0, %v5834
      %v5836 = vrot.slane %v5831, %v5835
      %v5838 = vadd.f32 %v5823, %v5836
      %v5839 = vadd.f32 %v5824, %v5836
      %v5840 = vadd.f32 %v5825, %v5836
      %v5841 = vadd.f32 %v5826, %v5836
      %v5842 = vadd.f32 %v5827, %v5836
      %v5843 = vadd.f32 %v5828, %v5836
      %v5844 = vadd.f32 %v5829, %v5836
      %v5845 = vadd.f32 %v5830, %v5836
      %v5846 = vmax.f32 %v5838, 0.0
      %v5847 = vmax.f32 %v5839, 0.0
      %v5848 = vmax.f32 %v5840, 0.0
      %v5849 = vmax.f32 %v5841, 0.0
      %v5850 = vmax.f32 %v5842, 0.0
      %v5851 = vmax.f32 %v5843, 0.0
      %v5852 = vmax.f32 %v5844, 0.0
      %v5853 = vmax.f32 %v5845, 0.0
      %5854 = vst.msk [vmem:[%s224] sm:$0xff] %vm3800, %v5846
      %5855 = vst.msk [vmem:[%s224 + $0x8] sm:$0xff] %vm3800, %v5847
      %5856 = vst.msk [vmem:[%s224 + $0x10] sm:$0xff] %vm3800, %v5848
      %5857 = vst.msk [vmem:[%s224 + $0x18] sm:$0xff] %vm3800, %v5849
      %5858 = vst.msk [vmem:[%s224 + $0x20] sm:$0xff] %vm3800, %v5850
      %5859 = vst.msk [vmem:[%s224 + $0x28] sm:$0xff] %vm3800, %v5851
      %5860 = vst.msk [vmem:[%s224 + $0x30] sm:$0xff] %vm3800, %v5852
      %5861 = vst.msk [vmem:[%s224 + $0x38] sm:$0xff] %vm3800, %v5853
      %p5862 = scmp.lt.s32.totalorder %s16, 1
      %s5863 = scalar_select %p5862, %s16, 1
      %s5864 = smul.addr %s5863, 8
      %s5865 = smul.addr %s5864, 8
      %s5866 = scalar_lea.vmem %s5, %s5865
      // Predicated region
      $region41: #{down_forward.1} parent=39 // pred_check
        %p5867 = pneg %p144
      $region42: #{down_forward.1} parent=39 // pred_check_branch
        %5869 = sbr.rel (%p5867) target = $region44
      $region43: #{down_forward.1} parent=39 // pred_region
        _
      $region44: #{down_forward.1} parent=39 // pred_fallthru
        _
    $region40: #{down_forward.1} parent=5 // pred_fallthru
      _
    %p5870 = scmp.le.s32.totalorder 2, %s11
    // Predicated region
    $region45: #{down_forward.1} parent=5 // pred_check
      %p5871 = pneg %p5870
    $region46: #{down_forward.1} parent=5 // pred_check_branch
      %5873 = sbr.rel (%p5871) target = $region48
    $region47: #{down_forward.1} parent=5 // pred_region
      %s5874 = ssub.s32 %s11, 2
      // Predicated region
      $region49: #{down_forward.1} parent=47 // pred_check
        %p5875 = pneg %p150
      $region50: #{down_forward.1} parent=47 // pred_check_branch
        %5877 = sbr.rel (%p5875) target = $region52
      $region51: #{down_forward.1} parent=47 // pred_region
        %p5878 = scmp.lt.s32.totalorder %s17, 1
        %s5879 = scalar_select %p5878, %s17, 1
        %s5880 = smul.addr %s5879, 8
        %s5881 = smul.addr %s5880, 8
        %s5882 = scalar_lea.vmem %s5, %s5881
      $region52: #{down_forward.1} parent=47 // pred_fallthru
        _
    $region48: #{down_forward.1} parent=5 // pred_fallthru
      _
  $region6: #{down_forward.1} parent=0 // loop_footer
    %s15 = sadd.s32 1, %s11
  $region7: #{down_forward.1} parent=0 // loop_footer_branch
    %10 = sbr.rel target = $region3
  $region8: #{down_forward.1} parent=0 // loop_exit
    _

</llo_original>
